<compile_context>
chip_gen: v6e
topology: v6e:2x2x1
jax: 0.10.0
libtpu: 0.0.40
codegen_flags: <defaults>
</compile_context>

<pallas_src>
import functools

import jax
import jax.numpy as jnp
from jax.experimental import pallas as pl
from jax.experimental.pallas import tpu as pltpu


def _round_up(x, m):
    return ((x + m - 1) // m) * m


# ----------------------------------------------------------------------------
# Fused kernel: all GRU layers for one time chunk + (on last chunk) the head.
#   gates_i = x_t @ Wih^T + b_ih        (hoisted, batched over the chunk)
#   gates_h = h_{t-1} @ Whh^T + b_hh
#   r = sigmoid(gi_r + gh_r); z = sigmoid(gi_z + gh_z)
#   n = tanh(gi_n + r * gh_n); h = (1 - z) * n + z * h  ==  n + z * (h - n)
# ----------------------------------------------------------------------------
def _fused_gru_kernel(x_ref, wih0_ref, wih_rest_ref, whh_ref, bih_ref, bhh_ref,
                      wfc_ref, bfc_ref, out_ref,
                      h_ref, seq_ref, g_ref,
                      *, seq_len, needs_mask, unroll):
    c = pl.program_id(0)
    num_layers, bp, hp = h_ref.shape
    tc = g_ref.shape[0] // bp
    d_in = x_ref.shape[1]

    @pl.when(c == 0)
    def _():
        h_ref[...] = jnp.zeros_like(h_ref)   # h0 = zeros for every layer

    for layer in range(num_layers):
        # ---- Hoisted, batched input projection for the whole time chunk. ----
        if layer == 0:
            if d_in <= 8:
                # Tiny feature dim: unrolled VPU multiply-accumulate; avoids a
                # tiny-K MXU matmul and any 128-lane padding of x in HBM.
                xc = x_ref[...]                                    # (Tc*Bp, D) f32
                w0 = wih0_ref[...]                                 # (D, 3Hp)  f32
                g = jnp.broadcast_to(bih_ref[layer], (tc * bp, 3 * hp))
                for di in range(d_in):
                    g = g + xc[:, di:di + 1] * w0[di:di + 1, :]
                g_ref[...] = g
            else:
                g_ref[...] = (
                    jnp.dot(x_ref[...], wih0_ref[...],
                            preferred_element_type=jnp.float32)
                    + bih_ref[layer])
        else:
            g_ref[...] = (
                jnp.dot(seq_ref[...].astype(jnp.bfloat16),
                        wih_rest_ref[layer - 1],
                        preferred_element_type=jnp.float32)
                + bih_ref[layer])

        whh = whh_ref[layer]                                      # (Hp, 3Hp) bf16
        bhh_b = jnp.broadcast_to(bhh_ref[layer], (bp, 3 * hp))    # hoisted bcast
        last_layer = layer == num_layers - 1

        def step(t, h, whh=whh, bhh_b=bhh_b, last_layer=last_layer):
            row = pl.multiple_of(t * bp, bp)
            gt = g_ref[pl.ds(row, bp), :]                         # (Bp, 3Hp)
            hg = jnp.dot(h.astype(whh.dtype), whh,
                         preferred_element_type=jnp.float32) + bhh_b
            r = jax.nn.sigmoid(gt[:, :hp] + hg[:, :hp])
            z = jax.nn.sigmoid(gt[:, hp:2 * hp] + hg[:, hp:2 * hp])
            n = jnp.tanh(gt[:, 2 * hp:] + r * hg[:, 2 * hp:])
            h_new = n + z * (h - n)                               # == (1-z)*n + z*h
            if needs_mask:
                # Padded timesteps (t_global >= T) must not update the state.
                h_new = jnp.where(c * tc + t < seq_len, h_new, h)
            if not last_layer:
                seq_ref[pl.ds(row, bp), :] = h_new                # next layer's input
            return h_new

        h_ref[layer] = jax.lax.fori_loop(0, tc, step, h_ref[layer], unroll=unroll)

    # Fused BN(eval)+Dropout(identity)+Linear head on the final chunk only.
    @pl.when(c == pl.num_programs(0) - 1)
    def _():
        y = jnp.dot(h_ref[num_layers - 1], wfc_ref[...],
                    preferred_element_type=jnp.float32)
        out_ref[...] = (y + bfc_ref[...]).astype(out_ref.dtype)


def fused_stock_gru_call(xf, wih0, wih_rest, whh, bih, bhh, wfc, bfc,
                         *, bp, tc, seq_len, unroll):
    tb, d_in = xf.shape
    num_layers, hp, _ = whh.shape
    nchunks = tb // (tc * bp)
    needs_mask = (nchunks * tc) != seq_len

    kernel = functools.partial(_fused_gru_kernel, seq_len=seq_len,
                               needs_mask=needs_mask, unroll=unroll)

    def const_spec(shape):
        # Constant-index weights/biases: single-buffered (DMA'd once).
        return pl.BlockSpec(shape, lambda c, _n=len(shape): (0,) * _n,
                            pipeline_mode=pl.Buffered(1))

    seq_shape = (tc * bp, hp) if num_layers > 1 else (8, 128)

    # VMEM budget: resident weights (single-buffered) + scratch + pipelined I/O.
    weight_bytes = sum(int(a.size) * a.dtype.itemsize
                       for a in (wih0, wih_rest, whh, bih, bhh, wfc, bfc))
    scratch_bytes = (num_layers * bp * hp * 4
                     + seq_shape[0] * seq_shape[1] * 4
                     + tc * bp * 3 * hp * 4)
    io_bytes = 2 * tc * bp * d_in * 4 + 2 * bp * 128 * 4
    vmem_limit = int(min(100 * 2**20,
                         max(32 * 2**20, 3 * (weight_bytes + scratch_bytes + io_bytes))))

    return pl.pallas_call(
        kernel,
        out_shape=jax.ShapeDtypeStruct((bp, 128), jnp.float32),
        grid_spec=pltpu.PrefetchScalarGridSpec(
            num_scalar_prefetch=0,
            grid=(nchunks,),
            in_specs=[
                pl.BlockSpec((tc * bp, d_in), lambda c: (c, 0)),      # x chunk
                const_spec((d_in, 3 * hp)),                           # wih layer 0
                const_spec((max(num_layers - 1, 1), hp, 3 * hp)),     # wih layers 1..
                const_spec((num_layers, hp, 3 * hp)),                 # whh (all)
                const_spec((num_layers, 1, 3 * hp)),                  # b_ih (all)
                const_spec((num_layers, 1, 3 * hp)),                  # b_hh (all)
                const_spec((hp, 128)),                                # fused head W
                const_spec((1, 128)),                                 # fused head b
            ],
            out_specs=pl.BlockSpec((bp, 128), lambda c: (0, 0)),      # written last chunk
            scratch_shapes=[
                pltpu.VMEM((num_layers, bp, hp), jnp.float32),   # carried hidden states
                pltpu.VMEM(seq_shape, jnp.float32),              # prev-layer chunk seq
                pltpu.VMEM((tc * bp, 3 * hp), jnp.float32),      # projected gates
            ],
        ),
        compiler_params=pltpu.CompilerParams(
            dimension_semantics=("arbitrary",),   # time is sequential (carried h)
            vmem_limit_bytes=vmem_limit,
        ),
    )(xf, wih0, wih_rest, whh, bih, bhh, wfc, bfc)


# ----------------------------------------------------------------------------
# Parameter init (PyTorch shapes / default init) and kernel-layout prep.
# ----------------------------------------------------------------------------
def init_raw_params(key, input_size, hidden_size, num_layers):
    bound = 1.0 / float(hidden_size) ** 0.5
    layers = []
    for layer in range(num_layers):
        din = input_size if layer == 0 else hidden_size
        key, k1, k2, k3, k4 = jax.random.split(key, 5)
        layers.append({
            "w_ih": jax.random.uniform(k1, (3 * hidden_size, din), jnp.float32, -bound, bound),
            "w_hh": jax.random.uniform(k2, (3 * hidden_size, hidden_size), jnp.float32, -bound, bound),
            "b_ih": jax.random.uniform(k3, (3 * hidden_size,), jnp.float32, -bound, bound),
            "b_hh": jax.random.uniform(k4, (3 * hidden_size,), jnp.float32, -bound, bound),
        })
    key, k5, k6 = jax.random.split(key, 3)
    return {
        "layers": layers,
        # BatchNorm1d defaults (eval mode uses running stats).
        "bn_gamma": jnp.ones((hidden_size,), jnp.float32),
        "bn_beta": jnp.zeros((hidden_size,), jnp.float32),
        "bn_mean": jnp.zeros((hidden_size,), jnp.float32),
        "bn_var": jnp.ones((hidden_size,), jnp.float32),
        "w_fc": jax.random.uniform(k5, (1, hidden_size), jnp.float32, -bound, bound),
        "b_fc": jax.random.uniform(k6, (1,), jnp.float32, -bound, bound),
    }


def prepare_params(raw):
    h = raw["bn_gamma"].shape[0]
    hp = _round_up(h, 128)

    def gate_pad_cols(w):
        # Pad each of the 3 gate column blocks [r | z | n] from h to hp columns
        # so gate slices in the kernel stay lane-aligned.
        parts = [jnp.pad(w[:, i * h:(i + 1) * h], ((0, 0), (0, hp - h)))
                 for i in range(3)]
        return jnp.concatenate(parts, axis=1)

    lp0 = raw["layers"][0]
    wih0 = gate_pad_cols(lp0["w_ih"].T).astype(jnp.float32)      # (D, 3Hp), D unpadded
    wih_rest, whh_all, bih_all, bhh_all = [], [], [], []
    for i, lp in enumerate(raw["layers"]):
        whh_p = jnp.pad(gate_pad_cols(lp["w_hh"].T), ((0, hp - h), (0, 0)))
        whh_all.append(whh_p.astype(jnp.bfloat16))               # (Hp, 3Hp) bf16
        bih_all.append(gate_pad_cols(lp["b_ih"].reshape(1, -1)))  # (1, 3Hp) f32
        bhh_all.append(gate_pad_cols(lp["b_hh"].reshape(1, -1)))  # (1, 3Hp) f32
        if i > 0:
            wih_p = jnp.pad(gate_pad_cols(lp["w_ih"].T), ((0, hp - h), (0, 0)))
            wih_rest.append(wih_p.astype(jnp.bfloat16))          # (Hp, 3Hp) bf16
    if not wih_rest:   # single-layer model: unused dummy keeps the arg list fixed
        wih_rest.append(jnp.zeros((hp, 3 * hp), jnp.bfloat16))

    # Fold BN(eval) + Dropout(identity) + Linear into one affine; pad to 128 lanes.
    eps = 1e-5
    scale = raw["bn_gamma"] / jnp.sqrt(raw["bn_var"] + eps)
    shift = raw["bn_beta"] - raw["bn_mean"] * scale
    wfc_t = raw["w_fc"].T                                        # (H, 1)
    wfc_eff = wfc_t * scale[:, None]
    bfc_eff = shift @ wfc_t + raw["b_fc"]                        # (1,)
    wfc_pad = jnp.zeros((hp, 128), jnp.float32).at[:h, 0:1].set(wfc_eff)
    bfc_pad = jnp.zeros((1, 128), jnp.float32).at[0, 0].set(bfc_eff[0])

    return {
        "wih0": wih0,
        "wih_rest": jnp.stack(wih_rest),        # (max(L-1,1), Hp, 3Hp) bf16
        "whh": jnp.stack(whh_all),              # (L, Hp, 3Hp) bf16
        "bih": jnp.stack(bih_all),              # (L, 1, 3Hp)  f32
        "bhh": jnp.stack(bhh_all),              # (L, 1, 3Hp)  f32
        "wfc": wfc_pad, "bfc": bfc_pad,
    }


@jax.jit
def stock_gru_forward(prepared, x_btd):
    # x_btd: (B, T, D) float32, batch_first like the PyTorch module.
    b, t, d = x_btd.shape
    num_layers, hp, _ = prepared["whh"].shape
    bp = _round_up(b, 8)
    tc = min(t, 64)                   # time-chunk size; no exact-divisor search
    nchunks = -(-t // tc)
    tpad = nchunks * tc

    # Time-major, batch-padded, flattened to (Tpad*Bp, D): row t*Bp + b <-> (t, b).
    x = jnp.transpose(x_btd, (1, 0, 2)).astype(jnp.float32)       # (T, B, D)
    x = jnp.pad(x, ((0, tpad - t), (0, bp - b), (0, 0)))          # (Tpad, Bp, D)
    xf = x.reshape(tpad * bp, d)

    unroll = True if tc <= 16 else 8
    out_pad = fused_stock_gru_call(
        xf, prepared["wih0"], prepared["wih_rest"], prepared["whh"],
        prepared["bih"], prepared["bhh"], prepared["wfc"], prepared["bfc"],
        bp=bp, tc=tc, seq_len=t, unroll=unroll)
    return out_pad[:b, :1]


# ----------------------------------------------------------------------------
# Pure-JAX reference (unpadded, f32) for a sanity check.
# ----------------------------------------------------------------------------
def reference_forward(raw, x_btd):
    b, t, _ = x_btd.shape
    h_sz = raw["bn_gamma"].shape[0]
    x = x_btd.astype(jnp.float32)
    for lp in raw["layers"]:
        h = jnp.zeros((b, h_sz), jnp.float32)
        outs = []
        for ts in range(t):
            gi = x[:, ts, :] @ lp["w_ih"].T + lp["b_ih"]
            gh = h @ lp["w_hh"].T + lp["b_hh"]
            r = jax.nn.sigmoid(gi[:, :h_sz] + gh[:, :h_sz])
            z = jax.nn.sigmoid(gi[:, h_sz:2 * h_sz] + gh[:, h_sz:2 * h_sz])
            n = jnp.tanh(gi[:, 2 * h_sz:] + r * gh[:, 2 * h_sz:])
            h = (1.0 - z) * n + z * h
            outs.append(h)
        x = jnp.stack(outs, axis=1)
    h_last = x[:, -1, :]
    normed = ((h_last - raw["bn_mean"]) / jnp.sqrt(raw["bn_var"] + 1e-5)
              * raw["bn_gamma"] + raw["bn_beta"])
    return normed @ raw["w_fc"].T + raw["b_fc"]


if __name__ == "__main__":
    B, T, D, H, L = 2, 8, 4, 32, 2

    key = jax.random.PRNGKey(0)
    kparams, kx = jax.random.split(key)
    raw = init_raw_params(kparams, input_size=D, hidden_size=H, num_layers=L)
    prepared = prepare_params(raw)
    x = jax.random.normal(kx, (B, T, D), jnp.float32)

    out = stock_gru_forward(prepared, x)
    out = jax.block_until_ready(out)

    ref = reference_forward(raw, x)
    assert out.shape == (B, 1), out.shape
    # bf16 recurrent weights (f32 accumulation) -> slightly relaxed tolerance.
    assert jnp.allclose(out, ref, atol=3e-2, rtol=3e-2), (out, ref)

    print("KERNEL_OK")
</pallas_src>

<mosaic_0001>
module attributes {stable_mosaic.version = 11 : i64} {
  func.func @_fused_gru_kernel(%arg0: i32, %arg1: memref<64x4xf32, #tpu.memory_space<vmem>>, %arg2: memref<4x384xf32, #tpu.memory_space<vmem>>, %arg3: memref<1x128x384xbf16, #tpu.memory_space<vmem>>, %arg4: memref<2x128x384xbf16, #tpu.memory_space<vmem>>, %arg5: memref<2x1x384xf32, #tpu.memory_space<vmem>>, %arg6: memref<2x1x384xf32, #tpu.memory_space<vmem>>, %arg7: memref<128x128xf32, #tpu.memory_space<vmem>>, %arg8: memref<1x128xf32, #tpu.memory_space<vmem>>, %arg9: memref<8x128xf32, #tpu.memory_space<vmem>>, %arg10: memref<2x8x128xf32, #tpu.memory_space<vmem>>, %arg11: memref<64x128xf32, #tpu.memory_space<vmem>>, %arg12: memref<64x384xf32, #tpu.memory_space<vmem>>) attributes {dimension_semantics = [#tpu.dimension_semantics<arbitrary>], iteration_bounds = array<i64: 1>, scalar_prefetch = 0 : i64, scratch_operands = 3 : i64, tpu.core_type = #tpu.core_type<tc>, window_params = [{transform_indices = @transform_0, window_bounds = array<i64: 64, 4>}, {pipeline_mode = #tpu.pipeline_mode<synchronous>, transform_indices = @transform_1, window_bounds = array<i64: 4, 384>}, {pipeline_mode = #tpu.pipeline_mode<synchronous>, transform_indices = @transform_2, window_bounds = array<i64: 1, 128, 384>}, {pipeline_mode = #tpu.pipeline_mode<synchronous>, transform_indices = @transform_3, window_bounds = array<i64: 2, 128, 384>}, {pipeline_mode = #tpu.pipeline_mode<synchronous>, transform_indices = @transform_4, window_bounds = array<i64: 2, 1, 384>}, {pipeline_mode = #tpu.pipeline_mode<synchronous>, transform_indices = @transform_5, window_bounds = array<i64: 2, 1, 384>}, {pipeline_mode = #tpu.pipeline_mode<synchronous>, transform_indices = @transform_6, window_bounds = array<i64: 128, 128>}, {pipeline_mode = #tpu.pipeline_mode<synchronous>, transform_indices = @transform_7, window_bounds = array<i64: 1, 128>}, {pipeline_mode = #tpu.pipeline_mode<synchronous>, transform_indices = @transform_8, window_bounds = array<i64: 8, 128>}]} {
    %c0_i32 = arith.constant 0 : i32
    %0 = arith.cmpi eq, %arg0, %c0_i32 : i32
    %1 = arith.extui %0 : i1 to i32
    %c0_i32_0 = arith.constant 0 : i32
    %2 = arith.cmpi ne, %1, %c0_i32_0 : i32
    scf.if %2 {
      %cst_142 = arith.constant 0.000000e+00 : f32
      %581 = vector.broadcast %cst_142 : f32 to vector<2x8x128xf32>
      %c0_143 = arith.constant 0 : index
      %c0_144 = arith.constant 0 : index
      %c0_145 = arith.constant 0 : index
      %582 = vector.load %arg10[%c0_143, %c0_144, %c0_145] : memref<2x8x128xf32, #tpu.memory_space<vmem>>, vector<2x8x128xf32>
      tpu.vector_store %arg10[%c0_143, %c0_144, %c0_145], %581 {strides = array<i32>} : memref<2x8x128xf32, #tpu.memory_space<vmem>>, vector<2x8x128xf32>,
    } else {
    }
    %c0 = arith.constant 0 : index
    %c0_1 = arith.constant 0 : index
    %3 = vector.load %arg1[%c0, %c0_1] : memref<64x4xf32, #tpu.memory_space<vmem>>, vector<64x4xf32>
    %c0_2 = arith.constant 0 : index
    %c0_3 = arith.constant 0 : index
    %4 = vector.load %arg2[%c0_2, %c0_3] : memref<4x384xf32, #tpu.memory_space<vmem>>, vector<4x384xf32>
    %c0_4 = arith.constant 0 : index
    %c0_5 = arith.constant 0 : index
    %c0_6 = arith.constant 0 : index
    %5 = vector.load %arg5[%c0_4, %c0_5, %c0_6] : memref<2x1x384xf32, #tpu.memory_space<vmem>>, vector<1x1x384xf32>
    %6 = vector.shape_cast %5 : vector<1x1x384xf32> to vector<1x384xf32>
    %7 = vector.shape_cast %6 : vector<1x384xf32> to vector<1x384xf32>
    %8 = vector.broadcast %7 : vector<1x384xf32> to vector<64x384xf32>
    %9 = vector.extract_strided_slice %3 {offsets = [0, 0], sizes = [64, 1], strides = [1, 1]} : vector<64x4xf32> to vector<64x1xf32>
    %10 = vector.extract_strided_slice %4 {offsets = [0, 0], sizes = [1, 384], strides = [1, 1]} : vector<4x384xf32> to vector<1x384xf32>
    %11 = vector.broadcast %9 : vector<64x1xf32> to vector<64x384xf32>
    %12 = vector.broadcast %10 : vector<1x384xf32> to vector<64x384xf32>
    %13 = arith.mulf %11, %12 : vector<64x384xf32>
    %14 = arith.addf %8, %13 : vector<64x384xf32>
    %15 = vector.extract_strided_slice %3 {offsets = [0, 1], sizes = [64, 1], strides = [1, 1]} : vector<64x4xf32> to vector<64x1xf32>
    %16 = vector.extract_strided_slice %4 {offsets = [1, 0], sizes = [1, 384], strides = [1, 1]} : vector<4x384xf32> to vector<1x384xf32>
    %17 = vector.broadcast %15 : vector<64x1xf32> to vector<64x384xf32>
    %18 = vector.broadcast %16 : vector<1x384xf32> to vector<64x384xf32>
    %19 = arith.mulf %17, %18 : vector<64x384xf32>
    %20 = arith.addf %14, %19 : vector<64x384xf32>
    %21 = vector.extract_strided_slice %3 {offsets = [0, 2], sizes = [64, 1], strides = [1, 1]} : vector<64x4xf32> to vector<64x1xf32>
    %22 = vector.extract_strided_slice %4 {offsets = [2, 0], sizes = [1, 384], strides = [1, 1]} : vector<4x384xf32> to vector<1x384xf32>
    %23 = vector.broadcast %21 : vector<64x1xf32> to vector<64x384xf32>
    %24 = vector.broadcast %22 : vector<1x384xf32> to vector<64x384xf32>
    %25 = arith.mulf %23, %24 : vector<64x384xf32>
    %26 = arith.addf %20, %25 : vector<64x384xf32>
    %27 = vector.extract_strided_slice %3 {offsets = [0, 3], sizes = [64, 1], strides = [1, 1]} : vector<64x4xf32> to vector<64x1xf32>
    %28 = vector.extract_strided_slice %4 {offsets = [3, 0], sizes = [1, 384], strides = [1, 1]} : vector<4x384xf32> to vector<1x384xf32>
    %29 = vector.broadcast %27 : vector<64x1xf32> to vector<64x384xf32>
    %30 = vector.broadcast %28 : vector<1x384xf32> to vector<64x384xf32>
    %31 = arith.mulf %29, %30 : vector<64x384xf32>
    %32 = arith.addf %26, %31 : vector<64x384xf32>
    %c0_7 = arith.constant 0 : index
    %c0_8 = arith.constant 0 : index
    %33 = vector.load %arg12[%c0_7, %c0_8] : memref<64x384xf32, #tpu.memory_space<vmem>>, vector<64x384xf32>
    tpu.vector_store %arg12[%c0_7, %c0_8], %32 {strides = array<i32>} : memref<64x384xf32, #tpu.memory_space<vmem>>, vector<64x384xf32>,
    %c0_9 = arith.constant 0 : index
    %c0_10 = arith.constant 0 : index
    %c0_11 = arith.constant 0 : index
    %34 = vector.load %arg4[%c0_9, %c0_10, %c0_11] : memref<2x128x384xbf16, #tpu.memory_space<vmem>>, vector<1x128x384xbf16>
    %35 = vector.shape_cast %34 : vector<1x128x384xbf16> to vector<128x384xbf16>
    %c0_12 = arith.constant 0 : index
    %c0_13 = arith.constant 0 : index
    %c0_14 = arith.constant 0 : index
    %36 = vector.load %arg6[%c0_12, %c0_13, %c0_14] : memref<2x1x384xf32, #tpu.memory_space<vmem>>, vector<1x1x384xf32>
    %37 = vector.shape_cast %36 : vector<1x1x384xf32> to vector<1x384xf32>
    %38 = vector.shape_cast %37 : vector<1x384xf32> to vector<1x384xf32>
    %39 = vector.broadcast %38 : vector<1x384xf32> to vector<8x384xf32>
    %c0_15 = arith.constant 0 : index
    %c0_16 = arith.constant 0 : index
    %c0_17 = arith.constant 0 : index
    %40 = vector.load %arg10[%c0_15, %c0_16, %c0_17] : memref<2x8x128xf32, #tpu.memory_space<vmem>>, vector<1x8x128xf32>
    %41 = vector.shape_cast %40 : vector<1x8x128xf32> to vector<8x128xf32>
    %c0_i32_18 = arith.constant 0 : i32
    %c8_i32 = arith.constant 8 : i32
    %42 = arith.muli %c0_i32_18, %c8_i32 : i32
    %43 = tpu.assume_multiple %42, 8 : i32
    %44 = arith.index_cast %43 : i32 to index
    %c0_19 = arith.constant 0 : index
    %45 = vector.load %arg12[%44, %c0_19] : memref<64x384xf32, #tpu.memory_space<vmem>>, vector<8x384xf32>
    %46 = arith.truncf %41 : vector<8x128xf32> to vector<8x128xbf16>
    %cst = arith.constant dense<0.000000e+00> : vector<8x384xf32>
    %47 = tpu.matmul %46, %35, %cst {dimension_numbers = #tpu.dot_dimension_numbers<[1], [0], [0], [1], [0, 0, 1, 1], [], []>} : vector<8x128xbf16>, vector<128x384xbf16>, vector<8x384xf32> -> vector<8x384xf32>
    %48 = arith.addf %47, %39 : vector<8x384xf32>
    %49 = vector.extract_strided_slice %45 {offsets = [0, 0], sizes = [8, 128], strides = [1, 1]} : vector<8x384xf32> to vector<8x128xf32>
    %50 = vector.extract_strided_slice %48 {offsets = [0, 0], sizes = [8, 128], strides = [1, 1]} : vector<8x384xf32> to vector<8x128xf32>
    %51 = arith.addf %49, %50 : vector<8x128xf32>
    %52 = arith.negf %51 : vector<8x128xf32>
    %53 = math.exp %52 : vector<8x128xf32>
    %cst_20 = arith.constant 1.000000e+00 : f32
    %54 = vector.broadcast %cst_20 : f32 to vector<8x128xf32>
    %55 = arith.addf %54, %53 : vector<8x128xf32>
    %56 = arith.divf %54, %55 : vector<8x128xf32>
    %57 = vector.extract_strided_slice %45 {offsets = [0, 128], sizes = [8, 128], strides = [1, 1]} : vector<8x384xf32> to vector<8x128xf32>
    %58 = vector.extract_strided_slice %48 {offsets = [0, 128], sizes = [8, 128], strides = [1, 1]} : vector<8x384xf32> to vector<8x128xf32>
    %59 = arith.addf %57, %58 : vector<8x128xf32>
    %60 = arith.negf %59 : vector<8x128xf32>
    %61 = math.exp %60 : vector<8x128xf32>
    %cst_21 = arith.constant 1.000000e+00 : f32
    %62 = vector.broadcast %cst_21 : f32 to vector<8x128xf32>
    %63 = arith.addf %62, %61 : vector<8x128xf32>
    %64 = arith.divf %62, %63 : vector<8x128xf32>
    %65 = vector.extract_strided_slice %45 {offsets = [0, 256], sizes = [8, 128], strides = [1, 1]} : vector<8x384xf32> to vector<8x128xf32>
    %66 = vector.extract_strided_slice %48 {offsets = [0, 256], sizes = [8, 128], strides = [1, 1]} : vector<8x384xf32> to vector<8x128xf32>
    %67 = arith.mulf %56, %66 : vector<8x128xf32>
    %68 = arith.addf %65, %67 : vector<8x128xf32>
    %69 = math.tanh %68 : vector<8x128xf32>
    %70 = arith.subf %41, %69 : vector<8x128xf32>
    %71 = arith.mulf %64, %70 : vector<8x128xf32>
    %72 = arith.addf %69, %71 : vector<8x128xf32>
    %73 = arith.index_cast %43 : i32 to index
    %c0_22 = arith.constant 0 : index
    %74 = vector.load %arg11[%73, %c0_22] : memref<64x128xf32, #tpu.memory_space<vmem>>, vector<8x128xf32>
    tpu.vector_store %arg11[%73, %c0_22], %72 {strides = array<i32>} : memref<64x128xf32, #tpu.memory_space<vmem>>, vector<8x128xf32>,
    %c1_i32 = arith.constant 1 : i32
    %c8_i32_23 = arith.constant 8 : i32
    %75 = arith.muli %c1_i32, %c8_i32_23 : i32
    %76 = tpu.assume_multiple %75, 8 : i32
    %77 = arith.index_cast %76 : i32 to index
    %c0_24 = arith.constant 0 : index
    %78 = vector.load %arg12[%77, %c0_24] : memref<64x384xf32, #tpu.memory_space<vmem>>, vector<8x384xf32>
    %79 = arith.truncf %72 : vector<8x128xf32> to vector<8x128xbf16>
    %cst_25 = arith.constant dense<0.000000e+00> : vector<8x384xf32>
    %80 = tpu.matmul %79, %35, %cst_25 {dimension_numbers = #tpu.dot_dimension_numbers<[1], [0], [0], [1], [0, 0, 1, 1], [], []>} : vector<8x128xbf16>, vector<128x384xbf16>, vector<8x384xf32> -> vector<8x384xf32>
    %81 = arith.addf %80, %39 : vector<8x384xf32>
    %82 = vector.extract_strided_slice %78 {offsets = [0, 0], sizes = [8, 128], strides = [1, 1]} : vector<8x384xf32> to vector<8x128xf32>
    %83 = vector.extract_strided_slice %81 {offsets = [0, 0], sizes = [8, 128], strides = [1, 1]} : vector<8x384xf32> to vector<8x128xf32>
    %84 = arith.addf %82, %83 : vector<8x128xf32>
    %85 = arith.negf %84 : vector<8x128xf32>
    %86 = math.exp %85 : vector<8x128xf32>
    %cst_26 = arith.constant 1.000000e+00 : f32
    %87 = vector.broadcast %cst_26 : f32 to vector<8x128xf32>
    %88 = arith.addf %87, %86 : vector<8x128xf32>
    %89 = arith.divf %87, %88 : vector<8x128xf32>
    %90 = vector.extract_strided_slice %78 {offsets = [0, 128], sizes = [8, 128], strides = [1, 1]} : vector<8x384xf32> to vector<8x128xf32>
    %91 = vector.extract_strided_slice %81 {offsets = [0, 128], sizes = [8, 128], strides = [1, 1]} : vector<8x384xf32> to vector<8x128xf32>
    %92 = arith.addf %90, %91 : vector<8x128xf32>
    %93 = arith.negf %92 : vector<8x128xf32>
    %94 = math.exp %93 : vector<8x128xf32>
    %cst_27 = arith.constant 1.000000e+00 : f32
    %95 = vector.broadcast %cst_27 : f32 to vector<8x128xf32>
    %96 = arith.addf %95, %94 : vector<8x128xf32>
    %97 = arith.divf %95, %96 : vector<8x128xf32>
    %98 = vector.extract_strided_slice %78 {offsets = [0, 256], sizes = [8, 128], strides = [1, 1]} : vector<8x384xf32> to vector<8x128xf32>
    %99 = vector.extract_strided_slice %81 {offsets = [0, 256], sizes = [8, 128], strides = [1, 1]} : vector<8x384xf32> to vector<8x128xf32>
    %100 = arith.mulf %89, %99 : vector<8x128xf32>
    %101 = arith.addf %98, %100 : vector<8x128xf32>
    %102 = math.tanh %101 : vector<8x128xf32>
    %103 = arith.subf %72, %102 : vector<8x128xf32>
    %104 = arith.mulf %97, %103 : vector<8x128xf32>
    %105 = arith.addf %102, %104 : vector<8x128xf32>
    %106 = arith.index_cast %76 : i32 to index
    %c0_28 = arith.constant 0 : index
    %107 = vector.load %arg11[%106, %c0_28] : memref<64x128xf32, #tpu.memory_space<vmem>>, vector<8x128xf32>
    tpu.vector_store %arg11[%106, %c0_28], %105 {strides = array<i32>} : memref<64x128xf32, #tpu.memory_space<vmem>>, vector<8x128xf32>,
    %c2_i32 = arith.constant 2 : i32
    %c8_i32_29 = arith.constant 8 : i32
    %108 = arith.muli %c2_i32, %c8_i32_29 : i32
    %109 = tpu.assume_multiple %108, 8 : i32
    %110 = arith.index_cast %109 : i32 to index
    %c0_30 = arith.constant 0 : index
    %111 = vector.load %arg12[%110, %c0_30] : memref<64x384xf32, #tpu.memory_space<vmem>>, vector<8x384xf32>
    %112 = arith.truncf %105 : vector<8x128xf32> to vector<8x128xbf16>
    %cst_31 = arith.constant dense<0.000000e+00> : vector<8x384xf32>
    %113 = tpu.matmul %112, %35, %cst_31 {dimension_numbers = #tpu.dot_dimension_numbers<[1], [0], [0], [1], [0, 0, 1, 1], [], []>} : vector<8x128xbf16>, vector<128x384xbf16>, vector<8x384xf32> -> vector<8x384xf32>
    %114 = arith.addf %113, %39 : vector<8x384xf32>
    %115 = vector.extract_strided_slice %111 {offsets = [0, 0], sizes = [8, 128], strides = [1, 1]} : vector<8x384xf32> to vector<8x128xf32>
    %116 = vector.extract_strided_slice %114 {offsets = [0, 0], sizes = [8, 128], strides = [1, 1]} : vector<8x384xf32> to vector<8x128xf32>
    %117 = arith.addf %115, %116 : vector<8x128xf32>
    %118 = arith.negf %117 : vector<8x128xf32>
    %119 = math.exp %118 : vector<8x128xf32>
    %cst_32 = arith.constant 1.000000e+00 : f32
    %120 = vector.broadcast %cst_32 : f32 to vector<8x128xf32>
    %121 = arith.addf %120, %119 : vector<8x128xf32>
    %122 = arith.divf %120, %121 : vector<8x128xf32>
    %123 = vector.extract_strided_slice %111 {offsets = [0, 128], sizes = [8, 128], strides = [1, 1]} : vector<8x384xf32> to vector<8x128xf32>
    %124 = vector.extract_strided_slice %114 {offsets = [0, 128], sizes = [8, 128], strides = [1, 1]} : vector<8x384xf32> to vector<8x128xf32>
    %125 = arith.addf %123, %124 : vector<8x128xf32>
    %126 = arith.negf %125 : vector<8x128xf32>
    %127 = math.exp %126 : vector<8x128xf32>
    %cst_33 = arith.constant 1.000000e+00 : f32
    %128 = vector.broadcast %cst_33 : f32 to vector<8x128xf32>
    %129 = arith.addf %128, %127 : vector<8x128xf32>
    %130 = arith.divf %128, %129 : vector<8x128xf32>
    %131 = vector.extract_strided_slice %111 {offsets = [0, 256], sizes = [8, 128], strides = [1, 1]} : vector<8x384xf32> to vector<8x128xf32>
    %132 = vector.extract_strided_slice %114 {offsets = [0, 256], sizes = [8, 128], strides = [1, 1]} : vector<8x384xf32> to vector<8x128xf32>
    %133 = arith.mulf %122, %132 : vector<8x128xf32>
    %134 = arith.addf %131, %133 : vector<8x128xf32>
    %135 = math.tanh %134 : vector<8x128xf32>
    %136 = arith.subf %105, %135 : vector<8x128xf32>
    %137 = arith.mulf %130, %136 : vector<8x128xf32>
    %138 = arith.addf %135, %137 : vector<8x128xf32>
    %139 = arith.index_cast %109 : i32 to index
    %c0_34 = arith.constant 0 : index
    %140 = vector.load %arg11[%139, %c0_34] : memref<64x128xf32, #tpu.memory_space<vmem>>, vector<8x128xf32>
    tpu.vector_store %arg11[%139, %c0_34], %138 {strides = array<i32>} : memref<64x128xf32, #tpu.memory_space<vmem>>, vector<8x128xf32>,
    %c3_i32 = arith.constant 3 : i32
    %c8_i32_35 = arith.constant 8 : i32
    %141 = arith.muli %c3_i32, %c8_i32_35 : i32
    %142 = tpu.assume_multiple %141, 8 : i32
    %143 = arith.index_cast %142 : i32 to index
    %c0_36 = arith.constant 0 : index
    %144 = vector.load %arg12[%143, %c0_36] : memref<64x384xf32, #tpu.memory_space<vmem>>, vector<8x384xf32>
    %145 = arith.truncf %138 : vector<8x128xf32> to vector<8x128xbf16>
    %cst_37 = arith.constant dense<0.000000e+00> : vector<8x384xf32>
    %146 = tpu.matmul %145, %35, %cst_37 {dimension_numbers = #tpu.dot_dimension_numbers<[1], [0], [0], [1], [0, 0, 1, 1], [], []>} : vector<8x128xbf16>, vector<128x384xbf16>, vector<8x384xf32> -> vector<8x384xf32>
    %147 = arith.addf %146, %39 : vector<8x384xf32>
    %148 = vector.extract_strided_slice %144 {offsets = [0, 0], sizes = [8, 128], strides = [1, 1]} : vector<8x384xf32> to vector<8x128xf32>
    %149 = vector.extract_strided_slice %147 {offsets = [0, 0], sizes = [8, 128], strides = [1, 1]} : vector<8x384xf32> to vector<8x128xf32>
    %150 = arith.addf %148, %149 : vector<8x128xf32>
    %151 = arith.negf %150 : vector<8x128xf32>
    %152 = math.exp %151 : vector<8x128xf32>
    %cst_38 = arith.constant 1.000000e+00 : f32
    %153 = vector.broadcast %cst_38 : f32 to vector<8x128xf32>
    %154 = arith.addf %153, %152 : vector<8x128xf32>
    %155 = arith.divf %153, %154 : vector<8x128xf32>
    %156 = vector.extract_strided_slice %144 {offsets = [0, 128], sizes = [8, 128], strides = [1, 1]} : vector<8x384xf32> to vector<8x128xf32>
    %157 = vector.extract_strided_slice %147 {offsets = [0, 128], sizes = [8, 128], strides = [1, 1]} : vector<8x384xf32> to vector<8x128xf32>
    %158 = arith.addf %156, %157 : vector<8x128xf32>
    %159 = arith.negf %158 : vector<8x128xf32>
    %160 = math.exp %159 : vector<8x128xf32>
    %cst_39 = arith.constant 1.000000e+00 : f32
    %161 = vector.broadcast %cst_39 : f32 to vector<8x128xf32>
    %162 = arith.addf %161, %160 : vector<8x128xf32>
    %163 = arith.divf %161, %162 : vector<8x128xf32>
    %164 = vector.extract_strided_slice %144 {offsets = [0, 256], sizes = [8, 128], strides = [1, 1]} : vector<8x384xf32> to vector<8x128xf32>
    %165 = vector.extract_strided_slice %147 {offsets = [0, 256], sizes = [8, 128], strides = [1, 1]} : vector<8x384xf32> to vector<8x128xf32>
    %166 = arith.mulf %155, %165 : vector<8x128xf32>
    %167 = arith.addf %164, %166 : vector<8x128xf32>
    %168 = math.tanh %167 : vector<8x128xf32>
    %169 = arith.subf %138, %168 : vector<8x128xf32>
    %170 = arith.mulf %163, %169 : vector<8x128xf32>
    %171 = arith.addf %168, %170 : vector<8x128xf32>
    %172 = arith.index_cast %142 : i32 to index
    %c0_40 = arith.constant 0 : index
    %173 = vector.load %arg11[%172, %c0_40] : memref<64x128xf32, #tpu.memory_space<vmem>>, vector<8x128xf32>
    tpu.vector_store %arg11[%172, %c0_40], %171 {strides = array<i32>} : memref<64x128xf32, #tpu.memory_space<vmem>>, vector<8x128xf32>,
    %c4_i32 = arith.constant 4 : i32
    %c8_i32_41 = arith.constant 8 : i32
    %174 = arith.muli %c4_i32, %c8_i32_41 : i32
    %175 = tpu.assume_multiple %174, 8 : i32
    %176 = arith.index_cast %175 : i32 to index
    %c0_42 = arith.constant 0 : index
    %177 = vector.load %arg12[%176, %c0_42] : memref<64x384xf32, #tpu.memory_space<vmem>>, vector<8x384xf32>
    %178 = arith.truncf %171 : vector<8x128xf32> to vector<8x128xbf16>
    %cst_43 = arith.constant dense<0.000000e+00> : vector<8x384xf32>
    %179 = tpu.matmul %178, %35, %cst_43 {dimension_numbers = #tpu.dot_dimension_numbers<[1], [0], [0], [1], [0, 0, 1, 1], [], []>} : vector<8x128xbf16>, vector<128x384xbf16>, vector<8x384xf32> -> vector<8x384xf32>
    %180 = arith.addf %179, %39 : vector<8x384xf32>
    %181 = vector.extract_strided_slice %177 {offsets = [0, 0], sizes = [8, 128], strides = [1, 1]} : vector<8x384xf32> to vector<8x128xf32>
    %182 = vector.extract_strided_slice %180 {offsets = [0, 0], sizes = [8, 128], strides = [1, 1]} : vector<8x384xf32> to vector<8x128xf32>
    %183 = arith.addf %181, %182 : vector<8x128xf32>
    %184 = arith.negf %183 : vector<8x128xf32>
    %185 = math.exp %184 : vector<8x128xf32>
    %cst_44 = arith.constant 1.000000e+00 : f32
    %186 = vector.broadcast %cst_44 : f32 to vector<8x128xf32>
    %187 = arith.addf %186, %185 : vector<8x128xf32>
    %188 = arith.divf %186, %187 : vector<8x128xf32>
    %189 = vector.extract_strided_slice %177 {offsets = [0, 128], sizes = [8, 128], strides = [1, 1]} : vector<8x384xf32> to vector<8x128xf32>
    %190 = vector.extract_strided_slice %180 {offsets = [0, 128], sizes = [8, 128], strides = [1, 1]} : vector<8x384xf32> to vector<8x128xf32>
    %191 = arith.addf %189, %190 : vector<8x128xf32>
    %192 = arith.negf %191 : vector<8x128xf32>
    %193 = math.exp %192 : vector<8x128xf32>
    %cst_45 = arith.constant 1.000000e+00 : f32
    %194 = vector.broadcast %cst_45 : f32 to vector<8x128xf32>
    %195 = arith.addf %194, %193 : vector<8x128xf32>
    %196 = arith.divf %194, %195 : vector<8x128xf32>
    %197 = vector.extract_strided_slice %177 {offsets = [0, 256], sizes = [8, 128], strides = [1, 1]} : vector<8x384xf32> to vector<8x128xf32>
    %198 = vector.extract_strided_slice %180 {offsets = [0, 256], sizes = [8, 128], strides = [1, 1]} : vector<8x384xf32> to vector<8x128xf32>
    %199 = arith.mulf %188, %198 : vector<8x128xf32>
    %200 = arith.addf %197, %199 : vector<8x128xf32>
    %201 = math.tanh %200 : vector<8x128xf32>
    %202 = arith.subf %171, %201 : vector<8x128xf32>
    %203 = arith.mulf %196, %202 : vector<8x128xf32>
    %204 = arith.addf %201, %203 : vector<8x128xf32>
    %205 = arith.index_cast %175 : i32 to index
    %c0_46 = arith.constant 0 : index
    %206 = vector.load %arg11[%205, %c0_46] : memref<64x128xf32, #tpu.memory_space<vmem>>, vector<8x128xf32>
    tpu.vector_store %arg11[%205, %c0_46], %204 {strides = array<i32>} : memref<64x128xf32, #tpu.memory_space<vmem>>, vector<8x128xf32>,
    %c5_i32 = arith.constant 5 : i32
    %c8_i32_47 = arith.constant 8 : i32
    %207 = arith.muli %c5_i32, %c8_i32_47 : i32
    %208 = tpu.assume_multiple %207, 8 : i32
    %209 = arith.index_cast %208 : i32 to index
    %c0_48 = arith.constant 0 : index
    %210 = vector.load %arg12[%209, %c0_48] : memref<64x384xf32, #tpu.memory_space<vmem>>, vector<8x384xf32>
    %211 = arith.truncf %204 : vector<8x128xf32> to vector<8x128xbf16>
    %cst_49 = arith.constant dense<0.000000e+00> : vector<8x384xf32>
    %212 = tpu.matmul %211, %35, %cst_49 {dimension_numbers = #tpu.dot_dimension_numbers<[1], [0], [0], [1], [0, 0, 1, 1], [], []>} : vector<8x128xbf16>, vector<128x384xbf16>, vector<8x384xf32> -> vector<8x384xf32>
    %213 = arith.addf %212, %39 : vector<8x384xf32>
    %214 = vector.extract_strided_slice %210 {offsets = [0, 0], sizes = [8, 128], strides = [1, 1]} : vector<8x384xf32> to vector<8x128xf32>
    %215 = vector.extract_strided_slice %213 {offsets = [0, 0], sizes = [8, 128], strides = [1, 1]} : vector<8x384xf32> to vector<8x128xf32>
    %216 = arith.addf %214, %215 : vector<8x128xf32>
    %217 = arith.negf %216 : vector<8x128xf32>
    %218 = math.exp %217 : vector<8x128xf32>
    %cst_50 = arith.constant 1.000000e+00 : f32
    %219 = vector.broadcast %cst_50 : f32 to vector<8x128xf32>
    %220 = arith.addf %219, %218 : vector<8x128xf32>
    %221 = arith.divf %219, %220 : vector<8x128xf32>
    %222 = vector.extract_strided_slice %210 {offsets = [0, 128], sizes = [8, 128], strides = [1, 1]} : vector<8x384xf32> to vector<8x128xf32>
    %223 = vector.extract_strided_slice %213 {offsets = [0, 128], sizes = [8, 128], strides = [1, 1]} : vector<8x384xf32> to vector<8x128xf32>
    %224 = arith.addf %222, %223 : vector<8x128xf32>
    %225 = arith.negf %224 : vector<8x128xf32>
    %226 = math.exp %225 : vector<8x128xf32>
    %cst_51 = arith.constant 1.000000e+00 : f32
    %227 = vector.broadcast %cst_51 : f32 to vector<8x128xf32>
    %228 = arith.addf %227, %226 : vector<8x128xf32>
    %229 = arith.divf %227, %228 : vector<8x128xf32>
    %230 = vector.extract_strided_slice %210 {offsets = [0, 256], sizes = [8, 128], strides = [1, 1]} : vector<8x384xf32> to vector<8x128xf32>
    %231 = vector.extract_strided_slice %213 {offsets = [0, 256], sizes = [8, 128], strides = [1, 1]} : vector<8x384xf32> to vector<8x128xf32>
    %232 = arith.mulf %221, %231 : vector<8x128xf32>
    %233 = arith.addf %230, %232 : vector<8x128xf32>
    %234 = math.tanh %233 : vector<8x128xf32>
    %235 = arith.subf %204, %234 : vector<8x128xf32>
    %236 = arith.mulf %229, %235 : vector<8x128xf32>
    %237 = arith.addf %234, %236 : vector<8x128xf32>
    %238 = arith.index_cast %208 : i32 to index
    %c0_52 = arith.constant 0 : index
    %239 = vector.load %arg11[%238, %c0_52] : memref<64x128xf32, #tpu.memory_space<vmem>>, vector<8x128xf32>
    tpu.vector_store %arg11[%238, %c0_52], %237 {strides = array<i32>} : memref<64x128xf32, #tpu.memory_space<vmem>>, vector<8x128xf32>,
    %c6_i32 = arith.constant 6 : i32
    %c8_i32_53 = arith.constant 8 : i32
    %240 = arith.muli %c6_i32, %c8_i32_53 : i32
    %241 = tpu.assume_multiple %240, 8 : i32
    %242 = arith.index_cast %241 : i32 to index
    %c0_54 = arith.constant 0 : index
    %243 = vector.load %arg12[%242, %c0_54] : memref<64x384xf32, #tpu.memory_space<vmem>>, vector<8x384xf32>
    %244 = arith.truncf %237 : vector<8x128xf32> to vector<8x128xbf16>
    %cst_55 = arith.constant dense<0.000000e+00> : vector<8x384xf32>
    %245 = tpu.matmul %244, %35, %cst_55 {dimension_numbers = #tpu.dot_dimension_numbers<[1], [0], [0], [1], [0, 0, 1, 1], [], []>} : vector<8x128xbf16>, vector<128x384xbf16>, vector<8x384xf32> -> vector<8x384xf32>
    %246 = arith.addf %245, %39 : vector<8x384xf32>
    %247 = vector.extract_strided_slice %243 {offsets = [0, 0], sizes = [8, 128], strides = [1, 1]} : vector<8x384xf32> to vector<8x128xf32>
    %248 = vector.extract_strided_slice %246 {offsets = [0, 0], sizes = [8, 128], strides = [1, 1]} : vector<8x384xf32> to vector<8x128xf32>
    %249 = arith.addf %247, %248 : vector<8x128xf32>
    %250 = arith.negf %249 : vector<8x128xf32>
    %251 = math.exp %250 : vector<8x128xf32>
    %cst_56 = arith.constant 1.000000e+00 : f32
    %252 = vector.broadcast %cst_56 : f32 to vector<8x128xf32>
    %253 = arith.addf %252, %251 : vector<8x128xf32>
    %254 = arith.divf %252, %253 : vector<8x128xf32>
    %255 = vector.extract_strided_slice %243 {offsets = [0, 128], sizes = [8, 128], strides = [1, 1]} : vector<8x384xf32> to vector<8x128xf32>
    %256 = vector.extract_strided_slice %246 {offsets = [0, 128], sizes = [8, 128], strides = [1, 1]} : vector<8x384xf32> to vector<8x128xf32>
    %257 = arith.addf %255, %256 : vector<8x128xf32>
    %258 = arith.negf %257 : vector<8x128xf32>
    %259 = math.exp %258 : vector<8x128xf32>
    %cst_57 = arith.constant 1.000000e+00 : f32
    %260 = vector.broadcast %cst_57 : f32 to vector<8x128xf32>
    %261 = arith.addf %260, %259 : vector<8x128xf32>
    %262 = arith.divf %260, %261 : vector<8x128xf32>
    %263 = vector.extract_strided_slice %243 {offsets = [0, 256], sizes = [8, 128], strides = [1, 1]} : vector<8x384xf32> to vector<8x128xf32>
    %264 = vector.extract_strided_slice %246 {offsets = [0, 256], sizes = [8, 128], strides = [1, 1]} : vector<8x384xf32> to vector<8x128xf32>
    %265 = arith.mulf %254, %264 : vector<8x128xf32>
    %266 = arith.addf %263, %265 : vector<8x128xf32>
    %267 = math.tanh %266 : vector<8x128xf32>
    %268 = arith.subf %237, %267 : vector<8x128xf32>
    %269 = arith.mulf %262, %268 : vector<8x128xf32>
    %270 = arith.addf %267, %269 : vector<8x128xf32>
    %271 = arith.index_cast %241 : i32 to index
    %c0_58 = arith.constant 0 : index
    %272 = vector.load %arg11[%271, %c0_58] : memref<64x128xf32, #tpu.memory_space<vmem>>, vector<8x128xf32>
    tpu.vector_store %arg11[%271, %c0_58], %270 {strides = array<i32>} : memref<64x128xf32, #tpu.memory_space<vmem>>, vector<8x128xf32>,
    %c7_i32 = arith.constant 7 : i32
    %c8_i32_59 = arith.constant 8 : i32
    %273 = arith.muli %c7_i32, %c8_i32_59 : i32
    %274 = tpu.assume_multiple %273, 8 : i32
    %275 = arith.index_cast %274 : i32 to index
    %c0_60 = arith.constant 0 : index
    %276 = vector.load %arg12[%275, %c0_60] : memref<64x384xf32, #tpu.memory_space<vmem>>, vector<8x384xf32>
    %277 = arith.truncf %270 : vector<8x128xf32> to vector<8x128xbf16>
    %cst_61 = arith.constant dense<0.000000e+00> : vector<8x384xf32>
    %278 = tpu.matmul %277, %35, %cst_61 {dimension_numbers = #tpu.dot_dimension_numbers<[1], [0], [0], [1], [0, 0, 1, 1], [], []>} : vector<8x128xbf16>, vector<128x384xbf16>, vector<8x384xf32> -> vector<8x384xf32>
    %279 = arith.addf %278, %39 : vector<8x384xf32>
    %280 = vector.extract_strided_slice %276 {offsets = [0, 0], sizes = [8, 128], strides = [1, 1]} : vector<8x384xf32> to vector<8x128xf32>
    %281 = vector.extract_strided_slice %279 {offsets = [0, 0], sizes = [8, 128], strides = [1, 1]} : vector<8x384xf32> to vector<8x128xf32>
    %282 = arith.addf %280, %281 : vector<8x128xf32>
    %283 = arith.negf %282 : vector<8x128xf32>
    %284 = math.exp %283 : vector<8x128xf32>
    %cst_62 = arith.constant 1.000000e+00 : f32
    %285 = vector.broadcast %cst_62 : f32 to vector<8x128xf32>
    %286 = arith.addf %285, %284 : vector<8x128xf32>
    %287 = arith.divf %285, %286 : vector<8x128xf32>
    %288 = vector.extract_strided_slice %276 {offsets = [0, 128], sizes = [8, 128], strides = [1, 1]} : vector<8x384xf32> to vector<8x128xf32>
    %289 = vector.extract_strided_slice %279 {offsets = [0, 128], sizes = [8, 128], strides = [1, 1]} : vector<8x384xf32> to vector<8x128xf32>
    %290 = arith.addf %288, %289 : vector<8x128xf32>
    %291 = arith.negf %290 : vector<8x128xf32>
    %292 = math.exp %291 : vector<8x128xf32>
    %cst_63 = arith.constant 1.000000e+00 : f32
    %293 = vector.broadcast %cst_63 : f32 to vector<8x128xf32>
    %294 = arith.addf %293, %292 : vector<8x128xf32>
    %295 = arith.divf %293, %294 : vector<8x128xf32>
    %296 = vector.extract_strided_slice %276 {offsets = [0, 256], sizes = [8, 128], strides = [1, 1]} : vector<8x384xf32> to vector<8x128xf32>
    %297 = vector.extract_strided_slice %279 {offsets = [0, 256], sizes = [8, 128], strides = [1, 1]} : vector<8x384xf32> to vector<8x128xf32>
    %298 = arith.mulf %287, %297 : vector<8x128xf32>
    %299 = arith.addf %296, %298 : vector<8x128xf32>
    %300 = math.tanh %299 : vector<8x128xf32>
    %301 = arith.subf %270, %300 : vector<8x128xf32>
    %302 = arith.mulf %295, %301 : vector<8x128xf32>
    %303 = arith.addf %300, %302 : vector<8x128xf32>
    %304 = arith.index_cast %274 : i32 to index
    %c0_64 = arith.constant 0 : index
    %305 = vector.load %arg11[%304, %c0_64] : memref<64x128xf32, #tpu.memory_space<vmem>>, vector<8x128xf32>
    tpu.vector_store %arg11[%304, %c0_64], %303 {strides = array<i32>} : memref<64x128xf32, #tpu.memory_space<vmem>>, vector<8x128xf32>,
    %c8_i32_65 = arith.constant 8 : i32
    %c0_66 = arith.constant 0 : index
    %c0_67 = arith.constant 0 : index
    %c0_68 = arith.constant 0 : index
    %306 = vector.load %arg10[%c0_66, %c0_67, %c0_68] : memref<2x8x128xf32, #tpu.memory_space<vmem>>, vector<1x8x128xf32>
    %307 = vector.shape_cast %306 : vector<1x8x128xf32> to vector<8x128xf32>
    %308 = vector.shape_cast %303 : vector<8x128xf32> to vector<1x8x128xf32>
    tpu.vector_store %arg10[%c0_66, %c0_67, %c0_68], %308 {strides = array<i32>} : memref<2x8x128xf32, #tpu.memory_space<vmem>>, vector<1x8x128xf32>,
    %c0_69 = arith.constant 0 : index
    %c0_70 = arith.constant 0 : index
    %309 = vector.load %arg11[%c0_69, %c0_70] : memref<64x128xf32, #tpu.memory_space<vmem>>, vector<64x128xf32>
    %310 = arith.truncf %309 : vector<64x128xf32> to vector<64x128xbf16>
    %c0_71 = arith.constant 0 : index
    %c0_72 = arith.constant 0 : index
    %c0_73 = arith.constant 0 : index
    %311 = vector.load %arg3[%c0_71, %c0_72, %c0_73] : memref<1x128x384xbf16, #tpu.memory_space<vmem>>, vector<1x128x384xbf16>
    %312 = vector.shape_cast %311 : vector<1x128x384xbf16> to vector<128x384xbf16>
    %cst_74 = arith.constant dense<0.000000e+00> : vector<64x384xf32>
    %313 = tpu.matmul %310, %312, %cst_74 {dimension_numbers = #tpu.dot_dimension_numbers<[1], [0], [0], [1], [0, 0, 1, 1], [], []>} : vector<64x128xbf16>, vector<128x384xbf16>, vector<64x384xf32> -> vector<64x384xf32>
    %c1 = arith.constant 1 : index
    %c0_75 = arith.constant 0 : index
    %c0_76 = arith.constant 0 : index
    %314 = vector.load %arg5[%c1, %c0_75, %c0_76] : memref<2x1x384xf32, #tpu.memory_space<vmem>>, vector<1x1x384xf32>
    %315 = vector.shape_cast %314 : vector<1x1x384xf32> to vector<1x384xf32>
    %316 = vector.broadcast %315 : vector<1x384xf32> to vector<64x384xf32>
    %317 = arith.addf %313, %316 : vector<64x384xf32>
    %c0_77 = arith.constant 0 : index
    %c0_78 = arith.constant 0 : index
    %318 = vector.load %arg12[%c0_77, %c0_78] : memref<64x384xf32, #tpu.memory_space<vmem>>, vector<64x384xf32>
    tpu.vector_store %arg12[%c0_77, %c0_78], %317 {strides = array<i32>} : memref<64x384xf32, #tpu.memory_space<vmem>>, vector<64x384xf32>,
    %c1_79 = arith.constant 1 : index
    %c0_80 = arith.constant 0 : index
    %c0_81 = arith.constant 0 : index
    %319 = vector.load %arg4[%c1_79, %c0_80, %c0_81] : memref<2x128x384xbf16, #tpu.memory_space<vmem>>, vector<1x128x384xbf16>
    %320 = vector.shape_cast %319 : vector<1x128x384xbf16> to vector<128x384xbf16>
    %c1_82 = arith.constant 1 : index
    %c0_83 = arith.constant 0 : index
    %c0_84 = arith.constant 0 : index
    %321 = vector.load %arg6[%c1_82, %c0_83, %c0_84] : memref<2x1x384xf32, #tpu.memory_space<vmem>>, vector<1x1x384xf32>
    %322 = vector.shape_cast %321 : vector<1x1x384xf32> to vector<1x384xf32>
    %323 = vector.shape_cast %322 : vector<1x384xf32> to vector<1x384xf32>
    %324 = vector.broadcast %323 : vector<1x384xf32> to vector<8x384xf32>
    %c1_85 = arith.constant 1 : index
    %c0_86 = arith.constant 0 : index
    %c0_87 = arith.constant 0 : index
    %325 = vector.load %arg10[%c1_85, %c0_86, %c0_87] : memref<2x8x128xf32, #tpu.memory_space<vmem>>, vector<1x8x128xf32>
    %326 = vector.shape_cast %325 : vector<1x8x128xf32> to vector<8x128xf32>
    %c0_i32_88 = arith.constant 0 : i32
    %c8_i32_89 = arith.constant 8 : i32
    %327 = arith.muli %c0_i32_88, %c8_i32_89 : i32
    %328 = tpu.assume_multiple %327, 8 : i32
    %329 = arith.index_cast %328 : i32 to index
    %c0_90 = arith.constant 0 : index
    %330 = vector.load %arg12[%329, %c0_90] : memref<64x384xf32, #tpu.memory_space<vmem>>, vector<8x384xf32>
    %331 = arith.truncf %326 : vector<8x128xf32> to vector<8x128xbf16>
    %cst_91 = arith.constant dense<0.000000e+00> : vector<8x384xf32>
    %332 = tpu.matmul %331, %320, %cst_91 {dimension_numbers = #tpu.dot_dimension_numbers<[1], [0], [0], [1], [0, 0, 1, 1], [], []>} : vector<8x128xbf16>, vector<128x384xbf16>, vector<8x384xf32> -> vector<8x384xf32>
    %333 = arith.addf %332, %324 : vector<8x384xf32>
    %334 = vector.extract_strided_slice %330 {offsets = [0, 0], sizes = [8, 128], strides = [1, 1]} : vector<8x384xf32> to vector<8x128xf32>
    %335 = vector.extract_strided_slice %333 {offsets = [0, 0], sizes = [8, 128], strides = [1, 1]} : vector<8x384xf32> to vector<8x128xf32>
    %336 = arith.addf %334, %335 : vector<8x128xf32>
    %337 = arith.negf %336 : vector<8x128xf32>
    %338 = math.exp %337 : vector<8x128xf32>
    %cst_92 = arith.constant 1.000000e+00 : f32
    %339 = vector.broadcast %cst_92 : f32 to vector<8x128xf32>
    %340 = arith.addf %339, %338 : vector<8x128xf32>
    %341 = arith.divf %339, %340 : vector<8x128xf32>
    %342 = vector.extract_strided_slice %330 {offsets = [0, 128], sizes = [8, 128], strides = [1, 1]} : vector<8x384xf32> to vector<8x128xf32>
    %343 = vector.extract_strided_slice %333 {offsets = [0, 128], sizes = [8, 128], strides = [1, 1]} : vector<8x384xf32> to vector<8x128xf32>
    %344 = arith.addf %342, %343 : vector<8x128xf32>
    %345 = arith.negf %344 : vector<8x128xf32>
    %346 = math.exp %345 : vector<8x128xf32>
    %cst_93 = arith.constant 1.000000e+00 : f32
    %347 = vector.broadcast %cst_93 : f32 to vector<8x128xf32>
    %348 = arith.addf %347, %346 : vector<8x128xf32>
    %349 = arith.divf %347, %348 : vector<8x128xf32>
    %350 = vector.extract_strided_slice %330 {offsets = [0, 256], sizes = [8, 128], strides = [1, 1]} : vector<8x384xf32> to vector<8x128xf32>
    %351 = vector.extract_strided_slice %333 {offsets = [0, 256], sizes = [8, 128], strides = [1, 1]} : vector<8x384xf32> to vector<8x128xf32>
    %352 = arith.mulf %341, %351 : vector<8x128xf32>
    %353 = arith.addf %350, %352 : vector<8x128xf32>
    %354 = math.tanh %353 : vector<8x128xf32>
    %355 = arith.subf %326, %354 : vector<8x128xf32>
    %356 = arith.mulf %349, %355 : vector<8x128xf32>
    %357 = arith.addf %354, %356 : vector<8x128xf32>
    %c1_i32_94 = arith.constant 1 : i32
    %c8_i32_95 = arith.constant 8 : i32
    %358 = arith.muli %c1_i32_94, %c8_i32_95 : i32
    %359 = tpu.assume_multiple %358, 8 : i32
    %360 = arith.index_cast %359 : i32 to index
    %c0_96 = arith.constant 0 : index
    %361 = vector.load %arg12[%360, %c0_96] : memref<64x384xf32, #tpu.memory_space<vmem>>, vector<8x384xf32>
    %362 = arith.truncf %357 : vector<8x128xf32> to vector<8x128xbf16>
    %cst_97 = arith.constant dense<0.000000e+00> : vector<8x384xf32>
    %363 = tpu.matmul %362, %320, %cst_97 {dimension_numbers = #tpu.dot_dimension_numbers<[1], [0], [0], [1], [0, 0, 1, 1], [], []>} : vector<8x128xbf16>, vector<128x384xbf16>, vector<8x384xf32> -> vector<8x384xf32>
    %364 = arith.addf %363, %324 : vector<8x384xf32>
    %365 = vector.extract_strided_slice %361 {offsets = [0, 0], sizes = [8, 128], strides = [1, 1]} : vector<8x384xf32> to vector<8x128xf32>
    %366 = vector.extract_strided_slice %364 {offsets = [0, 0], sizes = [8, 128], strides = [1, 1]} : vector<8x384xf32> to vector<8x128xf32>
    %367 = arith.addf %365, %366 : vector<8x128xf32>
    %368 = arith.negf %367 : vector<8x128xf32>
    %369 = math.exp %368 : vector<8x128xf32>
    %cst_98 = arith.constant 1.000000e+00 : f32
    %370 = vector.broadcast %cst_98 : f32 to vector<8x128xf32>
    %371 = arith.addf %370, %369 : vector<8x128xf32>
    %372 = arith.divf %370, %371 : vector<8x128xf32>
    %373 = vector.extract_strided_slice %361 {offsets = [0, 128], sizes = [8, 128], strides = [1, 1]} : vector<8x384xf32> to vector<8x128xf32>
    %374 = vector.extract_strided_slice %364 {offsets = [0, 128], sizes = [8, 128], strides = [1, 1]} : vector<8x384xf32> to vector<8x128xf32>
    %375 = arith.addf %373, %374 : vector<8x128xf32>
    %376 = arith.negf %375 : vector<8x128xf32>
    %377 = math.exp %376 : vector<8x128xf32>
    %cst_99 = arith.constant 1.000000e+00 : f32
    %378 = vector.broadcast %cst_99 : f32 to vector<8x128xf32>
    %379 = arith.addf %378, %377 : vector<8x128xf32>
    %380 = arith.divf %378, %379 : vector<8x128xf32>
    %381 = vector.extract_strided_slice %361 {offsets = [0, 256], sizes = [8, 128], strides = [1, 1]} : vector<8x384xf32> to vector<8x128xf32>
    %382 = vector.extract_strided_slice %364 {offsets = [0, 256], sizes = [8, 128], strides = [1, 1]} : vector<8x384xf32> to vector<8x128xf32>
    %383 = arith.mulf %372, %382 : vector<8x128xf32>
    %384 = arith.addf %381, %383 : vector<8x128xf32>
    %385 = math.tanh %384 : vector<8x128xf32>
    %386 = arith.subf %357, %385 : vector<8x128xf32>
    %387 = arith.mulf %380, %386 : vector<8x128xf32>
    %388 = arith.addf %385, %387 : vector<8x128xf32>
    %c2_i32_100 = arith.constant 2 : i32
    %c8_i32_101 = arith.constant 8 : i32
    %389 = arith.muli %c2_i32_100, %c8_i32_101 : i32
    %390 = tpu.assume_multiple %389, 8 : i32
    %391 = arith.index_cast %390 : i32 to index
    %c0_102 = arith.constant 0 : index
    %392 = vector.load %arg12[%391, %c0_102] : memref<64x384xf32, #tpu.memory_space<vmem>>, vector<8x384xf32>
    %393 = arith.truncf %388 : vector<8x128xf32> to vector<8x128xbf16>
    %cst_103 = arith.constant dense<0.000000e+00> : vector<8x384xf32>
    %394 = tpu.matmul %393, %320, %cst_103 {dimension_numbers = #tpu.dot_dimension_numbers<[1], [0], [0], [1], [0, 0, 1, 1], [], []>} : vector<8x128xbf16>, vector<128x384xbf16>, vector<8x384xf32> -> vector<8x384xf32>
    %395 = arith.addf %394, %324 : vector<8x384xf32>
    %396 = vector.extract_strided_slice %392 {offsets = [0, 0], sizes = [8, 128], strides = [1, 1]} : vector<8x384xf32> to vector<8x128xf32>
    %397 = vector.extract_strided_slice %395 {offsets = [0, 0], sizes = [8, 128], strides = [1, 1]} : vector<8x384xf32> to vector<8x128xf32>
    %398 = arith.addf %396, %397 : vector<8x128xf32>
    %399 = arith.negf %398 : vector<8x128xf32>
    %400 = math.exp %399 : vector<8x128xf32>
    %cst_104 = arith.constant 1.000000e+00 : f32
    %401 = vector.broadcast %cst_104 : f32 to vector<8x128xf32>
    %402 = arith.addf %401, %400 : vector<8x128xf32>
    %403 = arith.divf %401, %402 : vector<8x128xf32>
    %404 = vector.extract_strided_slice %392 {offsets = [0, 128], sizes = [8, 128], strides = [1, 1]} : vector<8x384xf32> to vector<8x128xf32>
    %405 = vector.extract_strided_slice %395 {offsets = [0, 128], sizes = [8, 128], strides = [1, 1]} : vector<8x384xf32> to vector<8x128xf32>
    %406 = arith.addf %404, %405 : vector<8x128xf32>
    %407 = arith.negf %406 : vector<8x128xf32>
    %408 = math.exp %407 : vector<8x128xf32>
    %cst_105 = arith.constant 1.000000e+00 : f32
    %409 = vector.broadcast %cst_105 : f32 to vector<8x128xf32>
    %410 = arith.addf %409, %408 : vector<8x128xf32>
    %411 = arith.divf %409, %410 : vector<8x128xf32>
    %412 = vector.extract_strided_slice %392 {offsets = [0, 256], sizes = [8, 128], strides = [1, 1]} : vector<8x384xf32> to vector<8x128xf32>
    %413 = vector.extract_strided_slice %395 {offsets = [0, 256], sizes = [8, 128], strides = [1, 1]} : vector<8x384xf32> to vector<8x128xf32>
    %414 = arith.mulf %403, %413 : vector<8x128xf32>
    %415 = arith.addf %412, %414 : vector<8x128xf32>
    %416 = math.tanh %415 : vector<8x128xf32>
    %417 = arith.subf %388, %416 : vector<8x128xf32>
    %418 = arith.mulf %411, %417 : vector<8x128xf32>
    %419 = arith.addf %416, %418 : vector<8x128xf32>
    %c3_i32_106 = arith.constant 3 : i32
    %c8_i32_107 = arith.constant 8 : i32
    %420 = arith.muli %c3_i32_106, %c8_i32_107 : i32
    %421 = tpu.assume_multiple %420, 8 : i32
    %422 = arith.index_cast %421 : i32 to index
    %c0_108 = arith.constant 0 : index
    %423 = vector.load %arg12[%422, %c0_108] : memref<64x384xf32, #tpu.memory_space<vmem>>, vector<8x384xf32>
    %424 = arith.truncf %419 : vector<8x128xf32> to vector<8x128xbf16>
    %cst_109 = arith.constant dense<0.000000e+00> : vector<8x384xf32>
    %425 = tpu.matmul %424, %320, %cst_109 {dimension_numbers = #tpu.dot_dimension_numbers<[1], [0], [0], [1], [0, 0, 1, 1], [], []>} : vector<8x128xbf16>, vector<128x384xbf16>, vector<8x384xf32> -> vector<8x384xf32>
    %426 = arith.addf %425, %324 : vector<8x384xf32>
    %427 = vector.extract_strided_slice %423 {offsets = [0, 0], sizes = [8, 128], strides = [1, 1]} : vector<8x384xf32> to vector<8x128xf32>
    %428 = vector.extract_strided_slice %426 {offsets = [0, 0], sizes = [8, 128], strides = [1, 1]} : vector<8x384xf32> to vector<8x128xf32>
    %429 = arith.addf %427, %428 : vector<8x128xf32>
    %430 = arith.negf %429 : vector<8x128xf32>
    %431 = math.exp %430 : vector<8x128xf32>
    %cst_110 = arith.constant 1.000000e+00 : f32
    %432 = vector.broadcast %cst_110 : f32 to vector<8x128xf32>
    %433 = arith.addf %432, %431 : vector<8x128xf32>
    %434 = arith.divf %432, %433 : vector<8x128xf32>
    %435 = vector.extract_strided_slice %423 {offsets = [0, 128], sizes = [8, 128], strides = [1, 1]} : vector<8x384xf32> to vector<8x128xf32>
    %436 = vector.extract_strided_slice %426 {offsets = [0, 128], sizes = [8, 128], strides = [1, 1]} : vector<8x384xf32> to vector<8x128xf32>
    %437 = arith.addf %435, %436 : vector<8x128xf32>
    %438 = arith.negf %437 : vector<8x128xf32>
    %439 = math.exp %438 : vector<8x128xf32>
    %cst_111 = arith.constant 1.000000e+00 : f32
    %440 = vector.broadcast %cst_111 : f32 to vector<8x128xf32>
    %441 = arith.addf %440, %439 : vector<8x128xf32>
    %442 = arith.divf %440, %441 : vector<8x128xf32>
    %443 = vector.extract_strided_slice %423 {offsets = [0, 256], sizes = [8, 128], strides = [1, 1]} : vector<8x384xf32> to vector<8x128xf32>
    %444 = vector.extract_strided_slice %426 {offsets = [0, 256], sizes = [8, 128], strides = [1, 1]} : vector<8x384xf32> to vector<8x128xf32>
    %445 = arith.mulf %434, %444 : vector<8x128xf32>
    %446 = arith.addf %443, %445 : vector<8x128xf32>
    %447 = math.tanh %446 : vector<8x128xf32>
    %448 = arith.subf %419, %447 : vector<8x128xf32>
    %449 = arith.mulf %442, %448 : vector<8x128xf32>
    %450 = arith.addf %447, %449 : vector<8x128xf32>
    %c4_i32_112 = arith.constant 4 : i32
    %c8_i32_113 = arith.constant 8 : i32
    %451 = arith.muli %c4_i32_112, %c8_i32_113 : i32
    %452 = tpu.assume_multiple %451, 8 : i32
    %453 = arith.index_cast %452 : i32 to index
    %c0_114 = arith.constant 0 : index
    %454 = vector.load %arg12[%453, %c0_114] : memref<64x384xf32, #tpu.memory_space<vmem>>, vector<8x384xf32>
    %455 = arith.truncf %450 : vector<8x128xf32> to vector<8x128xbf16>
    %cst_115 = arith.constant dense<0.000000e+00> : vector<8x384xf32>
    %456 = tpu.matmul %455, %320, %cst_115 {dimension_numbers = #tpu.dot_dimension_numbers<[1], [0], [0], [1], [0, 0, 1, 1], [], []>} : vector<8x128xbf16>, vector<128x384xbf16>, vector<8x384xf32> -> vector<8x384xf32>
    %457 = arith.addf %456, %324 : vector<8x384xf32>
    %458 = vector.extract_strided_slice %454 {offsets = [0, 0], sizes = [8, 128], strides = [1, 1]} : vector<8x384xf32> to vector<8x128xf32>
    %459 = vector.extract_strided_slice %457 {offsets = [0, 0], sizes = [8, 128], strides = [1, 1]} : vector<8x384xf32> to vector<8x128xf32>
    %460 = arith.addf %458, %459 : vector<8x128xf32>
    %461 = arith.negf %460 : vector<8x128xf32>
    %462 = math.exp %461 : vector<8x128xf32>
    %cst_116 = arith.constant 1.000000e+00 : f32
    %463 = vector.broadcast %cst_116 : f32 to vector<8x128xf32>
    %464 = arith.addf %463, %462 : vector<8x128xf32>
    %465 = arith.divf %463, %464 : vector<8x128xf32>
    %466 = vector.extract_strided_slice %454 {offsets = [0, 128], sizes = [8, 128], strides = [1, 1]} : vector<8x384xf32> to vector<8x128xf32>
    %467 = vector.extract_strided_slice %457 {offsets = [0, 128], sizes = [8, 128], strides = [1, 1]} : vector<8x384xf32> to vector<8x128xf32>
    %468 = arith.addf %466, %467 : vector<8x128xf32>
    %469 = arith.negf %468 : vector<8x128xf32>
    %470 = math.exp %469 : vector<8x128xf32>
    %cst_117 = arith.constant 1.000000e+00 : f32
    %471 = vector.broadcast %cst_117 : f32 to vector<8x128xf32>
    %472 = arith.addf %471, %470 : vector<8x128xf32>
    %473 = arith.divf %471, %472 : vector<8x128xf32>
    %474 = vector.extract_strided_slice %454 {offsets = [0, 256], sizes = [8, 128], strides = [1, 1]} : vector<8x384xf32> to vector<8x128xf32>
    %475 = vector.extract_strided_slice %457 {offsets = [0, 256], sizes = [8, 128], strides = [1, 1]} : vector<8x384xf32> to vector<8x128xf32>
    %476 = arith.mulf %465, %475 : vector<8x128xf32>
    %477 = arith.addf %474, %476 : vector<8x128xf32>
    %478 = math.tanh %477 : vector<8x128xf32>
    %479 = arith.subf %450, %478 : vector<8x128xf32>
    %480 = arith.mulf %473, %479 : vector<8x128xf32>
    %481 = arith.addf %478, %480 : vector<8x128xf32>
    %c5_i32_118 = arith.constant 5 : i32
    %c8_i32_119 = arith.constant 8 : i32
    %482 = arith.muli %c5_i32_118, %c8_i32_119 : i32
    %483 = tpu.assume_multiple %482, 8 : i32
    %484 = arith.index_cast %483 : i32 to index
    %c0_120 = arith.constant 0 : index
    %485 = vector.load %arg12[%484, %c0_120] : memref<64x384xf32, #tpu.memory_space<vmem>>, vector<8x384xf32>
    %486 = arith.truncf %481 : vector<8x128xf32> to vector<8x128xbf16>
    %cst_121 = arith.constant dense<0.000000e+00> : vector<8x384xf32>
    %487 = tpu.matmul %486, %320, %cst_121 {dimension_numbers = #tpu.dot_dimension_numbers<[1], [0], [0], [1], [0, 0, 1, 1], [], []>} : vector<8x128xbf16>, vector<128x384xbf16>, vector<8x384xf32> -> vector<8x384xf32>
    %488 = arith.addf %487, %324 : vector<8x384xf32>
    %489 = vector.extract_strided_slice %485 {offsets = [0, 0], sizes = [8, 128], strides = [1, 1]} : vector<8x384xf32> to vector<8x128xf32>
    %490 = vector.extract_strided_slice %488 {offsets = [0, 0], sizes = [8, 128], strides = [1, 1]} : vector<8x384xf32> to vector<8x128xf32>
    %491 = arith.addf %489, %490 : vector<8x128xf32>
    %492 = arith.negf %491 : vector<8x128xf32>
    %493 = math.exp %492 : vector<8x128xf32>
    %cst_122 = arith.constant 1.000000e+00 : f32
    %494 = vector.broadcast %cst_122 : f32 to vector<8x128xf32>
    %495 = arith.addf %494, %493 : vector<8x128xf32>
    %496 = arith.divf %494, %495 : vector<8x128xf32>
    %497 = vector.extract_strided_slice %485 {offsets = [0, 128], sizes = [8, 128], strides = [1, 1]} : vector<8x384xf32> to vector<8x128xf32>
    %498 = vector.extract_strided_slice %488 {offsets = [0, 128], sizes = [8, 128], strides = [1, 1]} : vector<8x384xf32> to vector<8x128xf32>
    %499 = arith.addf %497, %498 : vector<8x128xf32>
    %500 = arith.negf %499 : vector<8x128xf32>
    %501 = math.exp %500 : vector<8x128xf32>
    %cst_123 = arith.constant 1.000000e+00 : f32
    %502 = vector.broadcast %cst_123 : f32 to vector<8x128xf32>
    %503 = arith.addf %502, %501 : vector<8x128xf32>
    %504 = arith.divf %502, %503 : vector<8x128xf32>
    %505 = vector.extract_strided_slice %485 {offsets = [0, 256], sizes = [8, 128], strides = [1, 1]} : vector<8x384xf32> to vector<8x128xf32>
    %506 = vector.extract_strided_slice %488 {offsets = [0, 256], sizes = [8, 128], strides = [1, 1]} : vector<8x384xf32> to vector<8x128xf32>
    %507 = arith.mulf %496, %506 : vector<8x128xf32>
    %508 = arith.addf %505, %507 : vector<8x128xf32>
    %509 = math.tanh %508 : vector<8x128xf32>
    %510 = arith.subf %481, %509 : vector<8x128xf32>
    %511 = arith.mulf %504, %510 : vector<8x128xf32>
    %512 = arith.addf %509, %511 : vector<8x128xf32>
    %c6_i32_124 = arith.constant 6 : i32
    %c8_i32_125 = arith.constant 8 : i32
    %513 = arith.muli %c6_i32_124, %c8_i32_125 : i32
    %514 = tpu.assume_multiple %513, 8 : i32
    %515 = arith.index_cast %514 : i32 to index
    %c0_126 = arith.constant 0 : index
    %516 = vector.load %arg12[%515, %c0_126] : memref<64x384xf32, #tpu.memory_space<vmem>>, vector<8x384xf32>
    %517 = arith.truncf %512 : vector<8x128xf32> to vector<8x128xbf16>
    %cst_127 = arith.constant dense<0.000000e+00> : vector<8x384xf32>
    %518 = tpu.matmul %517, %320, %cst_127 {dimension_numbers = #tpu.dot_dimension_numbers<[1], [0], [0], [1], [0, 0, 1, 1], [], []>} : vector<8x128xbf16>, vector<128x384xbf16>, vector<8x384xf32> -> vector<8x384xf32>
    %519 = arith.addf %518, %324 : vector<8x384xf32>
    %520 = vector.extract_strided_slice %516 {offsets = [0, 0], sizes = [8, 128], strides = [1, 1]} : vector<8x384xf32> to vector<8x128xf32>
    %521 = vector.extract_strided_slice %519 {offsets = [0, 0], sizes = [8, 128], strides = [1, 1]} : vector<8x384xf32> to vector<8x128xf32>
    %522 = arith.addf %520, %521 : vector<8x128xf32>
    %523 = arith.negf %522 : vector<8x128xf32>
    %524 = math.exp %523 : vector<8x128xf32>
    %cst_128 = arith.constant 1.000000e+00 : f32
    %525 = vector.broadcast %cst_128 : f32 to vector<8x128xf32>
    %526 = arith.addf %525, %524 : vector<8x128xf32>
    %527 = arith.divf %525, %526 : vector<8x128xf32>
    %528 = vector.extract_strided_slice %516 {offsets = [0, 128], sizes = [8, 128], strides = [1, 1]} : vector<8x384xf32> to vector<8x128xf32>
    %529 = vector.extract_strided_slice %519 {offsets = [0, 128], sizes = [8, 128], strides = [1, 1]} : vector<8x384xf32> to vector<8x128xf32>
    %530 = arith.addf %528, %529 : vector<8x128xf32>
    %531 = arith.negf %530 : vector<8x128xf32>
    %532 = math.exp %531 : vector<8x128xf32>
    %cst_129 = arith.constant 1.000000e+00 : f32
    %533 = vector.broadcast %cst_129 : f32 to vector<8x128xf32>
    %534 = arith.addf %533, %532 : vector<8x128xf32>
    %535 = arith.divf %533, %534 : vector<8x128xf32>
    %536 = vector.extract_strided_slice %516 {offsets = [0, 256], sizes = [8, 128], strides = [1, 1]} : vector<8x384xf32> to vector<8x128xf32>
    %537 = vector.extract_strided_slice %519 {offsets = [0, 256], sizes = [8, 128], strides = [1, 1]} : vector<8x384xf32> to vector<8x128xf32>
    %538 = arith.mulf %527, %537 : vector<8x128xf32>
    %539 = arith.addf %536, %538 : vector<8x128xf32>
    %540 = math.tanh %539 : vector<8x128xf32>
    %541 = arith.subf %512, %540 : vector<8x128xf32>
    %542 = arith.mulf %535, %541 : vector<8x128xf32>
    %543 = arith.addf %540, %542 : vector<8x128xf32>
    %c7_i32_130 = arith.constant 7 : i32
    %c8_i32_131 = arith.constant 8 : i32
    %544 = arith.muli %c7_i32_130, %c8_i32_131 : i32
    %545 = tpu.assume_multiple %544, 8 : i32
    %546 = arith.index_cast %545 : i32 to index
    %c0_132 = arith.constant 0 : index
    %547 = vector.load %arg12[%546, %c0_132] : memref<64x384xf32, #tpu.memory_space<vmem>>, vector<8x384xf32>
    %548 = arith.truncf %543 : vector<8x128xf32> to vector<8x128xbf16>
    %cst_133 = arith.constant dense<0.000000e+00> : vector<8x384xf32>
    %549 = tpu.matmul %548, %320, %cst_133 {dimension_numbers = #tpu.dot_dimension_numbers<[1], [0], [0], [1], [0, 0, 1, 1], [], []>} : vector<8x128xbf16>, vector<128x384xbf16>, vector<8x384xf32> -> vector<8x384xf32>
    %550 = arith.addf %549, %324 : vector<8x384xf32>
    %551 = vector.extract_strided_slice %547 {offsets = [0, 0], sizes = [8, 128], strides = [1, 1]} : vector<8x384xf32> to vector<8x128xf32>
    %552 = vector.extract_strided_slice %550 {offsets = [0, 0], sizes = [8, 128], strides = [1, 1]} : vector<8x384xf32> to vector<8x128xf32>
    %553 = arith.addf %551, %552 : vector<8x128xf32>
    %554 = arith.negf %553 : vector<8x128xf32>
    %555 = math.exp %554 : vector<8x128xf32>
    %cst_134 = arith.constant 1.000000e+00 : f32
    %556 = vector.broadcast %cst_134 : f32 to vector<8x128xf32>
    %557 = arith.addf %556, %555 : vector<8x128xf32>
    %558 = arith.divf %556, %557 : vector<8x128xf32>
    %559 = vector.extract_strided_slice %547 {offsets = [0, 128], sizes = [8, 128], strides = [1, 1]} : vector<8x384xf32> to vector<8x128xf32>
    %560 = vector.extract_strided_slice %550 {offsets = [0, 128], sizes = [8, 128], strides = [1, 1]} : vector<8x384xf32> to vector<8x128xf32>
    %561 = arith.addf %559, %560 : vector<8x128xf32>
    %562 = arith.negf %561 : vector<8x128xf32>
    %563 = math.exp %562 : vector<8x128xf32>
    %cst_135 = arith.constant 1.000000e+00 : f32
    %564 = vector.broadcast %cst_135 : f32 to vector<8x128xf32>
    %565 = arith.addf %564, %563 : vector<8x128xf32>
    %566 = arith.divf %564, %565 : vector<8x128xf32>
    %567 = vector.extract_strided_slice %547 {offsets = [0, 256], sizes = [8, 128], strides = [1, 1]} : vector<8x384xf32> to vector<8x128xf32>
    %568 = vector.extract_strided_slice %550 {offsets = [0, 256], sizes = [8, 128], strides = [1, 1]} : vector<8x384xf32> to vector<8x128xf32>
    %569 = arith.mulf %558, %568 : vector<8x128xf32>
    %570 = arith.addf %567, %569 : vector<8x128xf32>
    %571 = math.tanh %570 : vector<8x128xf32>
    %572 = arith.subf %543, %571 : vector<8x128xf32>
    %573 = arith.mulf %566, %572 : vector<8x128xf32>
    %574 = arith.addf %571, %573 : vector<8x128xf32>
    %c8_i32_136 = arith.constant 8 : i32
    %c1_137 = arith.constant 1 : index
    %c0_138 = arith.constant 0 : index
    %c0_139 = arith.constant 0 : index
    %575 = vector.load %arg10[%c1_137, %c0_138, %c0_139] : memref<2x8x128xf32, #tpu.memory_space<vmem>>, vector<1x8x128xf32>
    %576 = vector.shape_cast %575 : vector<1x8x128xf32> to vector<8x128xf32>
    %577 = vector.shape_cast %574 : vector<8x128xf32> to vector<1x8x128xf32>
    tpu.vector_store %arg10[%c1_137, %c0_138, %c0_139], %577 {strides = array<i32>} : memref<2x8x128xf32, #tpu.memory_space<vmem>>, vector<1x8x128xf32>,
    %c0_i32_140 = arith.constant 0 : i32
    %578 = arith.cmpi eq, %arg0, %c0_i32_140 : i32
    %579 = arith.extui %578 : i1 to i32
    %c0_i32_141 = arith.constant 0 : i32
    %580 = arith.cmpi ne, %579, %c0_i32_141 : i32
    scf.if %580 {
      %c1_142 = arith.constant 1 : index
      %c0_143 = arith.constant 0 : index
      %c0_144 = arith.constant 0 : index
      %581 = vector.load %arg10[%c1_142, %c0_143, %c0_144] : memref<2x8x128xf32, #tpu.memory_space<vmem>>, vector<1x8x128xf32>
      %582 = vector.shape_cast %581 : vector<1x8x128xf32> to vector<8x128xf32>
      %c0_145 = arith.constant 0 : index
      %c0_146 = arith.constant 0 : index
      %583 = vector.load %arg7[%c0_145, %c0_146] : memref<128x128xf32, #tpu.memory_space<vmem>>, vector<128x128xf32>
      %cst_147 = arith.constant dense<0.000000e+00> : vector<8x128xf32>
      %584 = tpu.matmul %582, %583, %cst_147 {dimension_numbers = #tpu.dot_dimension_numbers<[1], [0], [0], [1], [0, 0, 1, 1], [], []>} : vector<8x128xf32>, vector<128x128xf32>, vector<8x128xf32> -> vector<8x128xf32>
      %c0_148 = arith.constant 0 : index
      %c0_149 = arith.constant 0 : index
      %585 = vector.load %arg8[%c0_148, %c0_149] : memref<1x128xf32, #tpu.memory_space<vmem>>, vector<1x128xf32>
      %586 = vector.broadcast %585 : vector<1x128xf32> to vector<8x128xf32>
      %587 = arith.addf %584, %586 : vector<8x128xf32>
      %c0_150 = arith.constant 0 : index
      %c0_151 = arith.constant 0 : index
      %588 = vector.load %arg9[%c0_150, %c0_151] : memref<8x128xf32, #tpu.memory_space<vmem>>, vector<8x128xf32>
      tpu.vector_store %arg9[%c0_150, %c0_151], %587 {strides = array<i32>} : memref<8x128xf32, #tpu.memory_space<vmem>>, vector<8x128xf32>,
    } else {
    }
    return
  }
  func.func @transform_0(%arg0: i32) -> (i32, i32) {
    %c0_i32 = arith.constant 0 : i32
    %c0_i32_0 = arith.constant 0 : i32
    return %arg0, %c0_i32 : i32, i32
  }
  func.func @transform_1(%arg0: i32) -> (i32, i32) {
    %c0_i32 = arith.constant 0 : i32
    %c0_i32_0 = arith.constant 0 : i32
    %c0_i32_1 = arith.constant 0 : i32
    return %c0_i32, %c0_i32_0 : i32, i32
  }
  func.func @transform_2(%arg0: i32) -> (i32, i32, i32) {
    %c0_i32 = arith.constant 0 : i32
    %c0_i32_0 = arith.constant 0 : i32
    %c0_i32_1 = arith.constant 0 : i32
    %c0_i32_2 = arith.constant 0 : i32
    return %c0_i32, %c0_i32_0, %c0_i32_1 : i32, i32, i32
  }
  func.func @transform_3(%arg0: i32) -> (i32, i32, i32) {
    %c0_i32 = arith.constant 0 : i32
    %c0_i32_0 = arith.constant 0 : i32
    %c0_i32_1 = arith.constant 0 : i32
    %c0_i32_2 = arith.constant 0 : i32
    return %c0_i32, %c0_i32_0, %c0_i32_1 : i32, i32, i32
  }
  func.func @transform_4(%arg0: i32) -> (i32, i32, i32) {
    %c0_i32 = arith.constant 0 : i32
    %c0_i32_0 = arith.constant 0 : i32
    %c0_i32_1 = arith.constant 0 : i32
    %c0_i32_2 = arith.constant 0 : i32
    return %c0_i32, %c0_i32_0, %c0_i32_1 : i32, i32, i32
  }
  func.func @transform_5(%arg0: i32) -> (i32, i32, i32) {
    %c0_i32 = arith.constant 0 : i32
    %c0_i32_0 = arith.constant 0 : i32
    %c0_i32_1 = arith.constant 0 : i32
    %c0_i32_2 = arith.constant 0 : i32
    return %c0_i32, %c0_i32_0, %c0_i32_1 : i32, i32, i32
  }
  func.func @transform_6(%arg0: i32) -> (i32, i32) {
    %c0_i32 = arith.constant 0 : i32
    %c0_i32_0 = arith.constant 0 : i32
    %c0_i32_1 = arith.constant 0 : i32
    return %c0_i32, %c0_i32_0 : i32, i32
  }
  func.func @transform_7(%arg0: i32) -> (i32, i32) {
    %c0_i32 = arith.constant 0 : i32
    %c0_i32_0 = arith.constant 0 : i32
    %c0_i32_1 = arith.constant 0 : i32
    return %c0_i32, %c0_i32_0 : i32, i32
  }
  func.func @transform_8(%arg0: i32) -> (i32, i32) {
    %c0_i32 = arith.constant 0 : i32
    %c0_i32_0 = arith.constant 0 : i32
    %c0_i32_1 = arith.constant 0 : i32
    return %c0_i32, %c0_i32_0 : i32, i32
  }
}

</mosaic_0001>

<llo_original>
// kernel: stock_gru_forward.1
$region0: #{stock_gru_forward.1}
  #allocation0 [shape = 'u32[]', space=smem, size = 0x4, offset = 0x4, fixed_abs, tag = 'smem constant byte address 0x4 - core index']
  #allocation1 [shape = 'u32[144,128]{1,0:T(1,128)}', space=vmem, size = 0x12000, scoped, tag = 'internal scratch']
  #allocation2 [shape = 'f32[2,8,128]{2,1,0:T(8,128)}', space=vmem, size = 0x2000, scoped, tag = 'scratch operand']
  #allocation3 [shape = 'f32[64,128]{1,0:T(8,128)}', space=vmem, size = 0x8000, scoped, tag = 'scratch operand']
  #allocation4 [shape = 'f32[64,384]{1,0:T(8,128)}', space=vmem, size = 0x18000, scoped, tag = 'scratch operand']
  %s0 = inlined_call_operand.vmem [shape: f32[64,4], index: 0, kind: input, shape index: {}]
  %s1 = inlined_call_operand.vmem [shape: f32[4,384], index: 1, kind: input, shape index: {}]
  %s2 = inlined_call_operand.hbm [shape: bf16[1,128,384], index: 2, kind: input, shape index: {}]
  %s3 = inlined_call_operand.hbm [shape: bf16[2,128,384], index: 3, kind: input, shape index: {}]
  %s4 = inlined_call_operand.vmem [shape: f32[2,1,384], index: 4, kind: input, shape index: {}]
  %s5 = inlined_call_operand.vmem [shape: f32[2,1,384], index: 5, kind: input, shape index: {}]
  %s6 = inlined_call_operand.hbm [shape: f32[128,128], index: 6, kind: input, shape index: {}]
  %s7 = inlined_call_operand.vmem [shape: f32[1,128], index: 7, kind: input, shape index: {}]
  %s8 = inlined_call_operand.vmem [shape: f32[8,128], index: 8, kind: output, shape index: {}]
  %s9 = sld [smem:[#allocation0]]
  $region62: #{stock_gru_forward.1} parent=0
    _
  %s11 = ssub.s32 1, %s9
  %s12 = scalar_select 0, %s11, %s9
  $region1: #{stock_gru_forward.1} parent=0
    #allocation5 [shape = 'u8[98304]{0}', space=vmem, size = 0x18000, scoped, tag = 'input window, operand 2, single buffered']
    #allocation6 [shape = 's32[1]{0}', space=sflag, size = 0x4, scoped, tag = 'scoped memory for stock_gru_forward.1']
    #allocation7 [shape = 'u8[196608]{0}', space=vmem, size = 0x30000, scoped, tag = 'input window, operand 3, single buffered']
    #allocation8 [shape = 's32[1]{0}', space=sflag, size = 0x4, scoped, tag = 'scoped memory for stock_gru_forward.1']
    #allocation9 [shape = 'u8[65536]{0}', space=vmem, size = 0x10000, scoped, tag = 'input window, operand 6, single buffered']
    %13 = vsyncpa [#allocation6], 0
    %14 = vsyncpa [#allocation8], 0
    // Predicated region
    $region2: #{stock_gru_forward.1} parent=1 // pred_check
      _
    $region3: #{stock_gru_forward.1} parent=1 // pred_check_branch
      %16 = sbr.rel (0) target = $region5
    $region4: #{stock_gru_forward.1} parent=1 // pred_region
      _
    $region5: #{stock_gru_forward.1} parent=1 // pred_fallthru
      _
    // Predicated region
    $region6: #{stock_gru_forward.1} parent=1 // pred_check
      _
    $region7: #{stock_gru_forward.1} parent=1 // pred_check_branch
      %18 = sbr.rel (0) target = $region9
    $region8: #{stock_gru_forward.1} parent=1 // pred_region
      _
    $region9: #{stock_gru_forward.1} parent=1 // pred_fallthru
      _
    // Predicated region
    $region10: #{stock_gru_forward.1} parent=1 // pred_check
      _
    $region11: #{stock_gru_forward.1} parent=1 // pred_check_branch
      %20 = sbr.rel (0) target = $region13
    $region12: #{stock_gru_forward.1} parent=1 // pred_region
      %s22 = ssub.s32 3072, 3072
      %23 = vsyncadd [#allocation6], %s22
      %s24 = sshll.u32 [#allocation5], 4
      %s25 = int_to_ptr.vmem [resolvable:$true] %s24
      %30 = dma.hbm_to_vmem [thread:$0]  %s2, 3072, %s25, [#allocation6], 192, 192, 12
    $region13: #{stock_gru_forward.1} parent=1 // pred_fallthru
      _
    // Predicated region
    $region14: #{stock_gru_forward.1} parent=1 // pred_check
      _
    $region15: #{stock_gru_forward.1} parent=1 // pred_check_branch
      %32 = sbr.rel (0) target = $region17
    $region16: #{stock_gru_forward.1} parent=1 // pred_region
      %s34 = ssub.s32 6144, 6144
      %35 = vsyncadd [#allocation8], %s34
      %s36 = sshll.u32 [#allocation7], 4
      %s37 = int_to_ptr.vmem [resolvable:$true] %s36
      %42 = dma.hbm_to_vmem [thread:$0]  %s3, 6144, %s37, [#allocation8], 192, 192, 12
    $region17: #{stock_gru_forward.1} parent=1 // pred_fallthru
      _
    // Predicated region
    $region18: #{stock_gru_forward.1} parent=1 // pred_check
      _
    $region19: #{stock_gru_forward.1} parent=1 // pred_check_branch
      %44 = sbr.rel (0) target = $region21
    $region20: #{stock_gru_forward.1} parent=1 // pred_region
      _
    $region21: #{stock_gru_forward.1} parent=1 // pred_fallthru
      _
    // Predicated region
    $region22: #{stock_gru_forward.1} parent=1 // pred_check
      _
    $region23: #{stock_gru_forward.1} parent=1 // pred_check_branch
      %46 = sbr.rel (0) target = $region25
    $region24: #{stock_gru_forward.1} parent=1 // pred_region
      _
    $region25: #{stock_gru_forward.1} parent=1 // pred_fallthru
      _
    // Predicated region
    $region26: #{stock_gru_forward.1} parent=1 // pred_check
      _
    $region27: #{stock_gru_forward.1} parent=1 // pred_check_branch
      %48 = sbr.rel (0) target = $region29
    $region28: #{stock_gru_forward.1} parent=1 // pred_region
      %s50 = ssub.s32 2048, 2048
      %51 = vsyncadd [#allocation8], %s50
      %s52 = sshll.u32 [#allocation9], 4
      %s53 = int_to_ptr.vmem [resolvable:$true] %s52
      %58 = dma.hbm_to_vmem [thread:$0]  %s6, 2048, %s53, [#allocation8], 128, 128, 8
    $region29: #{stock_gru_forward.1} parent=1 // pred_fallthru
      _
    // Predicated region
    $region30: #{stock_gru_forward.1} parent=1 // pred_check
      _
    $region31: #{stock_gru_forward.1} parent=1 // pred_check_branch
      %60 = sbr.rel (0) target = $region33
    $region32: #{stock_gru_forward.1} parent=1 // pred_region
      _
    $region33: #{stock_gru_forward.1} parent=1 // pred_fallthru
      _
    // Predicated region
    $region34: #{stock_gru_forward.1} parent=1 // pred_check
      _
    $region35: #{stock_gru_forward.1} parent=1 // pred_check_branch
      %62 = sbr.rel (0) target = $region37
    $region36: #{stock_gru_forward.1} parent=1 // pred_region
      %63 = dma.done [#allocation6], 3072
    $region37: #{stock_gru_forward.1} parent=1 // pred_fallthru
      _
    // Predicated region
    $region38: #{stock_gru_forward.1} parent=1 // pred_check
      _
    $region39: #{stock_gru_forward.1} parent=1 // pred_check_branch
      %65 = sbr.rel (0) target = $region41
    $region40: #{stock_gru_forward.1} parent=1 // pred_region
      %66 = dma.done [#allocation8], 6144
    $region41: #{stock_gru_forward.1} parent=1 // pred_fallthru
      _
    // Predicated region
    $region42: #{stock_gru_forward.1} parent=1 // pred_check
      _
    $region43: #{stock_gru_forward.1} parent=1 // pred_check_branch
      %68 = sbr.rel (0) target = $region45
    $region44: #{stock_gru_forward.1} parent=1 // pred_region
      %69 = dma.done [#allocation8], 2048
    $region45: #{stock_gru_forward.1} parent=1 // pred_fallthru
      _
    %p71 = scmp.eq.s32.totalorder 0, 0
    // Predicated region
    $region46: #{stock_gru_forward.1} parent=1 // pred_check
      %p72 = pneg %p71
    $region47: #{stock_gru_forward.1} parent=1 // pred_check_branch
      %74 = sbr.rel (%p72) target = $region49
    $region48: #{stock_gru_forward.1} parent=1 // pred_region
      %75 = vst [vmem:[#allocation2] sm:$0xff] 0.0
      %76 = vst [vmem:[#allocation2 + $0x8] sm:$0xff] 0.0
    $region49: #{stock_gru_forward.1} parent=1 // pred_fallthru
      _
    %v77 = vld [vmem:[%s0] sm:$0xff]
    %v78 = vld [vmem:[%s0 + $0x8] sm:$0xff]
    %v79 = vld [vmem:[%s0 + $0x10] sm:$0xff]
    %v80 = vld [vmem:[%s0 + $0x18] sm:$0xff]
    %v81 = vld [vmem:[%s0 + $0x20] sm:$0xff]
    %v82 = vld [vmem:[%s0 + $0x28] sm:$0xff]
    %v83 = vld [vmem:[%s0 + $0x30] sm:$0xff]
    %v84 = vld [vmem:[%s0 + $0x38] sm:$0xff]
    %v85 = vld [vmem:[%s1] sm:$0xff]
    %v86 = vld [vmem:[%s1 + $0x8] sm:$0xf]
    %v87 = vld [vmem:[%s4] sm:$0x7]
    %v89 = vlaneseq
    %v90 = vshrl.u32 %v89, 7
    %v91 = vsub.s32 0, %v90
    %v92 = vrot.slane %v87, %v91
    %v93 = vlaneseq
    %v94 = vshrl.u32 %v93, 7
    %v95 = vsub.s32 1, %v94
    %v96 = vrot.slane %v87, %v95
    %v97 = vlaneseq
    %v98 = vshrl.u32 %v97, 7
    %v99 = vsub.s32 2, %v98
    %v100 = vrot.slane %v87, %v99
    %105 = vset.pattern.permute.xlu0 0
    %106 = vperm.xlu0 %105, %v77
    %v107 = vpop.permute.xlu0 %106
    %110 = vset.pattern.permute.xlu0 0
    %111 = vperm.xlu0 %110, %v78
    %v112 = vpop.permute.xlu0 %111
    %115 = vset.pattern.permute.xlu0 0
    %116 = vperm.xlu0 %115, %v79
    %v117 = vpop.permute.xlu0 %116
    %120 = vset.pattern.permute.xlu0 0
    %121 = vperm.xlu0 %120, %v80
    %v122 = vpop.permute.xlu0 %121
    %125 = vset.pattern.permute.xlu0 0
    %126 = vperm.xlu0 %125, %v81
    %v127 = vpop.permute.xlu0 %126
    %130 = vset.pattern.permute.xlu0 0
    %131 = vperm.xlu0 %130, %v82
    %v132 = vpop.permute.xlu0 %131
    %135 = vset.pattern.permute.xlu0 0
    %136 = vperm.xlu0 %135, %v83
    %v137 = vpop.permute.xlu0 %136
    %140 = vset.pattern.permute.xlu0 0
    %141 = vperm.xlu0 %140, %v84
    %v142 = vpop.permute.xlu0 %141
    %v146 = vlaneseq
    %v147 = vshrl.u32 %v146, 7
    %v148 = vsub.s32 0, %v147
    %v149 = vrot.slane %v85, %v148
    %v150 = vlaneseq
    %v151 = vshrl.u32 %v150, 7
    %v152 = vsub.s32 4, %v151
    %v153 = vrot.slane %v85, %v152
    %v154 = vlaneseq
    %v155 = vshrl.u32 %v154, 7
    %v156 = vsub.s32 0, %v155
    %v157 = vrot.slane %v86, %v156
    %v161 = vlaneseq
    %v162 = vshrl.u32 %v161, 7
    %v163 = vsub.s32 0, %v162
    %v164 = vrot.slane %v149, %v163
    %v165 = vlaneseq
    %v166 = vshrl.u32 %v165, 7
    %v167 = vsub.s32 0, %v166
    %v168 = vrot.slane %v153, %v167
    %v169 = vlaneseq
    %v170 = vshrl.u32 %v169, 7
    %v171 = vsub.s32 0, %v170
    %v172 = vrot.slane %v157, %v171
    %v173 = vmul.f32 %v107, %v164
    %v174 = vmul.f32 %v107, %v168
    %v175 = vmul.f32 %v107, %v172
    %v176 = vmul.f32 %v112, %v164
    %v177 = vmul.f32 %v112, %v168
    %v178 = vmul.f32 %v112, %v172
    %v179 = vmul.f32 %v117, %v164
    %v180 = vmul.f32 %v117, %v168
    %v181 = vmul.f32 %v117, %v172
    %v182 = vmul.f32 %v122, %v164
    %v183 = vmul.f32 %v122, %v168
    %v184 = vmul.f32 %v122, %v172
    %v185 = vmul.f32 %v127, %v164
    %v186 = vmul.f32 %v127, %v168
    %v187 = vmul.f32 %v127, %v172
    %v188 = vmul.f32 %v132, %v164
    %v189 = vmul.f32 %v132, %v168
    %v190 = vmul.f32 %v132, %v172
    %v191 = vmul.f32 %v137, %v164
    %v192 = vmul.f32 %v137, %v168
    %v193 = vmul.f32 %v137, %v172
    %v194 = vmul.f32 %v142, %v164
    %v195 = vmul.f32 %v142, %v168
    %v196 = vmul.f32 %v142, %v172
    %v197 = vadd.f32 %v92, %v173
    %v198 = vadd.f32 %v96, %v174
    %v199 = vadd.f32 %v100, %v175
    %v200 = vadd.f32 %v92, %v176
    %v201 = vadd.f32 %v96, %v177
    %v202 = vadd.f32 %v100, %v178
    %v203 = vadd.f32 %v92, %v179
    %v204 = vadd.f32 %v96, %v180
    %v205 = vadd.f32 %v100, %v181
    %v206 = vadd.f32 %v92, %v182
    %v207 = vadd.f32 %v96, %v183
    %v208 = vadd.f32 %v100, %v184
    %v209 = vadd.f32 %v92, %v185
    %v210 = vadd.f32 %v96, %v186
    %v211 = vadd.f32 %v100, %v187
    %v212 = vadd.f32 %v92, %v188
    %v213 = vadd.f32 %v96, %v189
    %v214 = vadd.f32 %v100, %v190
    %v215 = vadd.f32 %v92, %v191
    %v216 = vadd.f32 %v96, %v192
    %v217 = vadd.f32 %v100, %v193
    %v218 = vadd.f32 %v92, %v194
    %v219 = vadd.f32 %v96, %v195
    %v220 = vadd.f32 %v100, %v196
    %221 = vset.pattern.permute.xlu0 1
    %222 = vperm.xlu0 %221, %v77
    %v223 = vpop.permute.xlu0 %222
    %225 = vset.pattern.permute.xlu0 1
    %226 = vperm.xlu0 %225, %v78
    %v227 = vpop.permute.xlu0 %226
    %229 = vset.pattern.permute.xlu0 1
    %230 = vperm.xlu0 %229, %v79
    %v231 = vpop.permute.xlu0 %230
    %233 = vset.pattern.permute.xlu0 1
    %234 = vperm.xlu0 %233, %v80
    %v235 = vpop.permute.xlu0 %234
    %237 = vset.pattern.permute.xlu0 1
    %238 = vperm.xlu0 %237, %v81
    %v239 = vpop.permute.xlu0 %238
    %241 = vset.pattern.permute.xlu0 1
    %242 = vperm.xlu0 %241, %v82
    %v243 = vpop.permute.xlu0 %242
    %245 = vset.pattern.permute.xlu0 1
    %246 = vperm.xlu0 %245, %v83
    %v247 = vpop.permute.xlu0 %246
    %249 = vset.pattern.permute.xlu0 1
    %250 = vperm.xlu0 %249, %v84
    %v251 = vpop.permute.xlu0 %250
    %v253 = vlaneseq
    %v254 = vshrl.u32 %v253, 7
    %v255 = vsub.s32 1, %v254
    %v256 = vrot.slane %v85, %v255
    %v257 = vlaneseq
    %v258 = vshrl.u32 %v257, 7
    %v259 = vsub.s32 5, %v258
    %v260 = vrot.slane %v85, %v259
    %v261 = vlaneseq
    %v262 = vshrl.u32 %v261, 7
    %v263 = vsub.s32 1, %v262
    %v264 = vrot.slane %v86, %v263
    %v268 = vlaneseq
    %v269 = vshrl.u32 %v268, 7
    %v270 = vsub.s32 1, %v269
    %v271 = vrot.slane %v256, %v270
    %v272 = vlaneseq
    %v273 = vshrl.u32 %v272, 7
    %v274 = vsub.s32 1, %v273
    %v275 = vrot.slane %v260, %v274
    %v276 = vlaneseq
    %v277 = vshrl.u32 %v276, 7
    %v278 = vsub.s32 1, %v277
    %v279 = vrot.slane %v264, %v278
    %v280 = vmul.f32 %v223, %v271
    %v281 = vmul.f32 %v223, %v275
    %v282 = vmul.f32 %v223, %v279
    %v283 = vmul.f32 %v227, %v271
    %v284 = vmul.f32 %v227, %v275
    %v285 = vmul.f32 %v227, %v279
    %v286 = vmul.f32 %v231, %v271
    %v287 = vmul.f32 %v231, %v275
    %v288 = vmul.f32 %v231, %v279
    %v289 = vmul.f32 %v235, %v271
    %v290 = vmul.f32 %v235, %v275
    %v291 = vmul.f32 %v235, %v279
    %v292 = vmul.f32 %v239, %v271
    %v293 = vmul.f32 %v239, %v275
    %v294 = vmul.f32 %v239, %v279
    %v295 = vmul.f32 %v243, %v271
    %v296 = vmul.f32 %v243, %v275
    %v297 = vmul.f32 %v243, %v279
    %v298 = vmul.f32 %v247, %v271
    %v299 = vmul.f32 %v247, %v275
    %v300 = vmul.f32 %v247, %v279
    %v301 = vmul.f32 %v251, %v271
    %v302 = vmul.f32 %v251, %v275
    %v303 = vmul.f32 %v251, %v279
    %v304 = vadd.f32 %v197, %v280
    %v305 = vadd.f32 %v198, %v281
    %v306 = vadd.f32 %v199, %v282
    %v307 = vadd.f32 %v200, %v283
    %v308 = vadd.f32 %v201, %v284
    %v309 = vadd.f32 %v202, %v285
    %v310 = vadd.f32 %v203, %v286
    %v311 = vadd.f32 %v204, %v287
    %v312 = vadd.f32 %v205, %v288
    %v313 = vadd.f32 %v206, %v289
    %v314 = vadd.f32 %v207, %v290
    %v315 = vadd.f32 %v208, %v291
    %v316 = vadd.f32 %v209, %v292
    %v317 = vadd.f32 %v210, %v293
    %v318 = vadd.f32 %v211, %v294
    %v319 = vadd.f32 %v212, %v295
    %v320 = vadd.f32 %v213, %v296
    %v321 = vadd.f32 %v214, %v297
    %v322 = vadd.f32 %v215, %v298
    %v323 = vadd.f32 %v216, %v299
    %v324 = vadd.f32 %v217, %v300
    %v325 = vadd.f32 %v218, %v301
    %v326 = vadd.f32 %v219, %v302
    %v327 = vadd.f32 %v220, %v303
    %328 = vset.pattern.permute.xlu0 2
    %329 = vperm.xlu0 %328, %v77
    %v330 = vpop.permute.xlu0 %329
    %332 = vset.pattern.permute.xlu0 2
    %333 = vperm.xlu0 %332, %v78
    %v334 = vpop.permute.xlu0 %333
    %336 = vset.pattern.permute.xlu0 2
    %337 = vperm.xlu0 %336, %v79
    %v338 = vpop.permute.xlu0 %337
    %340 = vset.pattern.permute.xlu0 2
    %341 = vperm.xlu0 %340, %v80
    %v342 = vpop.permute.xlu0 %341
    %344 = vset.pattern.permute.xlu0 2
    %345 = vperm.xlu0 %344, %v81
    %v346 = vpop.permute.xlu0 %345
    %348 = vset.pattern.permute.xlu0 2
    %349 = vperm.xlu0 %348, %v82
    %v350 = vpop.permute.xlu0 %349
    %352 = vset.pattern.permute.xlu0 2
    %353 = vperm.xlu0 %352, %v83
    %v354 = vpop.permute.xlu0 %353
    %356 = vset.pattern.permute.xlu0 2
    %357 = vperm.xlu0 %356, %v84
    %v358 = vpop.permute.xlu0 %357
    %v360 = vlaneseq
    %v361 = vshrl.u32 %v360, 7
    %v362 = vsub.s32 2, %v361
    %v363 = vrot.slane %v85, %v362
    %v364 = vlaneseq
    %v365 = vshrl.u32 %v364, 7
    %v366 = vsub.s32 6, %v365
    %v367 = vrot.slane %v85, %v366
    %v368 = vlaneseq
    %v369 = vshrl.u32 %v368, 7
    %v370 = vsub.s32 2, %v369
    %v371 = vrot.slane %v86, %v370
    %v375 = vlaneseq
    %v376 = vshrl.u32 %v375, 7
    %v377 = vsub.s32 2, %v376
    %v378 = vrot.slane %v363, %v377
    %v379 = vlaneseq
    %v380 = vshrl.u32 %v379, 7
    %v381 = vsub.s32 2, %v380
    %v382 = vrot.slane %v367, %v381
    %v383 = vlaneseq
    %v384 = vshrl.u32 %v383, 7
    %v385 = vsub.s32 2, %v384
    %v386 = vrot.slane %v371, %v385
    %v387 = vmul.f32 %v330, %v378
    %v388 = vmul.f32 %v330, %v382
    %v389 = vmul.f32 %v330, %v386
    %v390 = vmul.f32 %v334, %v378
    %v391 = vmul.f32 %v334, %v382
    %v392 = vmul.f32 %v334, %v386
    %v393 = vmul.f32 %v338, %v378
    %v394 = vmul.f32 %v338, %v382
    %v395 = vmul.f32 %v338, %v386
    %v396 = vmul.f32 %v342, %v378
    %v397 = vmul.f32 %v342, %v382
    %v398 = vmul.f32 %v342, %v386
    %v399 = vmul.f32 %v346, %v378
    %v400 = vmul.f32 %v346, %v382
    %v401 = vmul.f32 %v346, %v386
    %v402 = vmul.f32 %v350, %v378
    %v403 = vmul.f32 %v350, %v382
    %v404 = vmul.f32 %v350, %v386
    %v405 = vmul.f32 %v354, %v378
    %v406 = vmul.f32 %v354, %v382
    %v407 = vmul.f32 %v354, %v386
    %v408 = vmul.f32 %v358, %v378
    %v409 = vmul.f32 %v358, %v382
    %v410 = vmul.f32 %v358, %v386
    %v411 = vadd.f32 %v304, %v387
    %v412 = vadd.f32 %v305, %v388
    %v413 = vadd.f32 %v306, %v389
    %v414 = vadd.f32 %v307, %v390
    %v415 = vadd.f32 %v308, %v391
    %v416 = vadd.f32 %v309, %v392
    %v417 = vadd.f32 %v310, %v393
    %v418 = vadd.f32 %v311, %v394
    %v419 = vadd.f32 %v312, %v395
    %v420 = vadd.f32 %v313, %v396
    %v421 = vadd.f32 %v314, %v397
    %v422 = vadd.f32 %v315, %v398
    %v423 = vadd.f32 %v316, %v399
    %v424 = vadd.f32 %v317, %v400
    %v425 = vadd.f32 %v318, %v401
    %v426 = vadd.f32 %v319, %v402
    %v427 = vadd.f32 %v320, %v403
    %v428 = vadd.f32 %v321, %v404
    %v429 = vadd.f32 %v322, %v405
    %v430 = vadd.f32 %v323, %v406
    %v431 = vadd.f32 %v324, %v407
    %v432 = vadd.f32 %v325, %v408
    %v433 = vadd.f32 %v326, %v409
    %v434 = vadd.f32 %v327, %v410
    %435 = vset.pattern.permute.xlu0 3
    %436 = vperm.xlu0 %435, %v77
    %v437 = vpop.permute.xlu0 %436
    %439 = vset.pattern.permute.xlu0 3
    %440 = vperm.xlu0 %439, %v78
    %v441 = vpop.permute.xlu0 %440
    %443 = vset.pattern.permute.xlu0 3
    %444 = vperm.xlu0 %443, %v79
    %v445 = vpop.permute.xlu0 %444
    %447 = vset.pattern.permute.xlu0 3
    %448 = vperm.xlu0 %447, %v80
    %v449 = vpop.permute.xlu0 %448
    %451 = vset.pattern.permute.xlu0 3
    %452 = vperm.xlu0 %451, %v81
    %v453 = vpop.permute.xlu0 %452
    %455 = vset.pattern.permute.xlu0 3
    %456 = vperm.xlu0 %455, %v82
    %v457 = vpop.permute.xlu0 %456
    %459 = vset.pattern.permute.xlu0 3
    %460 = vperm.xlu0 %459, %v83
    %v461 = vpop.permute.xlu0 %460
    %463 = vset.pattern.permute.xlu0 3
    %464 = vperm.xlu0 %463, %v84
    %v465 = vpop.permute.xlu0 %464
    %v467 = vlaneseq
    %v468 = vshrl.u32 %v467, 7
    %v469 = vsub.s32 3, %v468
    %v470 = vrot.slane %v85, %v469
    %v471 = vlaneseq
    %v472 = vshrl.u32 %v471, 7
    %v473 = vsub.s32 7, %v472
    %v474 = vrot.slane %v85, %v473
    %v475 = vlaneseq
    %v476 = vshrl.u32 %v475, 7
    %v477 = vsub.s32 3, %v476
    %v478 = vrot.slane %v86, %v477
    %v482 = vlaneseq
    %v483 = vshrl.u32 %v482, 7
    %v484 = vsub.s32 3, %v483
    %v485 = vrot.slane %v470, %v484
    %v486 = vlaneseq
    %v487 = vshrl.u32 %v486, 7
    %v488 = vsub.s32 3, %v487
    %v489 = vrot.slane %v474, %v488
    %v490 = vlaneseq
    %v491 = vshrl.u32 %v490, 7
    %v492 = vsub.s32 3, %v491
    %v493 = vrot.slane %v478, %v492
    %v494 = vmul.f32 %v437, %v485
    %v495 = vmul.f32 %v437, %v489
    %v496 = vmul.f32 %v437, %v493
    %v497 = vmul.f32 %v441, %v485
    %v498 = vmul.f32 %v441, %v489
    %v499 = vmul.f32 %v441, %v493
    %v500 = vmul.f32 %v445, %v485
    %v501 = vmul.f32 %v445, %v489
    %v502 = vmul.f32 %v445, %v493
    %v503 = vmul.f32 %v449, %v485
    %v504 = vmul.f32 %v449, %v489
    %v505 = vmul.f32 %v449, %v493
    %v506 = vmul.f32 %v453, %v485
    %v507 = vmul.f32 %v453, %v489
    %v508 = vmul.f32 %v453, %v493
    %v509 = vmul.f32 %v457, %v485
    %v510 = vmul.f32 %v457, %v489
    %v511 = vmul.f32 %v457, %v493
    %v512 = vmul.f32 %v461, %v485
    %v513 = vmul.f32 %v461, %v489
    %v514 = vmul.f32 %v461, %v493
    %v515 = vmul.f32 %v465, %v485
    %v516 = vmul.f32 %v465, %v489
    %v517 = vmul.f32 %v465, %v493
    %v518 = vadd.f32 %v411, %v494
    %v519 = vadd.f32 %v412, %v495
    %v520 = vadd.f32 %v413, %v496
    %v521 = vadd.f32 %v414, %v497
    %v522 = vadd.f32 %v415, %v498
    %v523 = vadd.f32 %v416, %v499
    %v524 = vadd.f32 %v417, %v500
    %v525 = vadd.f32 %v418, %v501
    %v526 = vadd.f32 %v419, %v502
    %v527 = vadd.f32 %v420, %v503
    %v528 = vadd.f32 %v421, %v504
    %v529 = vadd.f32 %v422, %v505
    %v530 = vadd.f32 %v423, %v506
    %v531 = vadd.f32 %v424, %v507
    %v532 = vadd.f32 %v425, %v508
    %v533 = vadd.f32 %v426, %v509
    %v534 = vadd.f32 %v427, %v510
    %v535 = vadd.f32 %v428, %v511
    %v536 = vadd.f32 %v429, %v512
    %v537 = vadd.f32 %v430, %v513
    %v538 = vadd.f32 %v431, %v514
    %v539 = vadd.f32 %v432, %v515
    %v540 = vadd.f32 %v433, %v516
    %v541 = vadd.f32 %v434, %v517
    %542 = vst [vmem:[#allocation4] sm:$0xff] %v518
    %543 = vst [vmem:[#allocation4 + $0x8] sm:$0xff] %v519
    %544 = vst [vmem:[#allocation4 + $0x10] sm:$0xff] %v520
    %545 = vst [vmem:[#allocation4 + $0x18] sm:$0xff] %v521
    %546 = vst [vmem:[#allocation4 + $0x20] sm:$0xff] %v522
    %547 = vst [vmem:[#allocation4 + $0x28] sm:$0xff] %v523
    %548 = vst [vmem:[#allocation4 + $0x30] sm:$0xff] %v524
    %549 = vst [vmem:[#allocation4 + $0x38] sm:$0xff] %v525
    %550 = vst [vmem:[#allocation4 + $0x40] sm:$0xff] %v526
    %551 = vst [vmem:[#allocation4 + $0x48] sm:$0xff] %v527
    %552 = vst [vmem:[#allocation4 + $0x50] sm:$0xff] %v528
    %553 = vst [vmem:[#allocation4 + $0x58] sm:$0xff] %v529
    %554 = vst [vmem:[#allocation4 + $0x60] sm:$0xff] %v530
    %555 = vst [vmem:[#allocation4 + $0x68] sm:$0xff] %v531
    %556 = vst [vmem:[#allocation4 + $0x70] sm:$0xff] %v532
    %557 = vst [vmem:[#allocation4 + $0x78] sm:$0xff] %v533
    %558 = vst [vmem:[#allocation4 + $0x80] sm:$0xff] %v534
    %559 = vst [vmem:[#allocation4 + $0x88] sm:$0xff] %v535
    %560 = vst [vmem:[#allocation4 + $0x90] sm:$0xff] %v536
    %561 = vst [vmem:[#allocation4 + $0x98] sm:$0xff] %v537
    %562 = vst [vmem:[#allocation4 + $0xa0] sm:$0xff] %v538
    %563 = vst [vmem:[#allocation4 + $0xa8] sm:$0xff] %v539
    %564 = vst [vmem:[#allocation4 + $0xb0] sm:$0xff] %v540
    %565 = vst [vmem:[#allocation4 + $0xb8] sm:$0xff] %v541
    %v566 = vld [vmem:[#allocation7] sm:$0xff]
    %v567 = vld [vmem:[#allocation7 + $0x8] sm:$0xf]
    %v568 = vld [vmem:[#allocation7 + $0xc] sm:$0xff]
    %v569 = vld [vmem:[#allocation7 + $0x14] sm:$0xf]
    %v570 = vld [vmem:[#allocation7 + $0x18] sm:$0xff]
    %v571 = vld [vmem:[#allocation7 + $0x20] sm:$0xf]
    %v572 = vld [vmem:[#allocation7 + $0x24] sm:$0xff]
    %v573 = vld [vmem:[#allocation7 + $0x2c] sm:$0xf]
    %v574 = vld [vmem:[#allocation7 + $0x30] sm:$0xff]
    %v575 = vld [vmem:[#allocation7 + $0x38] sm:$0xf]
    %v576 = vld [vmem:[#allocation7 + $0x3c] sm:$0xff]
    %v577 = vld [vmem:[#allocation7 + $0x44] sm:$0xf]
    %v578 = vld [vmem:[#allocation7 + $0x48] sm:$0xff]
    %v579 = vld [vmem:[#allocation7 + $0x50] sm:$0xf]
    %v580 = vld [vmem:[#allocation7 + $0x54] sm:$0xff]
    %v581 = vld [vmem:[#allocation7 + $0x5c] sm:$0xf]
    %v582 = vld [vmem:[#allocation7 + $0x60] sm:$0xff]
    %v583 = vld [vmem:[#allocation7 + $0x68] sm:$0xf]
    %v584 = vld [vmem:[#allocation7 + $0x6c] sm:$0xff]
    %v585 = vld [vmem:[#allocation7 + $0x74] sm:$0xf]
    %v586 = vld [vmem:[#allocation7 + $0x78] sm:$0xff]
    %v587 = vld [vmem:[#allocation7 + $0x80] sm:$0xf]
    %v588 = vld [vmem:[#allocation7 + $0x84] sm:$0xff]
    %v589 = vld [vmem:[#allocation7 + $0x8c] sm:$0xf]
    %v590 = vld [vmem:[#allocation7 + $0x90] sm:$0xff]
    %v591 = vld [vmem:[#allocation7 + $0x98] sm:$0xf]
    %v592 = vld [vmem:[#allocation7 + $0x9c] sm:$0xff]
    %v593 = vld [vmem:[#allocation7 + $0xa4] sm:$0xf]
    %v594 = vld [vmem:[#allocation7 + $0xa8] sm:$0xff]
    %v595 = vld [vmem:[#allocation7 + $0xb0] sm:$0xf]
    %v596 = vld [vmem:[#allocation7 + $0xb4] sm:$0xff]
    %v597 = vld [vmem:[#allocation7 + $0xbc] sm:$0xf]
    %v598 = vld [vmem:[%s5] sm:$0x7]
    %v600 = vlaneseq
    %v601 = vshrl.u32 %v600, 7
    %v602 = vsub.s32 0, %v601
    %v603 = vrot.slane %v598, %v602
    %v604 = vlaneseq
    %v605 = vshrl.u32 %v604, 7
    %v606 = vsub.s32 1, %v605
    %v607 = vrot.slane %v598, %v606
    %v608 = vlaneseq
    %v609 = vshrl.u32 %v608, 7
    %v610 = vsub.s32 2, %v609
    %v611 = vrot.slane %v598, %v610
    %v615 = vld [vmem:[#allocation2] sm:$0xff]
    %s616 = smul.u32 0, 3
    %s617 = smul.addr %s616, 8
    %s618 = scalar_lea.vmem [#allocation4], %s617
    %v619 = vld [vmem:[%s618] sm:$0xff]
    %v620 = vld [vmem:[%s618 + $0x8] sm:$0xff]
    %v621 = vld [vmem:[%s618 + $0x10] sm:$0xff]
    %v622 = vpack.c.bf16 %v615, %v615
    %v655 = vunpack.c.l.b16 %v566
    %v656 = vunpack.c.h.b16 %v566
    %v657 = vunpack.c.l.b16 %v567
    %v658 = vunpack.c.l.b16 %v568
    %v659 = vunpack.c.h.b16 %v568
    %v660 = vunpack.c.l.b16 %v569
    %v661 = vunpack.c.l.b16 %v570
    %v662 = vunpack.c.h.b16 %v570
    %v663 = vunpack.c.l.b16 %v571
    %v664 = vunpack.c.l.b16 %v572
    %v665 = vunpack.c.h.b16 %v572
    %v666 = vunpack.c.l.b16 %v573
    %v667 = vunpack.c.l.b16 %v574
    %v668 = vunpack.c.h.b16 %v574
    %v669 = vunpack.c.l.b16 %v575
    %v670 = vunpack.c.l.b16 %v576
    %v671 = vunpack.c.h.b16 %v576
    %v672 = vunpack.c.l.b16 %v577
    %v673 = vunpack.c.l.b16 %v578
    %v674 = vunpack.c.h.b16 %v578
    %v675 = vunpack.c.l.b16 %v579
    %v676 = vunpack.c.l.b16 %v580
    %v677 = vunpack.c.h.b16 %v580
    %v678 = vunpack.c.l.b16 %v581
    %v679 = vunpack.c.l.b16 %v582
    %v680 = vunpack.c.h.b16 %v582
    %v681 = vunpack.c.l.b16 %v583
    %v682 = vunpack.c.l.b16 %v584
    %v683 = vunpack.c.h.b16 %v584
    %v684 = vunpack.c.l.b16 %v585
    %v685 = vunpack.c.l.b16 %v586
    %v686 = vunpack.c.h.b16 %v586
    %v687 = vunpack.c.l.b16 %v587
    %v688 = vunpack.c.l.b16 %v588
    %v689 = vunpack.c.h.b16 %v588
    %v690 = vunpack.c.l.b16 %v589
    %v691 = vunpack.c.l.b16 %v590
    %v692 = vunpack.c.h.b16 %v590
    %v693 = vunpack.c.l.b16 %v591
    %v694 = vunpack.c.l.b16 %v592
    %v695 = vunpack.c.h.b16 %v592
    %v696 = vunpack.c.l.b16 %v593
    %v697 = vunpack.c.l.b16 %v594
    %v698 = vunpack.c.h.b16 %v594
    %v699 = vunpack.c.l.b16 %v595
    %v700 = vunpack.c.l.b16 %v596
    %v701 = vunpack.c.h.b16 %v596
    %v702 = vunpack.c.l.b16 %v597
    %v703 = vpack.c.b16 %v658, %v655
    %v704 = vpack.c.b16 %v659, %v656
    %v705 = vpack.c.b16 %v660, %v657
    %v706 = vpack.c.b16 %v664, %v661
    %v707 = vpack.c.b16 %v665, %v662
    %v708 = vpack.c.b16 %v666, %v663
    %v709 = vpack.c.b16 %v670, %v667
    %v710 = vpack.c.b16 %v671, %v668
    %v711 = vpack.c.b16 %v672, %v669
    %v712 = vpack.c.b16 %v676, %v673
    %v713 = vpack.c.b16 %v677, %v674
    %v714 = vpack.c.b16 %v678, %v675
    %v715 = vpack.c.b16 %v682, %v679
    %v716 = vpack.c.b16 %v683, %v680
    %v717 = vpack.c.b16 %v684, %v681
    %v718 = vpack.c.b16 %v688, %v685
    %v719 = vpack.c.b16 %v689, %v686
    %v720 = vpack.c.b16 %v690, %v687
    %v721 = vpack.c.b16 %v694, %v691
    %v722 = vpack.c.b16 %v695, %v692
    %v723 = vpack.c.b16 %v696, %v693
    %v724 = vpack.c.b16 %v700, %v697
    %v725 = vpack.c.b16 %v701, %v698
    %v726 = vpack.c.b16 %v702, %v699
    %751 = vmatprep.subr.bf16.mxu0 %v725
    %752 = vmatpush1.bf16.msra.mxu0 %v724
    %753 = vmatprep.subr.bf16.mxu0 %v722
    %754 = vmatpush1.bf16.msra.mxu0 %v721
    %755 = vmatprep.subr.bf16.mxu0 %v719
    %756 = vmatpush1.bf16.msra.mxu0 %v718
    %757 = vmatprep.subr.bf16.mxu0 %v716
    %758 = vmatpush1.bf16.msra.mxu0 %v715
    %759 = vmatprep.subr.bf16.mxu0 %v713
    %760 = vmatpush1.bf16.msra.mxu0 %v712
    %761 = vmatprep.subr.bf16.mxu0 %v710
    %762 = vmatpush1.bf16.msra.mxu0 %v709
    %763 = vmatprep.subr.bf16.mxu0 %v707
    %764 = vmatpush1.bf16.msra.mxu0 %v706
    %765 = vmatprep.subr.bf16.mxu0 %v704
    %766 = vmatpush1.bf16.msra.mxu0 %v703
    %767 = vmatprep.subr.bf16.mxu0 0
    %768 = vmatpush2.bf16.msra.mxu0 0
    %769 = vmatprep.subr.bf16.mxu0 0
    %770 = vmatpush2.bf16.msra.mxu0 0
    %771 = vmatprep.subr.bf16.mxu0 0
    %772 = vmatpush2.bf16.msra.mxu0 0
    %773 = vmatprep.subr.bf16.mxu0 0
    %774 = vmatpush2.bf16.msra.mxu0 0
    %775 = vmatprep.subr.bf16.mxu0 0
    %776 = vmatpush2.bf16.msra.mxu0 0
    %777 = vmatprep.subr.bf16.mxu0 0
    %778 = vmatpush2.bf16.msra.mxu0 0
    %779 = vmatprep.subr.bf16.mxu0 0
    %780 = vmatpush2.bf16.msra.mxu0 0
    %781 = vmatprep.subr.bf16.mxu0 0
    %782 = vmatpush2.bf16.msra.mxu0 0
    %783 = vmatprep.mubr.bf16.mxu0 0
    %784 = vmatmul.mubr.bf16.gmra.mxu0 %v622
    %v785 = vpop.f32.mrf.mxu0
    %v786 = vadd.f32 %v603, %v785
    %v787 = vpop.f32.mrf.mxu0
    %v788 = vadd.f32 %v607, %v787
    %v789 = vpop.f32.mrf.mxu0
    %v790 = vpop.f32.mrf.mxu0
    %791 = vdwg.mxu0
    %792 = vmatprep.subr.bf16.mxu0 0
    %793 = vmatpush1.bf16.msra.mxu0 %v726
    %794 = vmatprep.subr.bf16.mxu0 0
    %795 = vmatpush1.bf16.msra.mxu0 %v723
    %796 = vmatprep.subr.bf16.mxu0 0
    %797 = vmatpush1.bf16.msra.mxu0 %v720
    %798 = vmatprep.subr.bf16.mxu0 0
    %799 = vmatpush1.bf16.msra.mxu0 %v717
    %800 = vmatprep.subr.bf16.mxu0 0
    %801 = vmatpush1.bf16.msra.mxu0 %v714
    %802 = vmatprep.subr.bf16.mxu0 0
    %803 = vmatpush1.bf16.msra.mxu0 %v711
    %804 = vmatprep.subr.bf16.mxu0 0
    %805 = vmatpush1.bf16.msra.mxu0 %v708
    %806 = vmatprep.subr.bf16.mxu0 0
    %807 = vmatpush1.bf16.msra.mxu0 %v705
    %808 = vmatprep.subr.bf16.mxu0 0
    %809 = vmatpush2.bf16.msra.mxu0 0
    %810 = vmatprep.subr.bf16.mxu0 0
    %811 = vmatpush2.bf16.msra.mxu0 0
    %812 = vmatprep.subr.bf16.mxu0 0
    %813 = vmatpush2.bf16.msra.mxu0 0
    %814 = vmatprep.subr.bf16.mxu0 0
    %815 = vmatpush2.bf16.msra.mxu0 0
    %816 = vmatprep.subr.bf16.mxu0 0
    %817 = vmatpush2.bf16.msra.mxu0 0
    %818 = vmatprep.subr.bf16.mxu0 0
    %819 = vmatpush2.bf16.msra.mxu0 0
    %820 = vmatprep.subr.bf16.mxu0 0
    %821 = vmatpush2.bf16.msra.mxu0 0
    %822 = vmatprep.subr.bf16.mxu0 0
    %823 = vmatpush2.bf16.msra.mxu0 0
    %824 = vmatprep.mubr.bf16.mxu0 0
    %825 = vmatmul.mubr.bf16.gmra.mxu0 %v622
    %v826 = vpop.f32.mrf.mxu0
    %v827 = vadd.f32 %v611, %v826
    %v828 = vpop.f32.mrf.mxu0
    %v829 = vpop.f32.mrf.mxu0
    %v830 = vpop.f32.mrf.mxu0
    %831 = vdwg.mxu0
    %v832 = vadd.f32 %v619, %v786
    %v833 = vxor.u32 %v832, 2147483648
    %v834 = vmul.f32 %v833, 1.442695
    %v835 = vpow.pop %v834
    %v836 = vadd.f32 %v835, 1.0
    %v837 = vrcp.pop %v836
    %v838 = vmul.f32 1.0, %v837
    %v839 = vadd.f32 %v620, %v788
    %v840 = vxor.u32 %v839, 2147483648
    %v841 = vmul.f32 %v840, 1.442695
    %v842 = vpow.pop %v841
    %v843 = vadd.f32 %v842, 1.0
    %v844 = vrcp.pop %v843
    %v845 = vmul.f32 1.0, %v844
    %v846 = vmul.f32 %v838, %v827
    %v847 = vadd.f32 %v621, %v846
    %v848 = vtanh.pop %v847
    %v849 = vsub.f32 %v615, %v848
    %v850 = vmul.f32 %v845, %v849
    %v851 = vadd.f32 %v848, %v850
    %852 = vst [vmem:[#allocation3] sm:$0xff] %v851
    %s853 = smul.u32 1, 3
    %s854 = smul.addr %s853, 8
    %s855 = scalar_lea.vmem [#allocation4], %s854
    %v856 = vld [vmem:[%s855] sm:$0xff]
    %v857 = vld [vmem:[%s855 + $0x8] sm:$0xff]
    %v858 = vld [vmem:[%s855 + $0x10] sm:$0xff]
    %v859 = vpack.c.bf16 %v851, %v851
    %860 = vmatprep.subr.bf16.mxu0 %v725
    %861 = vmatpush1.bf16.msra.mxu0 %v724
    %862 = vmatprep.subr.bf16.mxu0 %v722
    %863 = vmatpush1.bf16.msra.mxu0 %v721
    %864 = vmatprep.subr.bf16.mxu0 %v719
    %865 = vmatpush1.bf16.msra.mxu0 %v718
    %866 = vmatprep.subr.bf16.mxu0 %v716
    %867 = vmatpush1.bf16.msra.mxu0 %v715
    %868 = vmatprep.subr.bf16.mxu0 %v713
    %869 = vmatpush1.bf16.msra.mxu0 %v712
    %870 = vmatprep.subr.bf16.mxu0 %v710
    %871 = vmatpush1.bf16.msra.mxu0 %v709
    %872 = vmatprep.subr.bf16.mxu0 %v707
    %873 = vmatpush1.bf16.msra.mxu0 %v706
    %874 = vmatprep.subr.bf16.mxu0 %v704
    %875 = vmatpush1.bf16.msra.mxu0 %v703
    %876 = vmatprep.subr.bf16.mxu0 0
    %877 = vmatpush2.bf16.msra.mxu0 0
    %878 = vmatprep.subr.bf16.mxu0 0
    %879 = vmatpush2.bf16.msra.mxu0 0
    %880 = vmatprep.subr.bf16.mxu0 0
    %881 = vmatpush2.bf16.msra.mxu0 0
    %882 = vmatprep.subr.bf16.mxu0 0
    %883 = vmatpush2.bf16.msra.mxu0 0
    %884 = vmatprep.subr.bf16.mxu0 0
    %885 = vmatpush2.bf16.msra.mxu0 0
    %886 = vmatprep.subr.bf16.mxu0 0
    %887 = vmatpush2.bf16.msra.mxu0 0
    %888 = vmatprep.subr.bf16.mxu0 0
    %889 = vmatpush2.bf16.msra.mxu0 0
    %890 = vmatprep.subr.bf16.mxu0 0
    %891 = vmatpush2.bf16.msra.mxu0 0
    %892 = vmatprep.mubr.bf16.mxu0 0
    %893 = vmatmul.mubr.bf16.gmra.mxu0 %v859
    %v894 = vpop.f32.mrf.mxu0
    %v895 = vadd.f32 %v603, %v894
    %v896 = vpop.f32.mrf.mxu0
    %v897 = vadd.f32 %v607, %v896
    %v898 = vpop.f32.mrf.mxu0
    %v899 = vpop.f32.mrf.mxu0
    %900 = vdwg.mxu0
    %901 = vmatprep.subr.bf16.mxu0 0
    %902 = vmatpush1.bf16.msra.mxu0 %v726
    %903 = vmatprep.subr.bf16.mxu0 0
    %904 = vmatpush1.bf16.msra.mxu0 %v723
    %905 = vmatprep.subr.bf16.mxu0 0
    %906 = vmatpush1.bf16.msra.mxu0 %v720
    %907 = vmatprep.subr.bf16.mxu0 0
    %908 = vmatpush1.bf16.msra.mxu0 %v717
    %909 = vmatprep.subr.bf16.mxu0 0
    %910 = vmatpush1.bf16.msra.mxu0 %v714
    %911 = vmatprep.subr.bf16.mxu0 0
    %912 = vmatpush1.bf16.msra.mxu0 %v711
    %913 = vmatprep.subr.bf16.mxu0 0
    %914 = vmatpush1.bf16.msra.mxu0 %v708
    %915 = vmatprep.subr.bf16.mxu0 0
    %916 = vmatpush1.bf16.msra.mxu0 %v705
    %917 = vmatprep.subr.bf16.mxu0 0
    %918 = vmatpush2.bf16.msra.mxu0 0
    %919 = vmatprep.subr.bf16.mxu0 0
    %920 = vmatpush2.bf16.msra.mxu0 0
    %921 = vmatprep.subr.bf16.mxu0 0
    %922 = vmatpush2.bf16.msra.mxu0 0
    %923 = vmatprep.subr.bf16.mxu0 0
    %924 = vmatpush2.bf16.msra.mxu0 0
    %925 = vmatprep.subr.bf16.mxu0 0
    %926 = vmatpush2.bf16.msra.mxu0 0
    %927 = vmatprep.subr.bf16.mxu0 0
    %928 = vmatpush2.bf16.msra.mxu0 0
    %929 = vmatprep.subr.bf16.mxu0 0
    %930 = vmatpush2.bf16.msra.mxu0 0
    %931 = vmatprep.subr.bf16.mxu0 0
    %932 = vmatpush2.bf16.msra.mxu0 0
    %933 = vmatprep.mubr.bf16.mxu0 0
    %934 = vmatmul.mubr.bf16.gmra.mxu0 %v859
    %v935 = vpop.f32.mrf.mxu0
    %v936 = vadd.f32 %v611, %v935
    %v937 = vpop.f32.mrf.mxu0
    %v938 = vpop.f32.mrf.mxu0
    %v939 = vpop.f32.mrf.mxu0
    %940 = vdwg.mxu0
    %v941 = vadd.f32 %v856, %v895
    %v942 = vxor.u32 %v941, 2147483648
    %v943 = vmul.f32 %v942, 1.442695
    %v944 = vpow.pop %v943
    %v945 = vadd.f32 %v944, 1.0
    %v946 = vrcp.pop %v945
    %v947 = vmul.f32 1.0, %v946
    %v948 = vadd.f32 %v857, %v897
    %v949 = vxor.u32 %v948, 2147483648
    %v950 = vmul.f32 %v949, 1.442695
    %v951 = vpow.pop %v950
    %v952 = vadd.f32 %v951, 1.0
    %v953 = vrcp.pop %v952
    %v954 = vmul.f32 1.0, %v953
    %v955 = vmul.f32 %v947, %v936
    %v956 = vadd.f32 %v858, %v955
    %v957 = vtanh.pop %v956
    %v958 = vsub.f32 %v851, %v957
    %v959 = vmul.f32 %v954, %v958
    %v960 = vadd.f32 %v957, %v959
    %s961 = scalar_lea.vmem [#allocation3], 8
    %962 = vst [vmem:[%s961] sm:$0xff] %v960
    %s963 = smul.u32 2, 3
    %s964 = smul.addr %s963, 8
    %s965 = scalar_lea.vmem [#allocation4], %s964
    %v966 = vld [vmem:[%s965] sm:$0xff]
    %v967 = vld [vmem:[%s965 + $0x8] sm:$0xff]
    %v968 = vld [vmem:[%s965 + $0x10] sm:$0xff]
    %v969 = vpack.c.bf16 %v960, %v960
    %970 = vmatprep.subr.bf16.mxu0 %v725
    %971 = vmatpush1.bf16.msra.mxu0 %v724
    %972 = vmatprep.subr.bf16.mxu0 %v722
    %973 = vmatpush1.bf16.msra.mxu0 %v721
    %974 = vmatprep.subr.bf16.mxu0 %v719
    %975 = vmatpush1.bf16.msra.mxu0 %v718
    %976 = vmatprep.subr.bf16.mxu0 %v716
    %977 = vmatpush1.bf16.msra.mxu0 %v715
    %978 = vmatprep.subr.bf16.mxu0 %v713
    %979 = vmatpush1.bf16.msra.mxu0 %v712
    %980 = vmatprep.subr.bf16.mxu0 %v710
    %981 = vmatpush1.bf16.msra.mxu0 %v709
    %982 = vmatprep.subr.bf16.mxu0 %v707
    %983 = vmatpush1.bf16.msra.mxu0 %v706
    %984 = vmatprep.subr.bf16.mxu0 %v704
    %985 = vmatpush1.bf16.msra.mxu0 %v703
    %986 = vmatprep.subr.bf16.mxu0 0
    %987 = vmatpush2.bf16.msra.mxu0 0
    %988 = vmatprep.subr.bf16.mxu0 0
    %989 = vmatpush2.bf16.msra.mxu0 0
    %990 = vmatprep.subr.bf16.mxu0 0
    %991 = vmatpush2.bf16.msra.mxu0 0
    %992 = vmatprep.subr.bf16.mxu0 0
    %993 = vmatpush2.bf16.msra.mxu0 0
    %994 = vmatprep.subr.bf16.mxu0 0
    %995 = vmatpush2.bf16.msra.mxu0 0
    %996 = vmatprep.subr.bf16.mxu0 0
    %997 = vmatpush2.bf16.msra.mxu0 0
    %998 = vmatprep.subr.bf16.mxu0 0
    %999 = vmatpush2.bf16.msra.mxu0 0
    %1000 = vmatprep.subr.bf16.mxu0 0
    %1001 = vmatpush2.bf16.msra.mxu0 0
    %1002 = vmatprep.mubr.bf16.mxu0 0
    %1003 = vmatmul.mubr.bf16.gmra.mxu0 %v969
    %v1004 = vpop.f32.mrf.mxu0
    %v1005 = vadd.f32 %v603, %v1004
    %v1006 = vpop.f32.mrf.mxu0
    %v1007 = vadd.f32 %v607, %v1006
    %v1008 = vpop.f32.mrf.mxu0
    %v1009 = vpop.f32.mrf.mxu0
    %1010 = vdwg.mxu0
    %1011 = vmatprep.subr.bf16.mxu0 0
    %1012 = vmatpush1.bf16.msra.mxu0 %v726
    %1013 = vmatprep.subr.bf16.mxu0 0
    %1014 = vmatpush1.bf16.msra.mxu0 %v723
    %1015 = vmatprep.subr.bf16.mxu0 0
    %1016 = vmatpush1.bf16.msra.mxu0 %v720
    %1017 = vmatprep.subr.bf16.mxu0 0
    %1018 = vmatpush1.bf16.msra.mxu0 %v717
    %1019 = vmatprep.subr.bf16.mxu0 0
    %1020 = vmatpush1.bf16.msra.mxu0 %v714
    %1021 = vmatprep.subr.bf16.mxu0 0
    %1022 = vmatpush1.bf16.msra.mxu0 %v711
    %1023 = vmatprep.subr.bf16.mxu0 0
    %1024 = vmatpush1.bf16.msra.mxu0 %v708
    %1025 = vmatprep.subr.bf16.mxu0 0
    %1026 = vmatpush1.bf16.msra.mxu0 %v705
    %1027 = vmatprep.subr.bf16.mxu0 0
    %1028 = vmatpush2.bf16.msra.mxu0 0
    %1029 = vmatprep.subr.bf16.mxu0 0
    %1030 = vmatpush2.bf16.msra.mxu0 0
    %1031 = vmatprep.subr.bf16.mxu0 0
    %1032 = vmatpush2.bf16.msra.mxu0 0
    %1033 = vmatprep.subr.bf16.mxu0 0
    %1034 = vmatpush2.bf16.msra.mxu0 0
    %1035 = vmatprep.subr.bf16.mxu0 0
    %1036 = vmatpush2.bf16.msra.mxu0 0
    %1037 = vmatprep.subr.bf16.mxu0 0
    %1038 = vmatpush2.bf16.msra.mxu0 0
    %1039 = vmatprep.subr.bf16.mxu0 0
    %1040 = vmatpush2.bf16.msra.mxu0 0
    %1041 = vmatprep.subr.bf16.mxu0 0
    %1042 = vmatpush2.bf16.msra.mxu0 0
    %1043 = vmatprep.mubr.bf16.mxu0 0
    %1044 = vmatmul.mubr.bf16.gmra.mxu0 %v969
    %v1045 = vpop.f32.mrf.mxu0
    %v1046 = vadd.f32 %v611, %v1045
    %v1047 = vpop.f32.mrf.mxu0
    %v1048 = vpop.f32.mrf.mxu0
    %v1049 = vpop.f32.mrf.mxu0
    %1050 = vdwg.mxu0
    %v1051 = vadd.f32 %v966, %v1005
    %v1052 = vxor.u32 %v1051, 2147483648
    %v1053 = vmul.f32 %v1052, 1.442695
    %v1054 = vpow.pop %v1053
    %v1055 = vadd.f32 %v1054, 1.0
    %v1056 = vrcp.pop %v1055
    %v1057 = vmul.f32 1.0, %v1056
    %v1058 = vadd.f32 %v967, %v1007
    %v1059 = vxor.u32 %v1058, 2147483648
    %v1060 = vmul.f32 %v1059, 1.442695
    %v1061 = vpow.pop %v1060
    %v1062 = vadd.f32 %v1061, 1.0
    %v1063 = vrcp.pop %v1062
    %v1064 = vmul.f32 1.0, %v1063
    %v1065 = vmul.f32 %v1057, %v1046
    %v1066 = vadd.f32 %v968, %v1065
    %v1067 = vtanh.pop %v1066
    %v1068 = vsub.f32 %v960, %v1067
    %v1069 = vmul.f32 %v1064, %v1068
    %v1070 = vadd.f32 %v1067, %v1069
    %s1071 = scalar_lea.vmem [#allocation3], 16
    %1072 = vst [vmem:[%s1071] sm:$0xff] %v1070
    %s1073 = smul.u32 3, 3
    %s1074 = smul.addr %s1073, 8
    %s1075 = scalar_lea.vmem [#allocation4], %s1074
    %v1076 = vld [vmem:[%s1075] sm:$0xff]
    %v1077 = vld [vmem:[%s1075 + $0x8] sm:$0xff]
    %v1078 = vld [vmem:[%s1075 + $0x10] sm:$0xff]
    %v1079 = vpack.c.bf16 %v1070, %v1070
    %1080 = vmatprep.subr.bf16.mxu0 %v725
    %1081 = vmatpush1.bf16.msra.mxu0 %v724
    %1082 = vmatprep.subr.bf16.mxu0 %v722
    %1083 = vmatpush1.bf16.msra.mxu0 %v721
    %1084 = vmatprep.subr.bf16.mxu0 %v719
    %1085 = vmatpush1.bf16.msra.mxu0 %v718
    %1086 = vmatprep.subr.bf16.mxu0 %v716
    %1087 = vmatpush1.bf16.msra.mxu0 %v715
    %1088 = vmatprep.subr.bf16.mxu0 %v713
    %1089 = vmatpush1.bf16.msra.mxu0 %v712
    %1090 = vmatprep.subr.bf16.mxu0 %v710
    %1091 = vmatpush1.bf16.msra.mxu0 %v709
    %1092 = vmatprep.subr.bf16.mxu0 %v707
    %1093 = vmatpush1.bf16.msra.mxu0 %v706
    %1094 = vmatprep.subr.bf16.mxu0 %v704
    %1095 = vmatpush1.bf16.msra.mxu0 %v703
    %1096 = vmatprep.subr.bf16.mxu0 0
    %1097 = vmatpush2.bf16.msra.mxu0 0
    %1098 = vmatprep.subr.bf16.mxu0 0
    %1099 = vmatpush2.bf16.msra.mxu0 0
    %1100 = vmatprep.subr.bf16.mxu0 0
    %1101 = vmatpush2.bf16.msra.mxu0 0
    %1102 = vmatprep.subr.bf16.mxu0 0
    %1103 = vmatpush2.bf16.msra.mxu0 0
    %1104 = vmatprep.subr.bf16.mxu0 0
    %1105 = vmatpush2.bf16.msra.mxu0 0
    %1106 = vmatprep.subr.bf16.mxu0 0
    %1107 = vmatpush2.bf16.msra.mxu0 0
    %1108 = vmatprep.subr.bf16.mxu0 0
    %1109 = vmatpush2.bf16.msra.mxu0 0
    %1110 = vmatprep.subr.bf16.mxu0 0
    %1111 = vmatpush2.bf16.msra.mxu0 0
    %1112 = vmatprep.mubr.bf16.mxu0 0
    %1113 = vmatmul.mubr.bf16.gmra.mxu0 %v1079
    %v1114 = vpop.f32.mrf.mxu0
    %v1115 = vadd.f32 %v603, %v1114
    %v1116 = vpop.f32.mrf.mxu0
    %v1117 = vadd.f32 %v607, %v1116
    %v1118 = vpop.f32.mrf.mxu0
    %v1119 = vpop.f32.mrf.mxu0
    %1120 = vdwg.mxu0
    %1121 = vmatprep.subr.bf16.mxu0 0
    %1122 = vmatpush1.bf16.msra.mxu0 %v726
    %1123 = vmatprep.subr.bf16.mxu0 0
    %1124 = vmatpush1.bf16.msra.mxu0 %v723
    %1125 = vmatprep.subr.bf16.mxu0 0
    %1126 = vmatpush1.bf16.msra.mxu0 %v720
    %1127 = vmatprep.subr.bf16.mxu0 0
    %1128 = vmatpush1.bf16.msra.mxu0 %v717
    %1129 = vmatprep.subr.bf16.mxu0 0
    %1130 = vmatpush1.bf16.msra.mxu0 %v714
    %1131 = vmatprep.subr.bf16.mxu0 0
    %1132 = vmatpush1.bf16.msra.mxu0 %v711
    %1133 = vmatprep.subr.bf16.mxu0 0
    %1134 = vmatpush1.bf16.msra.mxu0 %v708
    %1135 = vmatprep.subr.bf16.mxu0 0
    %1136 = vmatpush1.bf16.msra.mxu0 %v705
    %1137 = vmatprep.subr.bf16.mxu0 0
    %1138 = vmatpush2.bf16.msra.mxu0 0
    %1139 = vmatprep.subr.bf16.mxu0 0
    %1140 = vmatpush2.bf16.msra.mxu0 0
    %1141 = vmatprep.subr.bf16.mxu0 0
    %1142 = vmatpush2.bf16.msra.mxu0 0
    %1143 = vmatprep.subr.bf16.mxu0 0
    %1144 = vmatpush2.bf16.msra.mxu0 0
    %1145 = vmatprep.subr.bf16.mxu0 0
    %1146 = vmatpush2.bf16.msra.mxu0 0
    %1147 = vmatprep.subr.bf16.mxu0 0
    %1148 = vmatpush2.bf16.msra.mxu0 0
    %1149 = vmatprep.subr.bf16.mxu0 0
    %1150 = vmatpush2.bf16.msra.mxu0 0
    %1151 = vmatprep.subr.bf16.mxu0 0
    %1152 = vmatpush2.bf16.msra.mxu0 0
    %1153 = vmatprep.mubr.bf16.mxu0 0
    %1154 = vmatmul.mubr.bf16.gmra.mxu0 %v1079
    %v1155 = vpop.f32.mrf.mxu0
    %v1156 = vadd.f32 %v611, %v1155
    %v1157 = vpop.f32.mrf.mxu0
    %v1158 = vpop.f32.mrf.mxu0
    %v1159 = vpop.f32.mrf.mxu0
    %1160 = vdwg.mxu0
    %v1161 = vadd.f32 %v1076, %v1115
    %v1162 = vxor.u32 %v1161, 2147483648
    %v1163 = vmul.f32 %v1162, 1.442695
    %v1164 = vpow.pop %v1163
    %v1165 = vadd.f32 %v1164, 1.0
    %v1166 = vrcp.pop %v1165
    %v1167 = vmul.f32 1.0, %v1166
    %v1168 = vadd.f32 %v1077, %v1117
    %v1169 = vxor.u32 %v1168, 2147483648
    %v1170 = vmul.f32 %v1169, 1.442695
    %v1171 = vpow.pop %v1170
    %v1172 = vadd.f32 %v1171, 1.0
    %v1173 = vrcp.pop %v1172
    %v1174 = vmul.f32 1.0, %v1173
    %v1175 = vmul.f32 %v1167, %v1156
    %v1176 = vadd.f32 %v1078, %v1175
    %v1177 = vtanh.pop %v1176
    %v1178 = vsub.f32 %v1070, %v1177
    %v1179 = vmul.f32 %v1174, %v1178
    %v1180 = vadd.f32 %v1177, %v1179
    %s1181 = scalar_lea.vmem [#allocation3], 24
    %1182 = vst [vmem:[%s1181] sm:$0xff] %v1180
    %s1183 = smul.u32 4, 3
    %s1184 = smul.addr %s1183, 8
    %s1185 = scalar_lea.vmem [#allocation4], %s1184
    %v1186 = vld [vmem:[%s1185] sm:$0xff]
    %v1187 = vld [vmem:[%s1185 + $0x8] sm:$0xff]
    %v1188 = vld [vmem:[%s1185 + $0x10] sm:$0xff]
    %v1189 = vpack.c.bf16 %v1180, %v1180
    %1190 = vmatprep.subr.bf16.mxu0 %v725
    %1191 = vmatpush1.bf16.msra.mxu0 %v724
    %1192 = vmatprep.subr.bf16.mxu0 %v722
    %1193 = vmatpush1.bf16.msra.mxu0 %v721
    %1194 = vmatprep.subr.bf16.mxu0 %v719
    %1195 = vmatpush1.bf16.msra.mxu0 %v718
    %1196 = vmatprep.subr.bf16.mxu0 %v716
    %1197 = vmatpush1.bf16.msra.mxu0 %v715
    %1198 = vmatprep.subr.bf16.mxu0 %v713
    %1199 = vmatpush1.bf16.msra.mxu0 %v712
    %1200 = vmatprep.subr.bf16.mxu0 %v710
    %1201 = vmatpush1.bf16.msra.mxu0 %v709
    %1202 = vmatprep.subr.bf16.mxu0 %v707
    %1203 = vmatpush1.bf16.msra.mxu0 %v706
    %1204 = vmatprep.subr.bf16.mxu0 %v704
    %1205 = vmatpush1.bf16.msra.mxu0 %v703
    %1206 = vmatprep.subr.bf16.mxu0 0
    %1207 = vmatpush2.bf16.msra.mxu0 0
    %1208 = vmatprep.subr.bf16.mxu0 0
    %1209 = vmatpush2.bf16.msra.mxu0 0
    %1210 = vmatprep.subr.bf16.mxu0 0
    %1211 = vmatpush2.bf16.msra.mxu0 0
    %1212 = vmatprep.subr.bf16.mxu0 0
    %1213 = vmatpush2.bf16.msra.mxu0 0
    %1214 = vmatprep.subr.bf16.mxu0 0
    %1215 = vmatpush2.bf16.msra.mxu0 0
    %1216 = vmatprep.subr.bf16.mxu0 0
    %1217 = vmatpush2.bf16.msra.mxu0 0
    %1218 = vmatprep.subr.bf16.mxu0 0
    %1219 = vmatpush2.bf16.msra.mxu0 0
    %1220 = vmatprep.subr.bf16.mxu0 0
    %1221 = vmatpush2.bf16.msra.mxu0 0
    %1222 = vmatprep.mubr.bf16.mxu0 0
    %1223 = vmatmul.mubr.bf16.gmra.mxu0 %v1189
    %v1224 = vpop.f32.mrf.mxu0
    %v1225 = vadd.f32 %v603, %v1224
    %v1226 = vpop.f32.mrf.mxu0
    %v1227 = vadd.f32 %v607, %v1226
    %v1228 = vpop.f32.mrf.mxu0
    %v1229 = vpop.f32.mrf.mxu0
    %1230 = vdwg.mxu0
    %1231 = vmatprep.subr.bf16.mxu0 0
    %1232 = vmatpush1.bf16.msra.mxu0 %v726
    %1233 = vmatprep.subr.bf16.mxu0 0
    %1234 = vmatpush1.bf16.msra.mxu0 %v723
    %1235 = vmatprep.subr.bf16.mxu0 0
    %1236 = vmatpush1.bf16.msra.mxu0 %v720
    %1237 = vmatprep.subr.bf16.mxu0 0
    %1238 = vmatpush1.bf16.msra.mxu0 %v717
    %1239 = vmatprep.subr.bf16.mxu0 0
    %1240 = vmatpush1.bf16.msra.mxu0 %v714
    %1241 = vmatprep.subr.bf16.mxu0 0
    %1242 = vmatpush1.bf16.msra.mxu0 %v711
    %1243 = vmatprep.subr.bf16.mxu0 0
    %1244 = vmatpush1.bf16.msra.mxu0 %v708
    %1245 = vmatprep.subr.bf16.mxu0 0
    %1246 = vmatpush1.bf16.msra.mxu0 %v705
    %1247 = vmatprep.subr.bf16.mxu0 0
    %1248 = vmatpush2.bf16.msra.mxu0 0
    %1249 = vmatprep.subr.bf16.mxu0 0
    %1250 = vmatpush2.bf16.msra.mxu0 0
    %1251 = vmatprep.subr.bf16.mxu0 0
    %1252 = vmatpush2.bf16.msra.mxu0 0
    %1253 = vmatprep.subr.bf16.mxu0 0
    %1254 = vmatpush2.bf16.msra.mxu0 0
    %1255 = vmatprep.subr.bf16.mxu0 0
    %1256 = vmatpush2.bf16.msra.mxu0 0
    %1257 = vmatprep.subr.bf16.mxu0 0
    %1258 = vmatpush2.bf16.msra.mxu0 0
    %1259 = vmatprep.subr.bf16.mxu0 0
    %1260 = vmatpush2.bf16.msra.mxu0 0
    %1261 = vmatprep.subr.bf16.mxu0 0
    %1262 = vmatpush2.bf16.msra.mxu0 0
    %1263 = vmatprep.mubr.bf16.mxu0 0
    %1264 = vmatmul.mubr.bf16.gmra.mxu0 %v1189
    %v1265 = vpop.f32.mrf.mxu0
    %v1266 = vadd.f32 %v611, %v1265
    %v1267 = vpop.f32.mrf.mxu0
    %v1268 = vpop.f32.mrf.mxu0
    %v1269 = vpop.f32.mrf.mxu0
    %1270 = vdwg.mxu0
    %v1271 = vadd.f32 %v1186, %v1225
    %v1272 = vxor.u32 %v1271, 2147483648
    %v1273 = vmul.f32 %v1272, 1.442695
    %v1274 = vpow.pop %v1273
    %v1275 = vadd.f32 %v1274, 1.0
    %v1276 = vrcp.pop %v1275
    %v1277 = vmul.f32 1.0, %v1276
    %v1278 = vadd.f32 %v1187, %v1227
    %v1279 = vxor.u32 %v1278, 2147483648
    %v1280 = vmul.f32 %v1279, 1.442695
    %v1281 = vpow.pop %v1280
    %v1282 = vadd.f32 %v1281, 1.0
    %v1283 = vrcp.pop %v1282
    %v1284 = vmul.f32 1.0, %v1283
    %v1285 = vmul.f32 %v1277, %v1266
    %v1286 = vadd.f32 %v1188, %v1285
    %v1287 = vtanh.pop %v1286
    %v1288 = vsub.f32 %v1180, %v1287
    %v1289 = vmul.f32 %v1284, %v1288
    %v1290 = vadd.f32 %v1287, %v1289
    %s1291 = scalar_lea.vmem [#allocation3], 32
    %1292 = vst [vmem:[%s1291] sm:$0xff] %v1290
    %s1293 = smul.u32 5, 3
    %s1294 = smul.addr %s1293, 8
    %s1295 = scalar_lea.vmem [#allocation4], %s1294
    %v1296 = vld [vmem:[%s1295] sm:$0xff]
    %v1297 = vld [vmem:[%s1295 + $0x8] sm:$0xff]
    %v1298 = vld [vmem:[%s1295 + $0x10] sm:$0xff]
    %v1299 = vpack.c.bf16 %v1290, %v1290
    %1300 = vmatprep.subr.bf16.mxu0 %v725
    %1301 = vmatpush1.bf16.msra.mxu0 %v724
    %1302 = vmatprep.subr.bf16.mxu0 %v722
    %1303 = vmatpush1.bf16.msra.mxu0 %v721
    %1304 = vmatprep.subr.bf16.mxu0 %v719
    %1305 = vmatpush1.bf16.msra.mxu0 %v718
    %1306 = vmatprep.subr.bf16.mxu0 %v716
    %1307 = vmatpush1.bf16.msra.mxu0 %v715
    %1308 = vmatprep.subr.bf16.mxu0 %v713
    %1309 = vmatpush1.bf16.msra.mxu0 %v712
    %1310 = vmatprep.subr.bf16.mxu0 %v710
    %1311 = vmatpush1.bf16.msra.mxu0 %v709
    %1312 = vmatprep.subr.bf16.mxu0 %v707
    %1313 = vmatpush1.bf16.msra.mxu0 %v706
    %1314 = vmatprep.subr.bf16.mxu0 %v704
    %1315 = vmatpush1.bf16.msra.mxu0 %v703
    %1316 = vmatprep.subr.bf16.mxu0 0
    %1317 = vmatpush2.bf16.msra.mxu0 0
    %1318 = vmatprep.subr.bf16.mxu0 0
    %1319 = vmatpush2.bf16.msra.mxu0 0
    %1320 = vmatprep.subr.bf16.mxu0 0
    %1321 = vmatpush2.bf16.msra.mxu0 0
    %1322 = vmatprep.subr.bf16.mxu0 0
    %1323 = vmatpush2.bf16.msra.mxu0 0
    %1324 = vmatprep.subr.bf16.mxu0 0
    %1325 = vmatpush2.bf16.msra.mxu0 0
    %1326 = vmatprep.subr.bf16.mxu0 0
    %1327 = vmatpush2.bf16.msra.mxu0 0
    %1328 = vmatprep.subr.bf16.mxu0 0
    %1329 = vmatpush2.bf16.msra.mxu0 0
    %1330 = vmatprep.subr.bf16.mxu0 0
    %1331 = vmatpush2.bf16.msra.mxu0 0
    %1332 = vmatprep.mubr.bf16.mxu0 0
    %1333 = vmatmul.mubr.bf16.gmra.mxu0 %v1299
    %v1334 = vpop.f32.mrf.mxu0
    %v1335 = vadd.f32 %v603, %v1334
    %v1336 = vpop.f32.mrf.mxu0
    %v1337 = vadd.f32 %v607, %v1336
    %v1338 = vpop.f32.mrf.mxu0
    %v1339 = vpop.f32.mrf.mxu0
    %1340 = vdwg.mxu0
    %1341 = vmatprep.subr.bf16.mxu0 0
    %1342 = vmatpush1.bf16.msra.mxu0 %v726
    %1343 = vmatprep.subr.bf16.mxu0 0
    %1344 = vmatpush1.bf16.msra.mxu0 %v723
    %1345 = vmatprep.subr.bf16.mxu0 0
    %1346 = vmatpush1.bf16.msra.mxu0 %v720
    %1347 = vmatprep.subr.bf16.mxu0 0
    %1348 = vmatpush1.bf16.msra.mxu0 %v717
    %1349 = vmatprep.subr.bf16.mxu0 0
    %1350 = vmatpush1.bf16.msra.mxu0 %v714
    %1351 = vmatprep.subr.bf16.mxu0 0
    %1352 = vmatpush1.bf16.msra.mxu0 %v711
    %1353 = vmatprep.subr.bf16.mxu0 0
    %1354 = vmatpush1.bf16.msra.mxu0 %v708
    %1355 = vmatprep.subr.bf16.mxu0 0
    %1356 = vmatpush1.bf16.msra.mxu0 %v705
    %1357 = vmatprep.subr.bf16.mxu0 0
    %1358 = vmatpush2.bf16.msra.mxu0 0
    %1359 = vmatprep.subr.bf16.mxu0 0
    %1360 = vmatpush2.bf16.msra.mxu0 0
    %1361 = vmatprep.subr.bf16.mxu0 0
    %1362 = vmatpush2.bf16.msra.mxu0 0
    %1363 = vmatprep.subr.bf16.mxu0 0
    %1364 = vmatpush2.bf16.msra.mxu0 0
    %1365 = vmatprep.subr.bf16.mxu0 0
    %1366 = vmatpush2.bf16.msra.mxu0 0
    %1367 = vmatprep.subr.bf16.mxu0 0
    %1368 = vmatpush2.bf16.msra.mxu0 0
    %1369 = vmatprep.subr.bf16.mxu0 0
    %1370 = vmatpush2.bf16.msra.mxu0 0
    %1371 = vmatprep.subr.bf16.mxu0 0
    %1372 = vmatpush2.bf16.msra.mxu0 0
    %1373 = vmatprep.mubr.bf16.mxu0 0
    %1374 = vmatmul.mubr.bf16.gmra.mxu0 %v1299
    %v1375 = vpop.f32.mrf.mxu0
    %v1376 = vadd.f32 %v611, %v1375
    %v1377 = vpop.f32.mrf.mxu0
    %v1378 = vpop.f32.mrf.mxu0
    %v1379 = vpop.f32.mrf.mxu0
    %1380 = vdwg.mxu0
    %v1381 = vadd.f32 %v1296, %v1335
    %v1382 = vxor.u32 %v1381, 2147483648
    %v1383 = vmul.f32 %v1382, 1.442695
    %v1384 = vpow.pop %v1383
    %v1385 = vadd.f32 %v1384, 1.0
    %v1386 = vrcp.pop %v1385
    %v1387 = vmul.f32 1.0, %v1386
    %v1388 = vadd.f32 %v1297, %v1337
    %v1389 = vxor.u32 %v1388, 2147483648
    %v1390 = vmul.f32 %v1389, 1.442695
    %v1391 = vpow.pop %v1390
    %v1392 = vadd.f32 %v1391, 1.0
    %v1393 = vrcp.pop %v1392
    %v1394 = vmul.f32 1.0, %v1393
    %v1395 = vmul.f32 %v1387, %v1376
    %v1396 = vadd.f32 %v1298, %v1395
    %v1397 = vtanh.pop %v1396
    %v1398 = vsub.f32 %v1290, %v1397
    %v1399 = vmul.f32 %v1394, %v1398
    %v1400 = vadd.f32 %v1397, %v1399
    %s1401 = scalar_lea.vmem [#allocation3], 40
    %1402 = vst [vmem:[%s1401] sm:$0xff] %v1400
    %s1403 = smul.u32 6, 3
    %s1404 = smul.addr %s1403, 8
    %s1405 = scalar_lea.vmem [#allocation4], %s1404
    %v1406 = vld [vmem:[%s1405] sm:$0xff]
    %v1407 = vld [vmem:[%s1405 + $0x8] sm:$0xff]
    %v1408 = vld [vmem:[%s1405 + $0x10] sm:$0xff]
    %v1409 = vpack.c.bf16 %v1400, %v1400
    %1410 = vmatprep.subr.bf16.mxu0 %v725
    %1411 = vmatpush1.bf16.msra.mxu0 %v724
    %1412 = vmatprep.subr.bf16.mxu0 %v722
    %1413 = vmatpush1.bf16.msra.mxu0 %v721
    %1414 = vmatprep.subr.bf16.mxu0 %v719
    %1415 = vmatpush1.bf16.msra.mxu0 %v718
    %1416 = vmatprep.subr.bf16.mxu0 %v716
    %1417 = vmatpush1.bf16.msra.mxu0 %v715
    %1418 = vmatprep.subr.bf16.mxu0 %v713
    %1419 = vmatpush1.bf16.msra.mxu0 %v712
    %1420 = vmatprep.subr.bf16.mxu0 %v710
    %1421 = vmatpush1.bf16.msra.mxu0 %v709
    %1422 = vmatprep.subr.bf16.mxu0 %v707
    %1423 = vmatpush1.bf16.msra.mxu0 %v706
    %1424 = vmatprep.subr.bf16.mxu0 %v704
    %1425 = vmatpush1.bf16.msra.mxu0 %v703
    %1426 = vmatprep.subr.bf16.mxu0 0
    %1427 = vmatpush2.bf16.msra.mxu0 0
    %1428 = vmatprep.subr.bf16.mxu0 0
    %1429 = vmatpush2.bf16.msra.mxu0 0
    %1430 = vmatprep.subr.bf16.mxu0 0
    %1431 = vmatpush2.bf16.msra.mxu0 0
    %1432 = vmatprep.subr.bf16.mxu0 0
    %1433 = vmatpush2.bf16.msra.mxu0 0
    %1434 = vmatprep.subr.bf16.mxu0 0
    %1435 = vmatpush2.bf16.msra.mxu0 0
    %1436 = vmatprep.subr.bf16.mxu0 0
    %1437 = vmatpush2.bf16.msra.mxu0 0
    %1438 = vmatprep.subr.bf16.mxu0 0
    %1439 = vmatpush2.bf16.msra.mxu0 0
    %1440 = vmatprep.subr.bf16.mxu0 0
    %1441 = vmatpush2.bf16.msra.mxu0 0
    %1442 = vmatprep.mubr.bf16.mxu0 0
    %1443 = vmatmul.mubr.bf16.gmra.mxu0 %v1409
    %v1444 = vpop.f32.mrf.mxu0
    %v1445 = vadd.f32 %v603, %v1444
    %v1446 = vpop.f32.mrf.mxu0
    %v1447 = vadd.f32 %v607, %v1446
    %v1448 = vpop.f32.mrf.mxu0
    %v1449 = vpop.f32.mrf.mxu0
    %1450 = vdwg.mxu0
    %1451 = vmatprep.subr.bf16.mxu0 0
    %1452 = vmatpush1.bf16.msra.mxu0 %v726
    %1453 = vmatprep.subr.bf16.mxu0 0
    %1454 = vmatpush1.bf16.msra.mxu0 %v723
    %1455 = vmatprep.subr.bf16.mxu0 0
    %1456 = vmatpush1.bf16.msra.mxu0 %v720
    %1457 = vmatprep.subr.bf16.mxu0 0
    %1458 = vmatpush1.bf16.msra.mxu0 %v717
    %1459 = vmatprep.subr.bf16.mxu0 0
    %1460 = vmatpush1.bf16.msra.mxu0 %v714
    %1461 = vmatprep.subr.bf16.mxu0 0
    %1462 = vmatpush1.bf16.msra.mxu0 %v711
    %1463 = vmatprep.subr.bf16.mxu0 0
    %1464 = vmatpush1.bf16.msra.mxu0 %v708
    %1465 = vmatprep.subr.bf16.mxu0 0
    %1466 = vmatpush1.bf16.msra.mxu0 %v705
    %1467 = vmatprep.subr.bf16.mxu0 0
    %1468 = vmatpush2.bf16.msra.mxu0 0
    %1469 = vmatprep.subr.bf16.mxu0 0
    %1470 = vmatpush2.bf16.msra.mxu0 0
    %1471 = vmatprep.subr.bf16.mxu0 0
    %1472 = vmatpush2.bf16.msra.mxu0 0
    %1473 = vmatprep.subr.bf16.mxu0 0
    %1474 = vmatpush2.bf16.msra.mxu0 0
    %1475 = vmatprep.subr.bf16.mxu0 0
    %1476 = vmatpush2.bf16.msra.mxu0 0
    %1477 = vmatprep.subr.bf16.mxu0 0
    %1478 = vmatpush2.bf16.msra.mxu0 0
    %1479 = vmatprep.subr.bf16.mxu0 0
    %1480 = vmatpush2.bf16.msra.mxu0 0
    %1481 = vmatprep.subr.bf16.mxu0 0
    %1482 = vmatpush2.bf16.msra.mxu0 0
    %1483 = vmatprep.mubr.bf16.mxu0 0
    %1484 = vmatmul.mubr.bf16.gmra.mxu0 %v1409
    %v1485 = vpop.f32.mrf.mxu0
    %v1486 = vadd.f32 %v611, %v1485
    %v1487 = vpop.f32.mrf.mxu0
    %v1488 = vpop.f32.mrf.mxu0
    %v1489 = vpop.f32.mrf.mxu0
    %1490 = vdwg.mxu0
    %v1491 = vadd.f32 %v1406, %v1445
    %v1492 = vxor.u32 %v1491, 2147483648
    %v1493 = vmul.f32 %v1492, 1.442695
    %v1494 = vpow.pop %v1493
    %v1495 = vadd.f32 %v1494, 1.0
    %v1496 = vrcp.pop %v1495
    %v1497 = vmul.f32 1.0, %v1496
    %v1498 = vadd.f32 %v1407, %v1447
    %v1499 = vxor.u32 %v1498, 2147483648
    %v1500 = vmul.f32 %v1499, 1.442695
    %v1501 = vpow.pop %v1500
    %v1502 = vadd.f32 %v1501, 1.0
    %v1503 = vrcp.pop %v1502
    %v1504 = vmul.f32 1.0, %v1503
    %v1505 = vmul.f32 %v1497, %v1486
    %v1506 = vadd.f32 %v1408, %v1505
    %v1507 = vtanh.pop %v1506
    %v1508 = vsub.f32 %v1400, %v1507
    %v1509 = vmul.f32 %v1504, %v1508
    %v1510 = vadd.f32 %v1507, %v1509
    %s1511 = scalar_lea.vmem [#allocation3], 48
    %1512 = vst [vmem:[%s1511] sm:$0xff] %v1510
    %s1513 = smul.u32 7, 3
    %s1514 = smul.addr %s1513, 8
    %s1515 = scalar_lea.vmem [#allocation4], %s1514
    %v1516 = vld [vmem:[%s1515] sm:$0xff]
    %v1517 = vld [vmem:[%s1515 + $0x8] sm:$0xff]
    %v1518 = vld [vmem:[%s1515 + $0x10] sm:$0xff]
    %v1519 = vpack.c.bf16 %v1510, %v1510
    %1520 = vmatprep.subr.bf16.mxu0 %v725
    %1521 = vmatpush1.bf16.msra.mxu0 %v724
    %1522 = vmatprep.subr.bf16.mxu0 %v722
    %1523 = vmatpush1.bf16.msra.mxu0 %v721
    %1524 = vmatprep.subr.bf16.mxu0 %v719
    %1525 = vmatpush1.bf16.msra.mxu0 %v718
    %1526 = vmatprep.subr.bf16.mxu0 %v716
    %1527 = vmatpush1.bf16.msra.mxu0 %v715
    %1528 = vmatprep.subr.bf16.mxu0 %v713
    %1529 = vmatpush1.bf16.msra.mxu0 %v712
    %1530 = vmatprep.subr.bf16.mxu0 %v710
    %1531 = vmatpush1.bf16.msra.mxu0 %v709
    %1532 = vmatprep.subr.bf16.mxu0 %v707
    %1533 = vmatpush1.bf16.msra.mxu0 %v706
    %1534 = vmatprep.subr.bf16.mxu0 %v704
    %1535 = vmatpush1.bf16.msra.mxu0 %v703
    %1536 = vmatprep.subr.bf16.mxu0 0
    %1537 = vmatpush2.bf16.msra.mxu0 0
    %1538 = vmatprep.subr.bf16.mxu0 0
    %1539 = vmatpush2.bf16.msra.mxu0 0
    %1540 = vmatprep.subr.bf16.mxu0 0
    %1541 = vmatpush2.bf16.msra.mxu0 0
    %1542 = vmatprep.subr.bf16.mxu0 0
    %1543 = vmatpush2.bf16.msra.mxu0 0
    %1544 = vmatprep.subr.bf16.mxu0 0
    %1545 = vmatpush2.bf16.msra.mxu0 0
    %1546 = vmatprep.subr.bf16.mxu0 0
    %1547 = vmatpush2.bf16.msra.mxu0 0
    %1548 = vmatprep.subr.bf16.mxu0 0
    %1549 = vmatpush2.bf16.msra.mxu0 0
    %1550 = vmatprep.subr.bf16.mxu0 0
    %1551 = vmatpush2.bf16.msra.mxu0 0
    %1552 = vmatprep.mubr.bf16.mxu0 0
    %1553 = vmatmul.mubr.bf16.gmra.mxu0 %v1519
    %v1554 = vpop.f32.mrf.mxu0
    %v1555 = vadd.f32 %v603, %v1554
    %v1556 = vpop.f32.mrf.mxu0
    %v1557 = vadd.f32 %v607, %v1556
    %v1558 = vpop.f32.mrf.mxu0
    %v1559 = vpop.f32.mrf.mxu0
    %1560 = vdwg.mxu0
    %1561 = vmatprep.subr.bf16.mxu0 0
    %1562 = vmatpush1.bf16.msra.mxu0 %v726
    %1563 = vmatprep.subr.bf16.mxu0 0
    %1564 = vmatpush1.bf16.msra.mxu0 %v723
    %1565 = vmatprep.subr.bf16.mxu0 0
    %1566 = vmatpush1.bf16.msra.mxu0 %v720
    %1567 = vmatprep.subr.bf16.mxu0 0
    %1568 = vmatpush1.bf16.msra.mxu0 %v717
    %1569 = vmatprep.subr.bf16.mxu0 0
    %1570 = vmatpush1.bf16.msra.mxu0 %v714
    %1571 = vmatprep.subr.bf16.mxu0 0
    %1572 = vmatpush1.bf16.msra.mxu0 %v711
    %1573 = vmatprep.subr.bf16.mxu0 0
    %1574 = vmatpush1.bf16.msra.mxu0 %v708
    %1575 = vmatprep.subr.bf16.mxu0 0
    %1576 = vmatpush1.bf16.msra.mxu0 %v705
    %1577 = vmatprep.subr.bf16.mxu0 0
    %1578 = vmatpush2.bf16.msra.mxu0 0
    %1579 = vmatprep.subr.bf16.mxu0 0
    %1580 = vmatpush2.bf16.msra.mxu0 0
    %1581 = vmatprep.subr.bf16.mxu0 0
    %1582 = vmatpush2.bf16.msra.mxu0 0
    %1583 = vmatprep.subr.bf16.mxu0 0
    %1584 = vmatpush2.bf16.msra.mxu0 0
    %1585 = vmatprep.subr.bf16.mxu0 0
    %1586 = vmatpush2.bf16.msra.mxu0 0
    %1587 = vmatprep.subr.bf16.mxu0 0
    %1588 = vmatpush2.bf16.msra.mxu0 0
    %1589 = vmatprep.subr.bf16.mxu0 0
    %1590 = vmatpush2.bf16.msra.mxu0 0
    %1591 = vmatprep.subr.bf16.mxu0 0
    %1592 = vmatpush2.bf16.msra.mxu0 0
    %1593 = vmatprep.mubr.bf16.mxu0 0
    %1594 = vmatmul.mubr.bf16.gmra.mxu0 %v1519
    %v1595 = vpop.f32.mrf.mxu0
    %v1596 = vadd.f32 %v611, %v1595
    %v1597 = vpop.f32.mrf.mxu0
    %v1598 = vpop.f32.mrf.mxu0
    %v1599 = vpop.f32.mrf.mxu0
    %1600 = vdwg.mxu0
    %v1601 = vadd.f32 %v1516, %v1555
    %v1602 = vxor.u32 %v1601, 2147483648
    %v1603 = vmul.f32 %v1602, 1.442695
    %v1604 = vpow.pop %v1603
    %v1605 = vadd.f32 %v1604, 1.0
    %v1606 = vrcp.pop %v1605
    %v1607 = vmul.f32 1.0, %v1606
    %v1608 = vadd.f32 %v1517, %v1557
    %v1609 = vxor.u32 %v1608, 2147483648
    %v1610 = vmul.f32 %v1609, 1.442695
    %v1611 = vpow.pop %v1610
    %v1612 = vadd.f32 %v1611, 1.0
    %v1613 = vrcp.pop %v1612
    %v1614 = vmul.f32 1.0, %v1613
    %v1615 = vmul.f32 %v1607, %v1596
    %v1616 = vadd.f32 %v1518, %v1615
    %v1617 = vtanh.pop %v1616
    %v1618 = vsub.f32 %v1510, %v1617
    %v1619 = vmul.f32 %v1614, %v1618
    %v1620 = vadd.f32 %v1617, %v1619
    %s1621 = scalar_lea.vmem [#allocation3], 56
    %1622 = vst [vmem:[%s1621] sm:$0xff] %v1620
    %1623 = vst [vmem:[#allocation2] sm:$0xff] %v1620
    %v1624 = vld [vmem:[#allocation3] sm:$0xff]
    %v1625 = vld [vmem:[#allocation3 + $0x8] sm:$0xff]
    %v1626 = vld [vmem:[#allocation3 + $0x10] sm:$0xff]
    %v1627 = vld [vmem:[#allocation3 + $0x18] sm:$0xff]
    %v1628 = vld [vmem:[#allocation3 + $0x20] sm:$0xff]
    %v1629 = vld [vmem:[#allocation3 + $0x28] sm:$0xff]
    %v1630 = vld [vmem:[#allocation3 + $0x30] sm:$0xff]
    %v1631 = vld [vmem:[#allocation3 + $0x38] sm:$0xff]
    %v1632 = vpack.c.bf16 %v1625, %v1624
    %v1633 = vpack.c.bf16 %v1627, %v1626
    %v1634 = vpack.c.bf16 %v1629, %v1628
    %v1635 = vpack.c.bf16 %v1631, %v1630
    %v1636 = vld [vmem:[#allocation5] sm:$0xff]
    %v1637 = vld [vmem:[#allocation5 + $0x8] sm:$0xf]
    %v1638 = vld [vmem:[#allocation5 + $0xc] sm:$0xff]
    %v1639 = vld [vmem:[#allocation5 + $0x14] sm:$0xf]
    %v1640 = vld [vmem:[#allocation5 + $0x18] sm:$0xff]
    %v1641 = vld [vmem:[#allocation5 + $0x20] sm:$0xf]
    %v1642 = vld [vmem:[#allocation5 + $0x24] sm:$0xff]
    %v1643 = vld [vmem:[#allocation5 + $0x2c] sm:$0xf]
    %v1644 = vld [vmem:[#allocation5 + $0x30] sm:$0xff]
    %v1645 = vld [vmem:[#allocation5 + $0x38] sm:$0xf]
    %v1646 = vld [vmem:[#allocation5 + $0x3c] sm:$0xff]
    %v1647 = vld [vmem:[#allocation5 + $0x44] sm:$0xf]
    %v1648 = vld [vmem:[#allocation5 + $0x48] sm:$0xff]
    %v1649 = vld [vmem:[#allocation5 + $0x50] sm:$0xf]
    %v1650 = vld [vmem:[#allocation5 + $0x54] sm:$0xff]
    %v1651 = vld [vmem:[#allocation5 + $0x5c] sm:$0xf]
    %v1652 = vld [vmem:[#allocation5 + $0x60] sm:$0xff]
    %v1653 = vld [vmem:[#allocation5 + $0x68] sm:$0xf]
    %v1654 = vld [vmem:[#allocation5 + $0x6c] sm:$0xff]
    %v1655 = vld [vmem:[#allocation5 + $0x74] sm:$0xf]
    %v1656 = vld [vmem:[#allocation5 + $0x78] sm:$0xff]
    %v1657 = vld [vmem:[#allocation5 + $0x80] sm:$0xf]
    %v1658 = vld [vmem:[#allocation5 + $0x84] sm:$0xff]
    %v1659 = vld [vmem:[#allocation5 + $0x8c] sm:$0xf]
    %v1660 = vld [vmem:[#allocation5 + $0x90] sm:$0xff]
    %v1661 = vld [vmem:[#allocation5 + $0x98] sm:$0xf]
    %v1662 = vld [vmem:[#allocation5 + $0x9c] sm:$0xff]
    %v1663 = vld [vmem:[#allocation5 + $0xa4] sm:$0xf]
    %v1664 = vld [vmem:[#allocation5 + $0xa8] sm:$0xff]
    %v1665 = vld [vmem:[#allocation5 + $0xb0] sm:$0xf]
    %v1666 = vld [vmem:[#allocation5 + $0xb4] sm:$0xff]
    %v1667 = vld [vmem:[#allocation5 + $0xbc] sm:$0xf]
    %s1668 = scalar_lea.vmem %s4, 3
    %v1669 = vld [vmem:[%s1668] sm:$0x7]
    %v1671 = vlaneseq
    %v1672 = vshrl.u32 %v1671, 7
    %v1673 = vsub.s32 0, %v1672
    %v1674 = vrot.slane %v1669, %v1673
    %v1675 = vlaneseq
    %v1676 = vshrl.u32 %v1675, 7
    %v1677 = vsub.s32 1, %v1676
    %v1678 = vrot.slane %v1669, %v1677
    %v1679 = vlaneseq
    %v1680 = vshrl.u32 %v1679, 7
    %v1681 = vsub.s32 2, %v1680
    %v1682 = vrot.slane %v1669, %v1681
    %v1718 = vunpack.c.l.b16 %v1636
    %v1719 = vunpack.c.h.b16 %v1636
    %v1720 = vunpack.c.l.b16 %v1637
    %v1721 = vunpack.c.l.b16 %v1638
    %v1722 = vunpack.c.h.b16 %v1638
    %v1723 = vunpack.c.l.b16 %v1639
    %v1724 = vunpack.c.l.b16 %v1640
    %v1725 = vunpack.c.h.b16 %v1640
    %v1726 = vunpack.c.l.b16 %v1641
    %v1727 = vunpack.c.l.b16 %v1642
    %v1728 = vunpack.c.h.b16 %v1642
    %v1729 = vunpack.c.l.b16 %v1643
    %v1730 = vunpack.c.l.b16 %v1644
    %v1731 = vunpack.c.h.b16 %v1644
    %v1732 = vunpack.c.l.b16 %v1645
    %v1733 = vunpack.c.l.b16 %v1646
    %v1734 = vunpack.c.h.b16 %v1646
    %v1735 = vunpack.c.l.b16 %v1647
    %v1736 = vunpack.c.l.b16 %v1648
    %v1737 = vunpack.c.h.b16 %v1648
    %v1738 = vunpack.c.l.b16 %v1649
    %v1739 = vunpack.c.l.b16 %v1650
    %v1740 = vunpack.c.h.b16 %v1650
    %v1741 = vunpack.c.l.b16 %v1651
    %v1742 = vunpack.c.l.b16 %v1652
    %v1743 = vunpack.c.h.b16 %v1652
    %v1744 = vunpack.c.l.b16 %v1653
    %v1745 = vunpack.c.l.b16 %v1654
    %v1746 = vunpack.c.h.b16 %v1654
    %v1747 = vunpack.c.l.b16 %v1655
    %v1748 = vunpack.c.l.b16 %v1656
    %v1749 = vunpack.c.h.b16 %v1656
    %v1750 = vunpack.c.l.b16 %v1657
    %v1751 = vunpack.c.l.b16 %v1658
    %v1752 = vunpack.c.h.b16 %v1658
    %v1753 = vunpack.c.l.b16 %v1659
    %v1754 = vunpack.c.l.b16 %v1660
    %v1755 = vunpack.c.h.b16 %v1660
    %v1756 = vunpack.c.l.b16 %v1661
    %v1757 = vunpack.c.l.b16 %v1662
    %v1758 = vunpack.c.h.b16 %v1662
    %v1759 = vunpack.c.l.b16 %v1663
    %v1760 = vunpack.c.l.b16 %v1664
    %v1761 = vunpack.c.h.b16 %v1664
    %v1762 = vunpack.c.l.b16 %v1665
    %v1763 = vunpack.c.l.b16 %v1666
    %v1764 = vunpack.c.h.b16 %v1666
    %v1765 = vunpack.c.l.b16 %v1667
    %v1766 = vpack.c.b16 %v1721, %v1718
    %v1767 = vpack.c.b16 %v1722, %v1719
    %v1768 = vpack.c.b16 %v1723, %v1720
    %v1769 = vpack.c.b16 %v1727, %v1724
    %v1770 = vpack.c.b16 %v1728, %v1725
    %v1771 = vpack.c.b16 %v1729, %v1726
    %v1772 = vpack.c.b16 %v1733, %v1730
    %v1773 = vpack.c.b16 %v1734, %v1731
    %v1774 = vpack.c.b16 %v1735, %v1732
    %v1775 = vpack.c.b16 %v1739, %v1736
    %v1776 = vpack.c.b16 %v1740, %v1737
    %v1777 = vpack.c.b16 %v1741, %v1738
    %v1778 = vpack.c.b16 %v1745, %v1742
    %v1779 = vpack.c.b16 %v1746, %v1743
    %v1780 = vpack.c.b16 %v1747, %v1744
    %v1781 = vpack.c.b16 %v1751, %v1748
    %v1782 = vpack.c.b16 %v1752, %v1749
    %v1783 = vpack.c.b16 %v1753, %v1750
    %v1784 = vpack.c.b16 %v1757, %v1754
    %v1785 = vpack.c.b16 %v1758, %v1755
    %v1786 = vpack.c.b16 %v1759, %v1756
    %v1787 = vpack.c.b16 %v1763, %v1760
    %v1788 = vpack.c.b16 %v1764, %v1761
    %v1789 = vpack.c.b16 %v1765, %v1762
    %1814 = vmatprep.subr.bf16.mxu0 %v1788
    %1815 = vmatpush1.bf16.msra.mxu0 %v1787
    %1816 = vmatprep.subr.bf16.mxu0 %v1785
    %1817 = vmatpush1.bf16.msra.mxu0 %v1784
    %1818 = vmatprep.subr.bf16.mxu0 %v1782
    %1819 = vmatpush1.bf16.msra.mxu0 %v1781
    %1820 = vmatprep.subr.bf16.mxu0 %v1779
    %1821 = vmatpush1.bf16.msra.mxu0 %v1778
    %1822 = vmatprep.subr.bf16.mxu0 %v1776
    %1823 = vmatpush1.bf16.msra.mxu0 %v1775
    %1824 = vmatprep.subr.bf16.mxu0 %v1773
    %1825 = vmatpush1.bf16.msra.mxu0 %v1772
    %1826 = vmatprep.subr.bf16.mxu0 %v1770
    %1827 = vmatpush1.bf16.msra.mxu0 %v1769
    %1828 = vmatprep.subr.bf16.mxu0 %v1767
    %1829 = vmatpush1.bf16.msra.mxu0 %v1766
    %1830 = vmatprep.subr.bf16.mxu0 0
    %1831 = vmatpush2.bf16.msra.mxu0 0
    %1832 = vmatprep.subr.bf16.mxu0 0
    %1833 = vmatpush2.bf16.msra.mxu0 0
    %1834 = vmatprep.subr.bf16.mxu0 0
    %1835 = vmatpush2.bf16.msra.mxu0 0
    %1836 = vmatprep.subr.bf16.mxu0 0
    %1837 = vmatpush2.bf16.msra.mxu0 0
    %1838 = vmatprep.subr.bf16.mxu0 0
    %1839 = vmatpush2.bf16.msra.mxu0 0
    %1840 = vmatprep.subr.bf16.mxu0 0
    %1841 = vmatpush2.bf16.msra.mxu0 0
    %1842 = vmatprep.subr.bf16.mxu0 0
    %1843 = vmatpush2.bf16.msra.mxu0 0
    %1844 = vmatprep.subr.bf16.mxu0 0
    %1845 = vmatpush2.bf16.msra.mxu0 0
    %1846 = vmatprep.mubr.bf16.mxu0 0
    %1847 = vmatmul.mubr.bf16.gmra.mxu0 %v1632
    %v1848 = vpop.f32.mrf.mxu0
    %v1849 = vadd.f32 %v1674, %v1848
    %v1850 = vpop.f32.mrf.mxu0
    %v1851 = vadd.f32 %v1678, %v1850
    %v1852 = vpop.f32.mrf.mxu0
    %v1853 = vadd.f32 %v1674, %v1852
    %v1854 = vpop.f32.mrf.mxu0
    %v1855 = vadd.f32 %v1678, %v1854
    %1856 = vmatprep.mubr.bf16.mxu0 0
    %1857 = vmatmul.mubr.bf16.gmra.mxu0 %v1633
    %v1858 = vpop.f32.mrf.mxu0
    %v1859 = vadd.f32 %v1674, %v1858
    %v1860 = vpop.f32.mrf.mxu0
    %v1861 = vadd.f32 %v1678, %v1860
    %v1862 = vpop.f32.mrf.mxu0
    %v1863 = vadd.f32 %v1674, %v1862
    %v1864 = vpop.f32.mrf.mxu0
    %v1865 = vadd.f32 %v1678, %v1864
    %1866 = vmatprep.mubr.bf16.mxu0 0
    %1867 = vmatmul.mubr.bf16.gmra.mxu0 %v1634
    %v1868 = vpop.f32.mrf.mxu0
    %v1869 = vadd.f32 %v1674, %v1868
    %v1870 = vpop.f32.mrf.mxu0
    %v1871 = vadd.f32 %v1678, %v1870
    %v1872 = vpop.f32.mrf.mxu0
    %v1873 = vadd.f32 %v1674, %v1872
    %v1874 = vpop.f32.mrf.mxu0
    %v1875 = vadd.f32 %v1678, %v1874
    %1876 = vmatprep.mubr.bf16.mxu0 0
    %1877 = vmatmul.mubr.bf16.gmra.mxu0 %v1635
    %v1878 = vpop.f32.mrf.mxu0
    %v1879 = vadd.f32 %v1674, %v1878
    %v1880 = vpop.f32.mrf.mxu0
    %v1881 = vadd.f32 %v1678, %v1880
    %v1882 = vpop.f32.mrf.mxu0
    %v1883 = vadd.f32 %v1674, %v1882
    %v1884 = vpop.f32.mrf.mxu0
    %v1885 = vadd.f32 %v1678, %v1884
    %1886 = vdwg.mxu0
    %1887 = vmatprep.subr.bf16.mxu0 0
    %1888 = vmatpush1.bf16.msra.mxu0 %v1789
    %1889 = vmatprep.subr.bf16.mxu0 0
    %1890 = vmatpush1.bf16.msra.mxu0 %v1786
    %1891 = vmatprep.subr.bf16.mxu0 0
    %1892 = vmatpush1.bf16.msra.mxu0 %v1783
    %1893 = vmatprep.subr.bf16.mxu0 0
    %1894 = vmatpush1.bf16.msra.mxu0 %v1780
    %1895 = vmatprep.subr.bf16.mxu0 0
    %1896 = vmatpush1.bf16.msra.mxu0 %v1777
    %1897 = vmatprep.subr.bf16.mxu0 0
    %1898 = vmatpush1.bf16.msra.mxu0 %v1774
    %1899 = vmatprep.subr.bf16.mxu0 0
    %1900 = vmatpush1.bf16.msra.mxu0 %v1771
    %1901 = vmatprep.subr.bf16.mxu0 0
    %1902 = vmatpush1.bf16.msra.mxu0 %v1768
    %1903 = vmatprep.subr.bf16.mxu0 0
    %1904 = vmatpush2.bf16.msra.mxu0 0
    %1905 = vmatprep.subr.bf16.mxu0 0
    %1906 = vmatpush2.bf16.msra.mxu0 0
    %1907 = vmatprep.subr.bf16.mxu0 0
    %1908 = vmatpush2.bf16.msra.mxu0 0
    %1909 = vmatprep.subr.bf16.mxu0 0
    %1910 = vmatpush2.bf16.msra.mxu0 0
    %1911 = vmatprep.subr.bf16.mxu0 0
    %1912 = vmatpush2.bf16.msra.mxu0 0
    %1913 = vmatprep.subr.bf16.mxu0 0
    %1914 = vmatpush2.bf16.msra.mxu0 0
    %1915 = vmatprep.subr.bf16.mxu0 0
    %1916 = vmatpush2.bf16.msra.mxu0 0
    %1917 = vmatprep.subr.bf16.mxu0 0
    %1918 = vmatpush2.bf16.msra.mxu0 0
    %1919 = vmatprep.mubr.bf16.mxu0 0
    %1920 = vmatmul.mubr.bf16.gmra.mxu0 %v1632
    %v1921 = vpop.f32.mrf.mxu0
    %v1922 = vadd.f32 %v1682, %v1921
    %v1923 = vpop.f32.mrf.mxu0
    %v1924 = vpop.f32.mrf.mxu0
    %v1925 = vadd.f32 %v1682, %v1924
    %v1926 = vpop.f32.mrf.mxu0
    %1927 = vmatprep.mubr.bf16.mxu0 0
    %1928 = vmatmul.mubr.bf16.gmra.mxu0 %v1633
    %v1929 = vpop.f32.mrf.mxu0
    %v1930 = vadd.f32 %v1682, %v1929
    %v1931 = vpop.f32.mrf.mxu0
    %v1932 = vpop.f32.mrf.mxu0
    %v1933 = vadd.f32 %v1682, %v1932
    %v1934 = vpop.f32.mrf.mxu0
    %1935 = vmatprep.mubr.bf16.mxu0 0
    %1936 = vmatmul.mubr.bf16.gmra.mxu0 %v1634
    %v1937 = vpop.f32.mrf.mxu0
    %v1938 = vadd.f32 %v1682, %v1937
    %v1939 = vpop.f32.mrf.mxu0
    %v1940 = vpop.f32.mrf.mxu0
    %v1941 = vadd.f32 %v1682, %v1940
    %v1942 = vpop.f32.mrf.mxu0
    %1943 = vmatprep.mubr.bf16.mxu0 0
    %1944 = vmatmul.mubr.bf16.gmra.mxu0 %v1635
    %v1945 = vpop.f32.mrf.mxu0
    %v1946 = vadd.f32 %v1682, %v1945
    %v1947 = vpop.f32.mrf.mxu0
    %v1948 = vpop.f32.mrf.mxu0
    %v1949 = vadd.f32 %v1682, %v1948
    %v1950 = vpop.f32.mrf.mxu0
    %1951 = vdwg.mxu0
    %1952 = vst [vmem:[#allocation4] sm:$0xff] %v1849
    %1953 = vst [vmem:[#allocation4 + $0x8] sm:$0xff] %v1851
    %1954 = vst [vmem:[#allocation4 + $0x10] sm:$0xff] %v1922
    %1955 = vst [vmem:[#allocation4 + $0x18] sm:$0xff] %v1853
    %1956 = vst [vmem:[#allocation4 + $0x20] sm:$0xff] %v1855
    %1957 = vst [vmem:[#allocation4 + $0x28] sm:$0xff] %v1925
    %1958 = vst [vmem:[#allocation4 + $0x30] sm:$0xff] %v1859
    %1959 = vst [vmem:[#allocation4 + $0x38] sm:$0xff] %v1861
    %1960 = vst [vmem:[#allocation4 + $0x40] sm:$0xff] %v1930
    %1961 = vst [vmem:[#allocation4 + $0x48] sm:$0xff] %v1863
    %1962 = vst [vmem:[#allocation4 + $0x50] sm:$0xff] %v1865
    %1963 = vst [vmem:[#allocation4 + $0x58] sm:$0xff] %v1933
    %1964 = vst [vmem:[#allocation4 + $0x60] sm:$0xff] %v1869
    %1965 = vst [vmem:[#allocation4 + $0x68] sm:$0xff] %v1871
    %1966 = vst [vmem:[#allocation4 + $0x70] sm:$0xff] %v1938
    %1967 = vst [vmem:[#allocation4 + $0x78] sm:$0xff] %v1873
    %1968 = vst [vmem:[#allocation4 + $0x80] sm:$0xff] %v1875
    %1969 = vst [vmem:[#allocation4 + $0x88] sm:$0xff] %v1941
    %1970 = vst [vmem:[#allocation4 + $0x90] sm:$0xff] %v1879
    %1971 = vst [vmem:[#allocation4 + $0x98] sm:$0xff] %v1881
    %1972 = vst [vmem:[#allocation4 + $0xa0] sm:$0xff] %v1946
    %1973 = vst [vmem:[#allocation4 + $0xa8] sm:$0xff] %v1883
    %1974 = vst [vmem:[#allocation4 + $0xb0] sm:$0xff] %v1885
    %1975 = vst [vmem:[#allocation4 + $0xb8] sm:$0xff] %v1949
    %s1976 = scalar_lea.vmem [#allocation7], 192
    %v1977 = vld [vmem:[%s1976] sm:$0xff]
    %v1978 = vld [vmem:[%s1976 + $0x8] sm:$0xf]
    %v1979 = vld [vmem:[%s1976 + $0xc] sm:$0xff]
    %v1980 = vld [vmem:[%s1976 + $0x14] sm:$0xf]
    %v1981 = vld [vmem:[%s1976 + $0x18] sm:$0xff]
    %v1982 = vld [vmem:[%s1976 + $0x20] sm:$0xf]
    %v1983 = vld [vmem:[%s1976 + $0x24] sm:$0xff]
    %v1984 = vld [vmem:[%s1976 + $0x2c] sm:$0xf]
    %v1985 = vld [vmem:[%s1976 + $0x30] sm:$0xff]
    %v1986 = vld [vmem:[%s1976 + $0x38] sm:$0xf]
    %v1987 = vld [vmem:[%s1976 + $0x3c] sm:$0xff]
    %v1988 = vld [vmem:[%s1976 + $0x44] sm:$0xf]
    %v1989 = vld [vmem:[%s1976 + $0x48] sm:$0xff]
    %v1990 = vld [vmem:[%s1976 + $0x50] sm:$0xf]
    %v1991 = vld [vmem:[%s1976 + $0x54] sm:$0xff]
    %v1992 = vld [vmem:[%s1976 + $0x5c] sm:$0xf]
    %v1993 = vld [vmem:[%s1976 + $0x60] sm:$0xff]
    %v1994 = vld [vmem:[%s1976 + $0x68] sm:$0xf]
    %v1995 = vld [vmem:[%s1976 + $0x6c] sm:$0xff]
    %v1996 = vld [vmem:[%s1976 + $0x74] sm:$0xf]
    %v1997 = vld [vmem:[%s1976 + $0x78] sm:$0xff]
    %v1998 = vld [vmem:[%s1976 + $0x80] sm:$0xf]
    %v1999 = vld [vmem:[%s1976 + $0x84] sm:$0xff]
    %v2000 = vld [vmem:[%s1976 + $0x8c] sm:$0xf]
    %v2001 = vld [vmem:[%s1976 + $0x90] sm:$0xff]
    %v2002 = vld [vmem:[%s1976 + $0x98] sm:$0xf]
    %v2003 = vld [vmem:[%s1976 + $0x9c] sm:$0xff]
    %v2004 = vld [vmem:[%s1976 + $0xa4] sm:$0xf]
    %v2005 = vld [vmem:[%s1976 + $0xa8] sm:$0xff]
    %v2006 = vld [vmem:[%s1976 + $0xb0] sm:$0xf]
    %v2007 = vld [vmem:[%s1976 + $0xb4] sm:$0xff]
    %v2008 = vld [vmem:[%s1976 + $0xbc] sm:$0xf]
    %s2009 = scalar_lea.vmem %s5, 3
    %v2010 = vld [vmem:[%s2009] sm:$0x7]
    %v2012 = vlaneseq
    %v2013 = vshrl.u32 %v2012, 7
    %v2014 = vsub.s32 0, %v2013
    %v2015 = vrot.slane %v2010, %v2014
    %v2016 = vlaneseq
    %v2017 = vshrl.u32 %v2016, 7
    %v2018 = vsub.s32 1, %v2017
    %v2019 = vrot.slane %v2010, %v2018
    %v2020 = vlaneseq
    %v2021 = vshrl.u32 %v2020, 7
    %v2022 = vsub.s32 2, %v2021
    %v2023 = vrot.slane %v2010, %v2022
    %s2027 = scalar_lea.vmem [#allocation2], 8
    %v2028 = vld [vmem:[%s2027] sm:$0xff]
    %v2029 = vld [vmem:[%s618] sm:$0xff]
    %v2030 = vld [vmem:[%s618 + $0x8] sm:$0xff]
    %v2031 = vld [vmem:[%s618 + $0x10] sm:$0xff]
    %v2032 = vpack.c.bf16 %v2028, %v2028
    %v2065 = vunpack.c.l.b16 %v1977
    %v2066 = vunpack.c.h.b16 %v1977
    %v2067 = vunpack.c.l.b16 %v1978
    %v2068 = vunpack.c.l.b16 %v1979
    %v2069 = vunpack.c.h.b16 %v1979
    %v2070 = vunpack.c.l.b16 %v1980
    %v2071 = vunpack.c.l.b16 %v1981
    %v2072 = vunpack.c.h.b16 %v1981
    %v2073 = vunpack.c.l.b16 %v1982
    %v2074 = vunpack.c.l.b16 %v1983
    %v2075 = vunpack.c.h.b16 %v1983
    %v2076 = vunpack.c.l.b16 %v1984
    %v2077 = vunpack.c.l.b16 %v1985
    %v2078 = vunpack.c.h.b16 %v1985
    %v2079 = vunpack.c.l.b16 %v1986
    %v2080 = vunpack.c.l.b16 %v1987
    %v2081 = vunpack.c.h.b16 %v1987
    %v2082 = vunpack.c.l.b16 %v1988
    %v2083 = vunpack.c.l.b16 %v1989
    %v2084 = vunpack.c.h.b16 %v1989
    %v2085 = vunpack.c.l.b16 %v1990
    %v2086 = vunpack.c.l.b16 %v1991
    %v2087 = vunpack.c.h.b16 %v1991
    %v2088 = vunpack.c.l.b16 %v1992
    %v2089 = vunpack.c.l.b16 %v1993
    %v2090 = vunpack.c.h.b16 %v1993
    %v2091 = vunpack.c.l.b16 %v1994
    %v2092 = vunpack.c.l.b16 %v1995
    %v2093 = vunpack.c.h.b16 %v1995
    %v2094 = vunpack.c.l.b16 %v1996
    %v2095 = vunpack.c.l.b16 %v1997
    %v2096 = vunpack.c.h.b16 %v1997
    %v2097 = vunpack.c.l.b16 %v1998
    %v2098 = vunpack.c.l.b16 %v1999
    %v2099 = vunpack.c.h.b16 %v1999
    %v2100 = vunpack.c.l.b16 %v2000
    %v2101 = vunpack.c.l.b16 %v2001
    %v2102 = vunpack.c.h.b16 %v2001
    %v2103 = vunpack.c.l.b16 %v2002
    %v2104 = vunpack.c.l.b16 %v2003
    %v2105 = vunpack.c.h.b16 %v2003
    %v2106 = vunpack.c.l.b16 %v2004
    %v2107 = vunpack.c.l.b16 %v2005
    %v2108 = vunpack.c.h.b16 %v2005
    %v2109 = vunpack.c.l.b16 %v2006
    %v2110 = vunpack.c.l.b16 %v2007
    %v2111 = vunpack.c.h.b16 %v2007
    %v2112 = vunpack.c.l.b16 %v2008
    %v2113 = vpack.c.b16 %v2068, %v2065
    %v2114 = vpack.c.b16 %v2069, %v2066
    %v2115 = vpack.c.b16 %v2070, %v2067
    %v2116 = vpack.c.b16 %v2074, %v2071
    %v2117 = vpack.c.b16 %v2075, %v2072
    %v2118 = vpack.c.b16 %v2076, %v2073
    %v2119 = vpack.c.b16 %v2080, %v2077
    %v2120 = vpack.c.b16 %v2081, %v2078
    %v2121 = vpack.c.b16 %v2082, %v2079
    %v2122 = vpack.c.b16 %v2086, %v2083
    %v2123 = vpack.c.b16 %v2087, %v2084
    %v2124 = vpack.c.b16 %v2088, %v2085
    %v2125 = vpack.c.b16 %v2092, %v2089
    %v2126 = vpack.c.b16 %v2093, %v2090
    %v2127 = vpack.c.b16 %v2094, %v2091
    %v2128 = vpack.c.b16 %v2098, %v2095
    %v2129 = vpack.c.b16 %v2099, %v2096
    %v2130 = vpack.c.b16 %v2100, %v2097
    %v2131 = vpack.c.b16 %v2104, %v2101
    %v2132 = vpack.c.b16 %v2105, %v2102
    %v2133 = vpack.c.b16 %v2106, %v2103
    %v2134 = vpack.c.b16 %v2110, %v2107
    %v2135 = vpack.c.b16 %v2111, %v2108
    %v2136 = vpack.c.b16 %v2112, %v2109
    %2161 = vmatprep.subr.bf16.mxu0 %v2135
    %2162 = vmatpush1.bf16.msra.mxu0 %v2134
    %2163 = vmatprep.subr.bf16.mxu0 %v2132
    %2164 = vmatpush1.bf16.msra.mxu0 %v2131
    %2165 = vmatprep.subr.bf16.mxu0 %v2129
    %2166 = vmatpush1.bf16.msra.mxu0 %v2128
    %2167 = vmatprep.subr.bf16.mxu0 %v2126
    %2168 = vmatpush1.bf16.msra.mxu0 %v2125
    %2169 = vmatprep.subr.bf16.mxu0 %v2123
    %2170 = vmatpush1.bf16.msra.mxu0 %v2122
    %2171 = vmatprep.subr.bf16.mxu0 %v2120
    %2172 = vmatpush1.bf16.msra.mxu0 %v2119
    %2173 = vmatprep.subr.bf16.mxu0 %v2117
    %2174 = vmatpush1.bf16.msra.mxu0 %v2116
    %2175 = vmatprep.subr.bf16.mxu0 %v2114
    %2176 = vmatpush1.bf16.msra.mxu0 %v2113
    %2177 = vmatprep.subr.bf16.mxu0 0
    %2178 = vmatpush2.bf16.msra.mxu0 0
    %2179 = vmatprep.subr.bf16.mxu0 0
    %2180 = vmatpush2.bf16.msra.mxu0 0
    %2181 = vmatprep.subr.bf16.mxu0 0
    %2182 = vmatpush2.bf16.msra.mxu0 0
    %2183 = vmatprep.subr.bf16.mxu0 0
    %2184 = vmatpush2.bf16.msra.mxu0 0
    %2185 = vmatprep.subr.bf16.mxu0 0
    %2186 = vmatpush2.bf16.msra.mxu0 0
    %2187 = vmatprep.subr.bf16.mxu0 0
    %2188 = vmatpush2.bf16.msra.mxu0 0
    %2189 = vmatprep.subr.bf16.mxu0 0
    %2190 = vmatpush2.bf16.msra.mxu0 0
    %2191 = vmatprep.subr.bf16.mxu0 0
    %2192 = vmatpush2.bf16.msra.mxu0 0
    %2193 = vmatprep.mubr.bf16.mxu0 0
    %2194 = vmatmul.mubr.bf16.gmra.mxu0 %v2032
    %v2195 = vpop.f32.mrf.mxu0
    %v2196 = vadd.f32 %v2015, %v2195
    %v2197 = vpop.f32.mrf.mxu0
    %v2198 = vadd.f32 %v2019, %v2197
    %v2199 = vpop.f32.mrf.mxu0
    %v2200 = vpop.f32.mrf.mxu0
    %2201 = vdwg.mxu0
    %2202 = vmatprep.subr.bf16.mxu0 0
    %2203 = vmatpush1.bf16.msra.mxu0 %v2136
    %2204 = vmatprep.subr.bf16.mxu0 0
    %2205 = vmatpush1.bf16.msra.mxu0 %v2133
    %2206 = vmatprep.subr.bf16.mxu0 0
    %2207 = vmatpush1.bf16.msra.mxu0 %v2130
    %2208 = vmatprep.subr.bf16.mxu0 0
    %2209 = vmatpush1.bf16.msra.mxu0 %v2127
    %2210 = vmatprep.subr.bf16.mxu0 0
    %2211 = vmatpush1.bf16.msra.mxu0 %v2124
    %2212 = vmatprep.subr.bf16.mxu0 0
    %2213 = vmatpush1.bf16.msra.mxu0 %v2121
    %2214 = vmatprep.subr.bf16.mxu0 0
    %2215 = vmatpush1.bf16.msra.mxu0 %v2118
    %2216 = vmatprep.subr.bf16.mxu0 0
    %2217 = vmatpush1.bf16.msra.mxu0 %v2115
    %2218 = vmatprep.subr.bf16.mxu0 0
    %2219 = vmatpush2.bf16.msra.mxu0 0
    %2220 = vmatprep.subr.bf16.mxu0 0
    %2221 = vmatpush2.bf16.msra.mxu0 0
    %2222 = vmatprep.subr.bf16.mxu0 0
    %2223 = vmatpush2.bf16.msra.mxu0 0
    %2224 = vmatprep.subr.bf16.mxu0 0
    %2225 = vmatpush2.bf16.msra.mxu0 0
    %2226 = vmatprep.subr.bf16.mxu0 0
    %2227 = vmatpush2.bf16.msra.mxu0 0
    %2228 = vmatprep.subr.bf16.mxu0 0
    %2229 = vmatpush2.bf16.msra.mxu0 0
    %2230 = vmatprep.subr.bf16.mxu0 0
    %2231 = vmatpush2.bf16.msra.mxu0 0
    %2232 = vmatprep.subr.bf16.mxu0 0
    %2233 = vmatpush2.bf16.msra.mxu0 0
    %2234 = vmatprep.mubr.bf16.mxu0 0
    %2235 = vmatmul.mubr.bf16.gmra.mxu0 %v2032
    %v2236 = vpop.f32.mrf.mxu0
    %v2237 = vadd.f32 %v2023, %v2236
    %v2238 = vpop.f32.mrf.mxu0
    %v2239 = vpop.f32.mrf.mxu0
    %v2240 = vpop.f32.mrf.mxu0
    %2241 = vdwg.mxu0
    %v2242 = vadd.f32 %v2029, %v2196
    %v2243 = vxor.u32 %v2242, 2147483648
    %v2244 = vmul.f32 %v2243, 1.442695
    %v2245 = vpow.pop %v2244
    %v2246 = vadd.f32 %v2245, 1.0
    %v2247 = vrcp.pop %v2246
    %v2248 = vmul.f32 1.0, %v2247
    %v2249 = vadd.f32 %v2030, %v2198
    %v2250 = vxor.u32 %v2249, 2147483648
    %v2251 = vmul.f32 %v2250, 1.442695
    %v2252 = vpow.pop %v2251
    %v2253 = vadd.f32 %v2252, 1.0
    %v2254 = vrcp.pop %v2253
    %v2255 = vmul.f32 1.0, %v2254
    %v2256 = vmul.f32 %v2248, %v2237
    %v2257 = vadd.f32 %v2031, %v2256
    %v2258 = vtanh.pop %v2257
    %v2259 = vsub.f32 %v2028, %v2258
    %v2260 = vmul.f32 %v2255, %v2259
    %v2261 = vadd.f32 %v2258, %v2260
    %v2262 = vld [vmem:[%s855] sm:$0xff]
    %v2263 = vld [vmem:[%s855 + $0x8] sm:$0xff]
    %v2264 = vld [vmem:[%s855 + $0x10] sm:$0xff]
    %v2265 = vpack.c.bf16 %v2261, %v2261
    %2266 = vmatprep.subr.bf16.mxu0 %v2135
    %2267 = vmatpush1.bf16.msra.mxu0 %v2134
    %2268 = vmatprep.subr.bf16.mxu0 %v2132
    %2269 = vmatpush1.bf16.msra.mxu0 %v2131
    %2270 = vmatprep.subr.bf16.mxu0 %v2129
    %2271 = vmatpush1.bf16.msra.mxu0 %v2128
    %2272 = vmatprep.subr.bf16.mxu0 %v2126
    %2273 = vmatpush1.bf16.msra.mxu0 %v2125
    %2274 = vmatprep.subr.bf16.mxu0 %v2123
    %2275 = vmatpush1.bf16.msra.mxu0 %v2122
    %2276 = vmatprep.subr.bf16.mxu0 %v2120
    %2277 = vmatpush1.bf16.msra.mxu0 %v2119
    %2278 = vmatprep.subr.bf16.mxu0 %v2117
    %2279 = vmatpush1.bf16.msra.mxu0 %v2116
    %2280 = vmatprep.subr.bf16.mxu0 %v2114
    %2281 = vmatpush1.bf16.msra.mxu0 %v2113
    %2282 = vmatprep.subr.bf16.mxu0 0
    %2283 = vmatpush2.bf16.msra.mxu0 0
    %2284 = vmatprep.subr.bf16.mxu0 0
    %2285 = vmatpush2.bf16.msra.mxu0 0
    %2286 = vmatprep.subr.bf16.mxu0 0
    %2287 = vmatpush2.bf16.msra.mxu0 0
    %2288 = vmatprep.subr.bf16.mxu0 0
    %2289 = vmatpush2.bf16.msra.mxu0 0
    %2290 = vmatprep.subr.bf16.mxu0 0
    %2291 = vmatpush2.bf16.msra.mxu0 0
    %2292 = vmatprep.subr.bf16.mxu0 0
    %2293 = vmatpush2.bf16.msra.mxu0 0
    %2294 = vmatprep.subr.bf16.mxu0 0
    %2295 = vmatpush2.bf16.msra.mxu0 0
    %2296 = vmatprep.subr.bf16.mxu0 0
    %2297 = vmatpush2.bf16.msra.mxu0 0
    %2298 = vmatprep.mubr.bf16.mxu0 0
    %2299 = vmatmul.mubr.bf16.gmra.mxu0 %v2265
    %v2300 = vpop.f32.mrf.mxu0
    %v2301 = vadd.f32 %v2015, %v2300
    %v2302 = vpop.f32.mrf.mxu0
    %v2303 = vadd.f32 %v2019, %v2302
    %v2304 = vpop.f32.mrf.mxu0
    %v2305 = vpop.f32.mrf.mxu0
    %2306 = vdwg.mxu0
    %2307 = vmatprep.subr.bf16.mxu0 0
    %2308 = vmatpush1.bf16.msra.mxu0 %v2136
    %2309 = vmatprep.subr.bf16.mxu0 0
    %2310 = vmatpush1.bf16.msra.mxu0 %v2133
    %2311 = vmatprep.subr.bf16.mxu0 0
    %2312 = vmatpush1.bf16.msra.mxu0 %v2130
    %2313 = vmatprep.subr.bf16.mxu0 0
    %2314 = vmatpush1.bf16.msra.mxu0 %v2127
    %2315 = vmatprep.subr.bf16.mxu0 0
    %2316 = vmatpush1.bf16.msra.mxu0 %v2124
    %2317 = vmatprep.subr.bf16.mxu0 0
    %2318 = vmatpush1.bf16.msra.mxu0 %v2121
    %2319 = vmatprep.subr.bf16.mxu0 0
    %2320 = vmatpush1.bf16.msra.mxu0 %v2118
    %2321 = vmatprep.subr.bf16.mxu0 0
    %2322 = vmatpush1.bf16.msra.mxu0 %v2115
    %2323 = vmatprep.subr.bf16.mxu0 0
    %2324 = vmatpush2.bf16.msra.mxu0 0
    %2325 = vmatprep.subr.bf16.mxu0 0
    %2326 = vmatpush2.bf16.msra.mxu0 0
    %2327 = vmatprep.subr.bf16.mxu0 0
    %2328 = vmatpush2.bf16.msra.mxu0 0
    %2329 = vmatprep.subr.bf16.mxu0 0
    %2330 = vmatpush2.bf16.msra.mxu0 0
    %2331 = vmatprep.subr.bf16.mxu0 0
    %2332 = vmatpush2.bf16.msra.mxu0 0
    %2333 = vmatprep.subr.bf16.mxu0 0
    %2334 = vmatpush2.bf16.msra.mxu0 0
    %2335 = vmatprep.subr.bf16.mxu0 0
    %2336 = vmatpush2.bf16.msra.mxu0 0
    %2337 = vmatprep.subr.bf16.mxu0 0
    %2338 = vmatpush2.bf16.msra.mxu0 0
    %2339 = vmatprep.mubr.bf16.mxu0 0
    %2340 = vmatmul.mubr.bf16.gmra.mxu0 %v2265
    %v2341 = vpop.f32.mrf.mxu0
    %v2342 = vadd.f32 %v2023, %v2341
    %v2343 = vpop.f32.mrf.mxu0
    %v2344 = vpop.f32.mrf.mxu0
    %v2345 = vpop.f32.mrf.mxu0
    %2346 = vdwg.mxu0
    %v2347 = vadd.f32 %v2262, %v2301
    %v2348 = vxor.u32 %v2347, 2147483648
    %v2349 = vmul.f32 %v2348, 1.442695
    %v2350 = vpow.pop %v2349
    %v2351 = vadd.f32 %v2350, 1.0
    %v2352 = vrcp.pop %v2351
    %v2353 = vmul.f32 1.0, %v2352
    %v2354 = vadd.f32 %v2263, %v2303
    %v2355 = vxor.u32 %v2354, 2147483648
    %v2356 = vmul.f32 %v2355, 1.442695
    %v2357 = vpow.pop %v2356
    %v2358 = vadd.f32 %v2357, 1.0
    %v2359 = vrcp.pop %v2358
    %v2360 = vmul.f32 1.0, %v2359
    %v2361 = vmul.f32 %v2353, %v2342
    %v2362 = vadd.f32 %v2264, %v2361
    %v2363 = vtanh.pop %v2362
    %v2364 = vsub.f32 %v2261, %v2363
    %v2365 = vmul.f32 %v2360, %v2364
    %v2366 = vadd.f32 %v2363, %v2365
    %v2367 = vld [vmem:[%s965] sm:$0xff]
    %v2368 = vld [vmem:[%s965 + $0x8] sm:$0xff]
    %v2369 = vld [vmem:[%s965 + $0x10] sm:$0xff]
    %v2370 = vpack.c.bf16 %v2366, %v2366
    %2371 = vmatprep.subr.bf16.mxu0 %v2135
    %2372 = vmatpush1.bf16.msra.mxu0 %v2134
    %2373 = vmatprep.subr.bf16.mxu0 %v2132
    %2374 = vmatpush1.bf16.msra.mxu0 %v2131
    %2375 = vmatprep.subr.bf16.mxu0 %v2129
    %2376 = vmatpush1.bf16.msra.mxu0 %v2128
    %2377 = vmatprep.subr.bf16.mxu0 %v2126
    %2378 = vmatpush1.bf16.msra.mxu0 %v2125
    %2379 = vmatprep.subr.bf16.mxu0 %v2123
    %2380 = vmatpush1.bf16.msra.mxu0 %v2122
    %2381 = vmatprep.subr.bf16.mxu0 %v2120
    %2382 = vmatpush1.bf16.msra.mxu0 %v2119
    %2383 = vmatprep.subr.bf16.mxu0 %v2117
    %2384 = vmatpush1.bf16.msra.mxu0 %v2116
    %2385 = vmatprep.subr.bf16.mxu0 %v2114
    %2386 = vmatpush1.bf16.msra.mxu0 %v2113
    %2387 = vmatprep.subr.bf16.mxu0 0
    %2388 = vmatpush2.bf16.msra.mxu0 0
    %2389 = vmatprep.subr.bf16.mxu0 0
    %2390 = vmatpush2.bf16.msra.mxu0 0
    %2391 = vmatprep.subr.bf16.mxu0 0
    %2392 = vmatpush2.bf16.msra.mxu0 0
    %2393 = vmatprep.subr.bf16.mxu0 0
    %2394 = vmatpush2.bf16.msra.mxu0 0
    %2395 = vmatprep.subr.bf16.mxu0 0
    %2396 = vmatpush2.bf16.msra.mxu0 0
    %2397 = vmatprep.subr.bf16.mxu0 0
    %2398 = vmatpush2.bf16.msra.mxu0 0
    %2399 = vmatprep.subr.bf16.mxu0 0
    %2400 = vmatpush2.bf16.msra.mxu0 0
    %2401 = vmatprep.subr.bf16.mxu0 0
    %2402 = vmatpush2.bf16.msra.mxu0 0
    %2403 = vmatprep.mubr.bf16.mxu0 0
    %2404 = vmatmul.mubr.bf16.gmra.mxu0 %v2370
    %v2405 = vpop.f32.mrf.mxu0
    %v2406 = vadd.f32 %v2015, %v2405
    %v2407 = vpop.f32.mrf.mxu0
    %v2408 = vadd.f32 %v2019, %v2407
    %v2409 = vpop.f32.mrf.mxu0
    %v2410 = vpop.f32.mrf.mxu0
    %2411 = vdwg.mxu0
    %2412 = vmatprep.subr.bf16.mxu0 0
    %2413 = vmatpush1.bf16.msra.mxu0 %v2136
    %2414 = vmatprep.subr.bf16.mxu0 0
    %2415 = vmatpush1.bf16.msra.mxu0 %v2133
    %2416 = vmatprep.subr.bf16.mxu0 0
    %2417 = vmatpush1.bf16.msra.mxu0 %v2130
    %2418 = vmatprep.subr.bf16.mxu0 0
    %2419 = vmatpush1.bf16.msra.mxu0 %v2127
    %2420 = vmatprep.subr.bf16.mxu0 0
    %2421 = vmatpush1.bf16.msra.mxu0 %v2124
    %2422 = vmatprep.subr.bf16.mxu0 0
    %2423 = vmatpush1.bf16.msra.mxu0 %v2121
    %2424 = vmatprep.subr.bf16.mxu0 0
    %2425 = vmatpush1.bf16.msra.mxu0 %v2118
    %2426 = vmatprep.subr.bf16.mxu0 0
    %2427 = vmatpush1.bf16.msra.mxu0 %v2115
    %2428 = vmatprep.subr.bf16.mxu0 0
    %2429 = vmatpush2.bf16.msra.mxu0 0
    %2430 = vmatprep.subr.bf16.mxu0 0
    %2431 = vmatpush2.bf16.msra.mxu0 0
    %2432 = vmatprep.subr.bf16.mxu0 0
    %2433 = vmatpush2.bf16.msra.mxu0 0
    %2434 = vmatprep.subr.bf16.mxu0 0
    %2435 = vmatpush2.bf16.msra.mxu0 0
    %2436 = vmatprep.subr.bf16.mxu0 0
    %2437 = vmatpush2.bf16.msra.mxu0 0
    %2438 = vmatprep.subr.bf16.mxu0 0
    %2439 = vmatpush2.bf16.msra.mxu0 0
    %2440 = vmatprep.subr.bf16.mxu0 0
    %2441 = vmatpush2.bf16.msra.mxu0 0
    %2442 = vmatprep.subr.bf16.mxu0 0
    %2443 = vmatpush2.bf16.msra.mxu0 0
    %2444 = vmatprep.mubr.bf16.mxu0 0
    %2445 = vmatmul.mubr.bf16.gmra.mxu0 %v2370
    %v2446 = vpop.f32.mrf.mxu0
    %v2447 = vadd.f32 %v2023, %v2446
    %v2448 = vpop.f32.mrf.mxu0
    %v2449 = vpop.f32.mrf.mxu0
    %v2450 = vpop.f32.mrf.mxu0
    %2451 = vdwg.mxu0
    %v2452 = vadd.f32 %v2367, %v2406
    %v2453 = vxor.u32 %v2452, 2147483648
    %v2454 = vmul.f32 %v2453, 1.442695
    %v2455 = vpow.pop %v2454
    %v2456 = vadd.f32 %v2455, 1.0
    %v2457 = vrcp.pop %v2456
    %v2458 = vmul.f32 1.0, %v2457
    %v2459 = vadd.f32 %v2368, %v2408
    %v2460 = vxor.u32 %v2459, 2147483648
    %v2461 = vmul.f32 %v2460, 1.442695
    %v2462 = vpow.pop %v2461
    %v2463 = vadd.f32 %v2462, 1.0
    %v2464 = vrcp.pop %v2463
    %v2465 = vmul.f32 1.0, %v2464
    %v2466 = vmul.f32 %v2458, %v2447
    %v2467 = vadd.f32 %v2369, %v2466
    %v2468 = vtanh.pop %v2467
    %v2469 = vsub.f32 %v2366, %v2468
    %v2470 = vmul.f32 %v2465, %v2469
    %v2471 = vadd.f32 %v2468, %v2470
    %v2472 = vld [vmem:[%s1075] sm:$0xff]
    %v2473 = vld [vmem:[%s1075 + $0x8] sm:$0xff]
    %v2474 = vld [vmem:[%s1075 + $0x10] sm:$0xff]
    %v2475 = vpack.c.bf16 %v2471, %v2471
    %2476 = vmatprep.subr.bf16.mxu0 %v2135
    %2477 = vmatpush1.bf16.msra.mxu0 %v2134
    %2478 = vmatprep.subr.bf16.mxu0 %v2132
    %2479 = vmatpush1.bf16.msra.mxu0 %v2131
    %2480 = vmatprep.subr.bf16.mxu0 %v2129
    %2481 = vmatpush1.bf16.msra.mxu0 %v2128
    %2482 = vmatprep.subr.bf16.mxu0 %v2126
    %2483 = vmatpush1.bf16.msra.mxu0 %v2125
    %2484 = vmatprep.subr.bf16.mxu0 %v2123
    %2485 = vmatpush1.bf16.msra.mxu0 %v2122
    %2486 = vmatprep.subr.bf16.mxu0 %v2120
    %2487 = vmatpush1.bf16.msra.mxu0 %v2119
    %2488 = vmatprep.subr.bf16.mxu0 %v2117
    %2489 = vmatpush1.bf16.msra.mxu0 %v2116
    %2490 = vmatprep.subr.bf16.mxu0 %v2114
    %2491 = vmatpush1.bf16.msra.mxu0 %v2113
    %2492 = vmatprep.subr.bf16.mxu0 0
    %2493 = vmatpush2.bf16.msra.mxu0 0
    %2494 = vmatprep.subr.bf16.mxu0 0
    %2495 = vmatpush2.bf16.msra.mxu0 0
    %2496 = vmatprep.subr.bf16.mxu0 0
    %2497 = vmatpush2.bf16.msra.mxu0 0
    %2498 = vmatprep.subr.bf16.mxu0 0
    %2499 = vmatpush2.bf16.msra.mxu0 0
    %2500 = vmatprep.subr.bf16.mxu0 0
    %2501 = vmatpush2.bf16.msra.mxu0 0
    %2502 = vmatprep.subr.bf16.mxu0 0
    %2503 = vmatpush2.bf16.msra.mxu0 0
    %2504 = vmatprep.subr.bf16.mxu0 0
    %2505 = vmatpush2.bf16.msra.mxu0 0
    %2506 = vmatprep.subr.bf16.mxu0 0
    %2507 = vmatpush2.bf16.msra.mxu0 0
    %2508 = vmatprep.mubr.bf16.mxu0 0
    %2509 = vmatmul.mubr.bf16.gmra.mxu0 %v2475
    %v2510 = vpop.f32.mrf.mxu0
    %v2511 = vadd.f32 %v2015, %v2510
    %v2512 = vpop.f32.mrf.mxu0
    %v2513 = vadd.f32 %v2019, %v2512
    %v2514 = vpop.f32.mrf.mxu0
    %v2515 = vpop.f32.mrf.mxu0
    %2516 = vdwg.mxu0
    %2517 = vmatprep.subr.bf16.mxu0 0
    %2518 = vmatpush1.bf16.msra.mxu0 %v2136
    %2519 = vmatprep.subr.bf16.mxu0 0
    %2520 = vmatpush1.bf16.msra.mxu0 %v2133
    %2521 = vmatprep.subr.bf16.mxu0 0
    %2522 = vmatpush1.bf16.msra.mxu0 %v2130
    %2523 = vmatprep.subr.bf16.mxu0 0
    %2524 = vmatpush1.bf16.msra.mxu0 %v2127
    %2525 = vmatprep.subr.bf16.mxu0 0
    %2526 = vmatpush1.bf16.msra.mxu0 %v2124
    %2527 = vmatprep.subr.bf16.mxu0 0
    %2528 = vmatpush1.bf16.msra.mxu0 %v2121
    %2529 = vmatprep.subr.bf16.mxu0 0
    %2530 = vmatpush1.bf16.msra.mxu0 %v2118
    %2531 = vmatprep.subr.bf16.mxu0 0
    %2532 = vmatpush1.bf16.msra.mxu0 %v2115
    %2533 = vmatprep.subr.bf16.mxu0 0
    %2534 = vmatpush2.bf16.msra.mxu0 0
    %2535 = vmatprep.subr.bf16.mxu0 0
    %2536 = vmatpush2.bf16.msra.mxu0 0
    %2537 = vmatprep.subr.bf16.mxu0 0
    %2538 = vmatpush2.bf16.msra.mxu0 0
    %2539 = vmatprep.subr.bf16.mxu0 0
    %2540 = vmatpush2.bf16.msra.mxu0 0
    %2541 = vmatprep.subr.bf16.mxu0 0
    %2542 = vmatpush2.bf16.msra.mxu0 0
    %2543 = vmatprep.subr.bf16.mxu0 0
    %2544 = vmatpush2.bf16.msra.mxu0 0
    %2545 = vmatprep.subr.bf16.mxu0 0
    %2546 = vmatpush2.bf16.msra.mxu0 0
    %2547 = vmatprep.subr.bf16.mxu0 0
    %2548 = vmatpush2.bf16.msra.mxu0 0
    %2549 = vmatprep.mubr.bf16.mxu0 0
    %2550 = vmatmul.mubr.bf16.gmra.mxu0 %v2475
    %v2551 = vpop.f32.mrf.mxu0
    %v2552 = vadd.f32 %v2023, %v2551
    %v2553 = vpop.f32.mrf.mxu0
    %v2554 = vpop.f32.mrf.mxu0
    %v2555 = vpop.f32.mrf.mxu0
    %2556 = vdwg.mxu0
    %v2557 = vadd.f32 %v2472, %v2511
    %v2558 = vxor.u32 %v2557, 2147483648
    %v2559 = vmul.f32 %v2558, 1.442695
    %v2560 = vpow.pop %v2559
    %v2561 = vadd.f32 %v2560, 1.0
    %v2562 = vrcp.pop %v2561
    %v2563 = vmul.f32 1.0, %v2562
    %v2564 = vadd.f32 %v2473, %v2513
    %v2565 = vxor.u32 %v2564, 2147483648
    %v2566 = vmul.f32 %v2565, 1.442695
    %v2567 = vpow.pop %v2566
    %v2568 = vadd.f32 %v2567, 1.0
    %v2569 = vrcp.pop %v2568
    %v2570 = vmul.f32 1.0, %v2569
    %v2571 = vmul.f32 %v2563, %v2552
    %v2572 = vadd.f32 %v2474, %v2571
    %v2573 = vtanh.pop %v2572
    %v2574 = vsub.f32 %v2471, %v2573
    %v2575 = vmul.f32 %v2570, %v2574
    %v2576 = vadd.f32 %v2573, %v2575
    %v2577 = vld [vmem:[%s1185] sm:$0xff]
    %v2578 = vld [vmem:[%s1185 + $0x8] sm:$0xff]
    %v2579 = vld [vmem:[%s1185 + $0x10] sm:$0xff]
    %v2580 = vpack.c.bf16 %v2576, %v2576
    %2581 = vmatprep.subr.bf16.mxu0 %v2135
    %2582 = vmatpush1.bf16.msra.mxu0 %v2134
    %2583 = vmatprep.subr.bf16.mxu0 %v2132
    %2584 = vmatpush1.bf16.msra.mxu0 %v2131
    %2585 = vmatprep.subr.bf16.mxu0 %v2129
    %2586 = vmatpush1.bf16.msra.mxu0 %v2128
    %2587 = vmatprep.subr.bf16.mxu0 %v2126
    %2588 = vmatpush1.bf16.msra.mxu0 %v2125
    %2589 = vmatprep.subr.bf16.mxu0 %v2123
    %2590 = vmatpush1.bf16.msra.mxu0 %v2122
    %2591 = vmatprep.subr.bf16.mxu0 %v2120
    %2592 = vmatpush1.bf16.msra.mxu0 %v2119
    %2593 = vmatprep.subr.bf16.mxu0 %v2117
    %2594 = vmatpush1.bf16.msra.mxu0 %v2116
    %2595 = vmatprep.subr.bf16.mxu0 %v2114
    %2596 = vmatpush1.bf16.msra.mxu0 %v2113
    %2597 = vmatprep.subr.bf16.mxu0 0
    %2598 = vmatpush2.bf16.msra.mxu0 0
    %2599 = vmatprep.subr.bf16.mxu0 0
    %2600 = vmatpush2.bf16.msra.mxu0 0
    %2601 = vmatprep.subr.bf16.mxu0 0
    %2602 = vmatpush2.bf16.msra.mxu0 0
    %2603 = vmatprep.subr.bf16.mxu0 0
    %2604 = vmatpush2.bf16.msra.mxu0 0
    %2605 = vmatprep.subr.bf16.mxu0 0
    %2606 = vmatpush2.bf16.msra.mxu0 0
    %2607 = vmatprep.subr.bf16.mxu0 0
    %2608 = vmatpush2.bf16.msra.mxu0 0
    %2609 = vmatprep.subr.bf16.mxu0 0
    %2610 = vmatpush2.bf16.msra.mxu0 0
    %2611 = vmatprep.subr.bf16.mxu0 0
    %2612 = vmatpush2.bf16.msra.mxu0 0
    %2613 = vmatprep.mubr.bf16.mxu0 0
    %2614 = vmatmul.mubr.bf16.gmra.mxu0 %v2580
    %v2615 = vpop.f32.mrf.mxu0
    %v2616 = vadd.f32 %v2015, %v2615
    %v2617 = vpop.f32.mrf.mxu0
    %v2618 = vadd.f32 %v2019, %v2617
    %v2619 = vpop.f32.mrf.mxu0
    %v2620 = vpop.f32.mrf.mxu0
    %2621 = vdwg.mxu0
    %2622 = vmatprep.subr.bf16.mxu0 0
    %2623 = vmatpush1.bf16.msra.mxu0 %v2136
    %2624 = vmatprep.subr.bf16.mxu0 0
    %2625 = vmatpush1.bf16.msra.mxu0 %v2133
    %2626 = vmatprep.subr.bf16.mxu0 0
    %2627 = vmatpush1.bf16.msra.mxu0 %v2130
    %2628 = vmatprep.subr.bf16.mxu0 0
    %2629 = vmatpush1.bf16.msra.mxu0 %v2127
    %2630 = vmatprep.subr.bf16.mxu0 0
    %2631 = vmatpush1.bf16.msra.mxu0 %v2124
    %2632 = vmatprep.subr.bf16.mxu0 0
    %2633 = vmatpush1.bf16.msra.mxu0 %v2121
    %2634 = vmatprep.subr.bf16.mxu0 0
    %2635 = vmatpush1.bf16.msra.mxu0 %v2118
    %2636 = vmatprep.subr.bf16.mxu0 0
    %2637 = vmatpush1.bf16.msra.mxu0 %v2115
    %2638 = vmatprep.subr.bf16.mxu0 0
    %2639 = vmatpush2.bf16.msra.mxu0 0
    %2640 = vmatprep.subr.bf16.mxu0 0
    %2641 = vmatpush2.bf16.msra.mxu0 0
    %2642 = vmatprep.subr.bf16.mxu0 0
    %2643 = vmatpush2.bf16.msra.mxu0 0
    %2644 = vmatprep.subr.bf16.mxu0 0
    %2645 = vmatpush2.bf16.msra.mxu0 0
    %2646 = vmatprep.subr.bf16.mxu0 0
    %2647 = vmatpush2.bf16.msra.mxu0 0
    %2648 = vmatprep.subr.bf16.mxu0 0
    %2649 = vmatpush2.bf16.msra.mxu0 0
    %2650 = vmatprep.subr.bf16.mxu0 0
    %2651 = vmatpush2.bf16.msra.mxu0 0
    %2652 = vmatprep.subr.bf16.mxu0 0
    %2653 = vmatpush2.bf16.msra.mxu0 0
    %2654 = vmatprep.mubr.bf16.mxu0 0
    %2655 = vmatmul.mubr.bf16.gmra.mxu0 %v2580
    %v2656 = vpop.f32.mrf.mxu0
    %v2657 = vadd.f32 %v2023, %v2656
    %v2658 = vpop.f32.mrf.mxu0
    %v2659 = vpop.f32.mrf.mxu0
    %v2660 = vpop.f32.mrf.mxu0
    %2661 = vdwg.mxu0
    %v2662 = vadd.f32 %v2577, %v2616
    %v2663 = vxor.u32 %v2662, 2147483648
    %v2664 = vmul.f32 %v2663, 1.442695
    %v2665 = vpow.pop %v2664
    %v2666 = vadd.f32 %v2665, 1.0
    %v2667 = vrcp.pop %v2666
    %v2668 = vmul.f32 1.0, %v2667
    %v2669 = vadd.f32 %v2578, %v2618
    %v2670 = vxor.u32 %v2669, 2147483648
    %v2671 = vmul.f32 %v2670, 1.442695
    %v2672 = vpow.pop %v2671
    %v2673 = vadd.f32 %v2672, 1.0
    %v2674 = vrcp.pop %v2673
    %v2675 = vmul.f32 1.0, %v2674
    %v2676 = vmul.f32 %v2668, %v2657
    %v2677 = vadd.f32 %v2579, %v2676
    %v2678 = vtanh.pop %v2677
    %v2679 = vsub.f32 %v2576, %v2678
    %v2680 = vmul.f32 %v2675, %v2679
    %v2681 = vadd.f32 %v2678, %v2680
    %v2682 = vld [vmem:[%s1295] sm:$0xff]
    %v2683 = vld [vmem:[%s1295 + $0x8] sm:$0xff]
    %v2684 = vld [vmem:[%s1295 + $0x10] sm:$0xff]
    %v2685 = vpack.c.bf16 %v2681, %v2681
    %2686 = vmatprep.subr.bf16.mxu0 %v2135
    %2687 = vmatpush1.bf16.msra.mxu0 %v2134
    %2688 = vmatprep.subr.bf16.mxu0 %v2132
    %2689 = vmatpush1.bf16.msra.mxu0 %v2131
    %2690 = vmatprep.subr.bf16.mxu0 %v2129
    %2691 = vmatpush1.bf16.msra.mxu0 %v2128
    %2692 = vmatprep.subr.bf16.mxu0 %v2126
    %2693 = vmatpush1.bf16.msra.mxu0 %v2125
    %2694 = vmatprep.subr.bf16.mxu0 %v2123
    %2695 = vmatpush1.bf16.msra.mxu0 %v2122
    %2696 = vmatprep.subr.bf16.mxu0 %v2120
    %2697 = vmatpush1.bf16.msra.mxu0 %v2119
    %2698 = vmatprep.subr.bf16.mxu0 %v2117
    %2699 = vmatpush1.bf16.msra.mxu0 %v2116
    %2700 = vmatprep.subr.bf16.mxu0 %v2114
    %2701 = vmatpush1.bf16.msra.mxu0 %v2113
    %2702 = vmatprep.subr.bf16.mxu0 0
    %2703 = vmatpush2.bf16.msra.mxu0 0
    %2704 = vmatprep.subr.bf16.mxu0 0
    %2705 = vmatpush2.bf16.msra.mxu0 0
    %2706 = vmatprep.subr.bf16.mxu0 0
    %2707 = vmatpush2.bf16.msra.mxu0 0
    %2708 = vmatprep.subr.bf16.mxu0 0
    %2709 = vmatpush2.bf16.msra.mxu0 0
    %2710 = vmatprep.subr.bf16.mxu0 0
    %2711 = vmatpush2.bf16.msra.mxu0 0
    %2712 = vmatprep.subr.bf16.mxu0 0
    %2713 = vmatpush2.bf16.msra.mxu0 0
    %2714 = vmatprep.subr.bf16.mxu0 0
    %2715 = vmatpush2.bf16.msra.mxu0 0
    %2716 = vmatprep.subr.bf16.mxu0 0
    %2717 = vmatpush2.bf16.msra.mxu0 0
    %2718 = vmatprep.mubr.bf16.mxu0 0
    %2719 = vmatmul.mubr.bf16.gmra.mxu0 %v2685
    %v2720 = vpop.f32.mrf.mxu0
    %v2721 = vadd.f32 %v2015, %v2720
    %v2722 = vpop.f32.mrf.mxu0
    %v2723 = vadd.f32 %v2019, %v2722
    %v2724 = vpop.f32.mrf.mxu0
    %v2725 = vpop.f32.mrf.mxu0
    %2726 = vdwg.mxu0
    %2727 = vmatprep.subr.bf16.mxu0 0
    %2728 = vmatpush1.bf16.msra.mxu0 %v2136
    %2729 = vmatprep.subr.bf16.mxu0 0
    %2730 = vmatpush1.bf16.msra.mxu0 %v2133
    %2731 = vmatprep.subr.bf16.mxu0 0
    %2732 = vmatpush1.bf16.msra.mxu0 %v2130
    %2733 = vmatprep.subr.bf16.mxu0 0
    %2734 = vmatpush1.bf16.msra.mxu0 %v2127
    %2735 = vmatprep.subr.bf16.mxu0 0
    %2736 = vmatpush1.bf16.msra.mxu0 %v2124
    %2737 = vmatprep.subr.bf16.mxu0 0
    %2738 = vmatpush1.bf16.msra.mxu0 %v2121
    %2739 = vmatprep.subr.bf16.mxu0 0
    %2740 = vmatpush1.bf16.msra.mxu0 %v2118
    %2741 = vmatprep.subr.bf16.mxu0 0
    %2742 = vmatpush1.bf16.msra.mxu0 %v2115
    %2743 = vmatprep.subr.bf16.mxu0 0
    %2744 = vmatpush2.bf16.msra.mxu0 0
    %2745 = vmatprep.subr.bf16.mxu0 0
    %2746 = vmatpush2.bf16.msra.mxu0 0
    %2747 = vmatprep.subr.bf16.mxu0 0
    %2748 = vmatpush2.bf16.msra.mxu0 0
    %2749 = vmatprep.subr.bf16.mxu0 0
    %2750 = vmatpush2.bf16.msra.mxu0 0
    %2751 = vmatprep.subr.bf16.mxu0 0
    %2752 = vmatpush2.bf16.msra.mxu0 0
    %2753 = vmatprep.subr.bf16.mxu0 0
    %2754 = vmatpush2.bf16.msra.mxu0 0
    %2755 = vmatprep.subr.bf16.mxu0 0
    %2756 = vmatpush2.bf16.msra.mxu0 0
    %2757 = vmatprep.subr.bf16.mxu0 0
    %2758 = vmatpush2.bf16.msra.mxu0 0
    %2759 = vmatprep.mubr.bf16.mxu0 0
    %2760 = vmatmul.mubr.bf16.gmra.mxu0 %v2685
    %v2761 = vpop.f32.mrf.mxu0
    %v2762 = vadd.f32 %v2023, %v2761
    %v2763 = vpop.f32.mrf.mxu0
    %v2764 = vpop.f32.mrf.mxu0
    %v2765 = vpop.f32.mrf.mxu0
    %2766 = vdwg.mxu0
    %v2767 = vadd.f32 %v2682, %v2721
    %v2768 = vxor.u32 %v2767, 2147483648
    %v2769 = vmul.f32 %v2768, 1.442695
    %v2770 = vpow.pop %v2769
    %v2771 = vadd.f32 %v2770, 1.0
    %v2772 = vrcp.pop %v2771
    %v2773 = vmul.f32 1.0, %v2772
    %v2774 = vadd.f32 %v2683, %v2723
    %v2775 = vxor.u32 %v2774, 2147483648
    %v2776 = vmul.f32 %v2775, 1.442695
    %v2777 = vpow.pop %v2776
    %v2778 = vadd.f32 %v2777, 1.0
    %v2779 = vrcp.pop %v2778
    %v2780 = vmul.f32 1.0, %v2779
    %v2781 = vmul.f32 %v2773, %v2762
    %v2782 = vadd.f32 %v2684, %v2781
    %v2783 = vtanh.pop %v2782
    %v2784 = vsub.f32 %v2681, %v2783
    %v2785 = vmul.f32 %v2780, %v2784
    %v2786 = vadd.f32 %v2783, %v2785
    %v2787 = vld [vmem:[%s1405] sm:$0xff]
    %v2788 = vld [vmem:[%s1405 + $0x8] sm:$0xff]
    %v2789 = vld [vmem:[%s1405 + $0x10] sm:$0xff]
    %v2790 = vpack.c.bf16 %v2786, %v2786
    %2791 = vmatprep.subr.bf16.mxu0 %v2135
    %2792 = vmatpush1.bf16.msra.mxu0 %v2134
    %2793 = vmatprep.subr.bf16.mxu0 %v2132
    %2794 = vmatpush1.bf16.msra.mxu0 %v2131
    %2795 = vmatprep.subr.bf16.mxu0 %v2129
    %2796 = vmatpush1.bf16.msra.mxu0 %v2128
    %2797 = vmatprep.subr.bf16.mxu0 %v2126
    %2798 = vmatpush1.bf16.msra.mxu0 %v2125
    %2799 = vmatprep.subr.bf16.mxu0 %v2123
    %2800 = vmatpush1.bf16.msra.mxu0 %v2122
    %2801 = vmatprep.subr.bf16.mxu0 %v2120
    %2802 = vmatpush1.bf16.msra.mxu0 %v2119
    %2803 = vmatprep.subr.bf16.mxu0 %v2117
    %2804 = vmatpush1.bf16.msra.mxu0 %v2116
    %2805 = vmatprep.subr.bf16.mxu0 %v2114
    %2806 = vmatpush1.bf16.msra.mxu0 %v2113
    %2807 = vmatprep.subr.bf16.mxu0 0
    %2808 = vmatpush2.bf16.msra.mxu0 0
    %2809 = vmatprep.subr.bf16.mxu0 0
    %2810 = vmatpush2.bf16.msra.mxu0 0
    %2811 = vmatprep.subr.bf16.mxu0 0
    %2812 = vmatpush2.bf16.msra.mxu0 0
    %2813 = vmatprep.subr.bf16.mxu0 0
    %2814 = vmatpush2.bf16.msra.mxu0 0
    %2815 = vmatprep.subr.bf16.mxu0 0
    %2816 = vmatpush2.bf16.msra.mxu0 0
    %2817 = vmatprep.subr.bf16.mxu0 0
    %2818 = vmatpush2.bf16.msra.mxu0 0
    %2819 = vmatprep.subr.bf16.mxu0 0
    %2820 = vmatpush2.bf16.msra.mxu0 0
    %2821 = vmatprep.subr.bf16.mxu0 0
    %2822 = vmatpush2.bf16.msra.mxu0 0
    %2823 = vmatprep.mubr.bf16.mxu0 0
    %2824 = vmatmul.mubr.bf16.gmra.mxu0 %v2790
    %v2825 = vpop.f32.mrf.mxu0
    %v2826 = vadd.f32 %v2015, %v2825
    %v2827 = vpop.f32.mrf.mxu0
    %v2828 = vadd.f32 %v2019, %v2827
    %v2829 = vpop.f32.mrf.mxu0
    %v2830 = vpop.f32.mrf.mxu0
    %2831 = vdwg.mxu0
    %2832 = vmatprep.subr.bf16.mxu0 0
    %2833 = vmatpush1.bf16.msra.mxu0 %v2136
    %2834 = vmatprep.subr.bf16.mxu0 0
    %2835 = vmatpush1.bf16.msra.mxu0 %v2133
    %2836 = vmatprep.subr.bf16.mxu0 0
    %2837 = vmatpush1.bf16.msra.mxu0 %v2130
    %2838 = vmatprep.subr.bf16.mxu0 0
    %2839 = vmatpush1.bf16.msra.mxu0 %v2127
    %2840 = vmatprep.subr.bf16.mxu0 0
    %2841 = vmatpush1.bf16.msra.mxu0 %v2124
    %2842 = vmatprep.subr.bf16.mxu0 0
    %2843 = vmatpush1.bf16.msra.mxu0 %v2121
    %2844 = vmatprep.subr.bf16.mxu0 0
    %2845 = vmatpush1.bf16.msra.mxu0 %v2118
    %2846 = vmatprep.subr.bf16.mxu0 0
    %2847 = vmatpush1.bf16.msra.mxu0 %v2115
    %2848 = vmatprep.subr.bf16.mxu0 0
    %2849 = vmatpush2.bf16.msra.mxu0 0
    %2850 = vmatprep.subr.bf16.mxu0 0
    %2851 = vmatpush2.bf16.msra.mxu0 0
    %2852 = vmatprep.subr.bf16.mxu0 0
    %2853 = vmatpush2.bf16.msra.mxu0 0
    %2854 = vmatprep.subr.bf16.mxu0 0
    %2855 = vmatpush2.bf16.msra.mxu0 0
    %2856 = vmatprep.subr.bf16.mxu0 0
    %2857 = vmatpush2.bf16.msra.mxu0 0
    %2858 = vmatprep.subr.bf16.mxu0 0
    %2859 = vmatpush2.bf16.msra.mxu0 0
    %2860 = vmatprep.subr.bf16.mxu0 0
    %2861 = vmatpush2.bf16.msra.mxu0 0
    %2862 = vmatprep.subr.bf16.mxu0 0
    %2863 = vmatpush2.bf16.msra.mxu0 0
    %2864 = vmatprep.mubr.bf16.mxu0 0
    %2865 = vmatmul.mubr.bf16.gmra.mxu0 %v2790
    %v2866 = vpop.f32.mrf.mxu0
    %v2867 = vadd.f32 %v2023, %v2866
    %v2868 = vpop.f32.mrf.mxu0
    %v2869 = vpop.f32.mrf.mxu0
    %v2870 = vpop.f32.mrf.mxu0
    %2871 = vdwg.mxu0
    %v2872 = vadd.f32 %v2787, %v2826
    %v2873 = vxor.u32 %v2872, 2147483648
    %v2874 = vmul.f32 %v2873, 1.442695
    %v2875 = vpow.pop %v2874
    %v2876 = vadd.f32 %v2875, 1.0
    %v2877 = vrcp.pop %v2876
    %v2878 = vmul.f32 1.0, %v2877
    %v2879 = vadd.f32 %v2788, %v2828
    %v2880 = vxor.u32 %v2879, 2147483648
    %v2881 = vmul.f32 %v2880, 1.442695
    %v2882 = vpow.pop %v2881
    %v2883 = vadd.f32 %v2882, 1.0
    %v2884 = vrcp.pop %v2883
    %v2885 = vmul.f32 1.0, %v2884
    %v2886 = vmul.f32 %v2878, %v2867
    %v2887 = vadd.f32 %v2789, %v2886
    %v2888 = vtanh.pop %v2887
    %v2889 = vsub.f32 %v2786, %v2888
    %v2890 = vmul.f32 %v2885, %v2889
    %v2891 = vadd.f32 %v2888, %v2890
    %v2892 = vld [vmem:[%s1515] sm:$0xff]
    %v2893 = vld [vmem:[%s1515 + $0x8] sm:$0xff]
    %v2894 = vld [vmem:[%s1515 + $0x10] sm:$0xff]
    %v2895 = vpack.c.bf16 %v2891, %v2891
    %2896 = vmatprep.subr.bf16.mxu0 %v2135
    %2897 = vmatpush1.bf16.msra.mxu0 %v2134
    %2898 = vmatprep.subr.bf16.mxu0 %v2132
    %2899 = vmatpush1.bf16.msra.mxu0 %v2131
    %2900 = vmatprep.subr.bf16.mxu0 %v2129
    %2901 = vmatpush1.bf16.msra.mxu0 %v2128
    %2902 = vmatprep.subr.bf16.mxu0 %v2126
    %2903 = vmatpush1.bf16.msra.mxu0 %v2125
    %2904 = vmatprep.subr.bf16.mxu0 %v2123
    %2905 = vmatpush1.bf16.msra.mxu0 %v2122
    %2906 = vmatprep.subr.bf16.mxu0 %v2120
    %2907 = vmatpush1.bf16.msra.mxu0 %v2119
    %2908 = vmatprep.subr.bf16.mxu0 %v2117
    %2909 = vmatpush1.bf16.msra.mxu0 %v2116
    %2910 = vmatprep.subr.bf16.mxu0 %v2114
    %2911 = vmatpush1.bf16.msra.mxu0 %v2113
    %2912 = vmatprep.subr.bf16.mxu0 0
    %2913 = vmatpush2.bf16.msra.mxu0 0
    %2914 = vmatprep.subr.bf16.mxu0 0
    %2915 = vmatpush2.bf16.msra.mxu0 0
    %2916 = vmatprep.subr.bf16.mxu0 0
    %2917 = vmatpush2.bf16.msra.mxu0 0
    %2918 = vmatprep.subr.bf16.mxu0 0
    %2919 = vmatpush2.bf16.msra.mxu0 0
    %2920 = vmatprep.subr.bf16.mxu0 0
    %2921 = vmatpush2.bf16.msra.mxu0 0
    %2922 = vmatprep.subr.bf16.mxu0 0
    %2923 = vmatpush2.bf16.msra.mxu0 0
    %2924 = vmatprep.subr.bf16.mxu0 0
    %2925 = vmatpush2.bf16.msra.mxu0 0
    %2926 = vmatprep.subr.bf16.mxu0 0
    %2927 = vmatpush2.bf16.msra.mxu0 0
    %2928 = vmatprep.mubr.bf16.mxu0 0
    %2929 = vmatmul.mubr.bf16.gmra.mxu0 %v2895
    %v2930 = vpop.f32.mrf.mxu0
    %v2931 = vadd.f32 %v2015, %v2930
    %v2932 = vpop.f32.mrf.mxu0
    %v2933 = vadd.f32 %v2019, %v2932
    %v2934 = vpop.f32.mrf.mxu0
    %v2935 = vpop.f32.mrf.mxu0
    %2936 = vdwg.mxu0
    %2937 = vmatprep.subr.bf16.mxu0 0
    %2938 = vmatpush1.bf16.msra.mxu0 %v2136
    %2939 = vmatprep.subr.bf16.mxu0 0
    %2940 = vmatpush1.bf16.msra.mxu0 %v2133
    %2941 = vmatprep.subr.bf16.mxu0 0
    %2942 = vmatpush1.bf16.msra.mxu0 %v2130
    %2943 = vmatprep.subr.bf16.mxu0 0
    %2944 = vmatpush1.bf16.msra.mxu0 %v2127
    %2945 = vmatprep.subr.bf16.mxu0 0
    %2946 = vmatpush1.bf16.msra.mxu0 %v2124
    %2947 = vmatprep.subr.bf16.mxu0 0
    %2948 = vmatpush1.bf16.msra.mxu0 %v2121
    %2949 = vmatprep.subr.bf16.mxu0 0
    %2950 = vmatpush1.bf16.msra.mxu0 %v2118
    %2951 = vmatprep.subr.bf16.mxu0 0
    %2952 = vmatpush1.bf16.msra.mxu0 %v2115
    %2953 = vmatprep.subr.bf16.mxu0 0
    %2954 = vmatpush2.bf16.msra.mxu0 0
    %2955 = vmatprep.subr.bf16.mxu0 0
    %2956 = vmatpush2.bf16.msra.mxu0 0
    %2957 = vmatprep.subr.bf16.mxu0 0
    %2958 = vmatpush2.bf16.msra.mxu0 0
    %2959 = vmatprep.subr.bf16.mxu0 0
    %2960 = vmatpush2.bf16.msra.mxu0 0
    %2961 = vmatprep.subr.bf16.mxu0 0
    %2962 = vmatpush2.bf16.msra.mxu0 0
    %2963 = vmatprep.subr.bf16.mxu0 0
    %2964 = vmatpush2.bf16.msra.mxu0 0
    %2965 = vmatprep.subr.bf16.mxu0 0
    %2966 = vmatpush2.bf16.msra.mxu0 0
    %2967 = vmatprep.subr.bf16.mxu0 0
    %2968 = vmatpush2.bf16.msra.mxu0 0
    %2969 = vmatprep.mubr.bf16.mxu0 0
    %2970 = vmatmul.mubr.bf16.gmra.mxu0 %v2895
    %v2971 = vpop.f32.mrf.mxu0
    %v2972 = vadd.f32 %v2023, %v2971
    %v2973 = vpop.f32.mrf.mxu0
    %v2974 = vpop.f32.mrf.mxu0
    %v2975 = vpop.f32.mrf.mxu0
    %2976 = vdwg.mxu0
    %v2977 = vadd.f32 %v2892, %v2931
    %v2978 = vxor.u32 %v2977, 2147483648
    %v2979 = vmul.f32 %v2978, 1.442695
    %v2980 = vpow.pop %v2979
    %v2981 = vadd.f32 %v2980, 1.0
    %v2982 = vrcp.pop %v2981
    %v2983 = vmul.f32 1.0, %v2982
    %v2984 = vadd.f32 %v2893, %v2933
    %v2985 = vxor.u32 %v2984, 2147483648
    %v2986 = vmul.f32 %v2985, 1.442695
    %v2987 = vpow.pop %v2986
    %v2988 = vadd.f32 %v2987, 1.0
    %v2989 = vrcp.pop %v2988
    %v2990 = vmul.f32 1.0, %v2989
    %v2991 = vmul.f32 %v2983, %v2972
    %v2992 = vadd.f32 %v2894, %v2991
    %v2993 = vtanh.pop %v2992
    %v2994 = vsub.f32 %v2891, %v2993
    %v2995 = vmul.f32 %v2990, %v2994
    %v2996 = vadd.f32 %v2993, %v2995
    %2997 = vst [vmem:[%s2027] sm:$0xff] %v2996
    // Predicated region
    $region50: #{stock_gru_forward.1} parent=1 // pred_check
      %p2998 = pneg %p71
    $region51: #{stock_gru_forward.1} parent=1 // pred_check_branch
      %3000 = sbr.rel (%p2998) target = $region53
    $region52: #{stock_gru_forward.1} parent=1 // pred_region
      %v3001 = vld [vmem:[%s2027] sm:$0xff]
      %v3002 = vld [vmem:[#allocation9] sm:$0xff]
      %v3003 = vld [vmem:[#allocation9 + $0x8] sm:$0xff]
      %v3004 = vld [vmem:[#allocation9 + $0x10] sm:$0xff]
      %v3005 = vld [vmem:[#allocation9 + $0x18] sm:$0xff]
      %v3006 = vld [vmem:[#allocation9 + $0x20] sm:$0xff]
      %v3007 = vld [vmem:[#allocation9 + $0x28] sm:$0xff]
      %v3008 = vld [vmem:[#allocation9 + $0x30] sm:$0xff]
      %v3009 = vld [vmem:[#allocation9 + $0x38] sm:$0xff]
      %v3010 = vld [vmem:[#allocation9 + $0x40] sm:$0xff]
      %v3011 = vld [vmem:[#allocation9 + $0x48] sm:$0xff]
      %v3012 = vld [vmem:[#allocation9 + $0x50] sm:$0xff]
      %v3013 = vld [vmem:[#allocation9 + $0x58] sm:$0xff]
      %v3014 = vld [vmem:[#allocation9 + $0x60] sm:$0xff]
      %v3015 = vld [vmem:[#allocation9 + $0x68] sm:$0xff]
      %v3016 = vld [vmem:[#allocation9 + $0x70] sm:$0xff]
      %v3017 = vld [vmem:[#allocation9 + $0x78] sm:$0xff]
      %v3018 = vld [vmem:[%s7] sm:$0x1]
      %v3020 = vlaneseq
      %v3021 = vshrl.u32 %v3020, 7
      %v3022 = vsub.s32 0, %v3021
      %v3023 = vrot.slane %v3018, %v3022
      %3025 = vmatprep.subr.mxu0 0.0
      %3026 = vmatpush1.msra.mxu0 %v3017
      %3027 = vmatprep.subr.mxu0 0.0
      %3028 = vmatpush1.msra.mxu0 %v3016
      %3029 = vmatprep.subr.mxu0 0.0
      %3030 = vmatpush1.msra.mxu0 %v3015
      %3031 = vmatprep.subr.mxu0 0.0
      %3032 = vmatpush1.msra.mxu0 %v3014
      %3033 = vmatprep.subr.mxu0 0.0
      %3034 = vmatpush1.msra.mxu0 %v3013
      %3035 = vmatprep.subr.mxu0 0.0
      %3036 = vmatpush1.msra.mxu0 %v3012
      %3037 = vmatprep.subr.mxu0 0.0
      %3038 = vmatpush1.msra.mxu0 %v3011
      %3039 = vmatprep.subr.mxu0 0.0
      %3040 = vmatpush1.msra.mxu0 %v3010
      %3041 = vmatprep.subr.mxu0 0.0
      %3042 = vmatpush1.msra.mxu0 %v3009
      %3043 = vmatprep.subr.mxu0 0.0
      %3044 = vmatpush1.msra.mxu0 %v3008
      %3045 = vmatprep.subr.mxu0 0.0
      %3046 = vmatpush1.msra.mxu0 %v3007
      %3047 = vmatprep.subr.mxu0 0.0
      %3048 = vmatpush1.msra.mxu0 %v3006
      %3049 = vmatprep.subr.mxu0 0.0
      %3050 = vmatpush1.msra.mxu0 %v3005
      %3051 = vmatprep.subr.mxu0 0.0
      %3052 = vmatpush1.msra.mxu0 %v3004
      %3053 = vmatprep.subr.mxu0 0.0
      %3054 = vmatpush1.msra.mxu0 %v3003
      %3055 = vmatprep.subr.mxu0 0.0
      %3056 = vmatpush1.msra.mxu0 %v3002
      %3057 = vmatprep.subr.mxu0 0.0
      %3058 = vmatpush2.msra.mxu0 0.0
      %3059 = vmatprep.subr.mxu0 0.0
      %3060 = vmatpush2.msra.mxu0 0.0
      %3061 = vmatprep.subr.mxu0 0.0
      %3062 = vmatpush2.msra.mxu0 0.0
      %3063 = vmatprep.subr.mxu0 0.0
      %3064 = vmatpush2.msra.mxu0 0.0
      %3065 = vmatprep.subr.mxu0 0.0
      %3066 = vmatpush2.msra.mxu0 0.0
      %3067 = vmatprep.subr.mxu0 0.0
      %3068 = vmatpush2.msra.mxu0 0.0
      %3069 = vmatprep.subr.mxu0 0.0
      %3070 = vmatpush2.msra.mxu0 0.0
      %3071 = vmatprep.subr.mxu0 0.0
      %3072 = vmatpush2.msra.mxu0 0.0
      %3073 = vmatprep.subr.mxu0 0.0
      %3074 = vmatpush2.msra.mxu0 0.0
      %3075 = vmatprep.subr.mxu0 0.0
      %3076 = vmatpush2.msra.mxu0 0.0
      %3077 = vmatprep.subr.mxu0 0.0
      %3078 = vmatpush2.msra.mxu0 0.0
      %3079 = vmatprep.subr.mxu0 0.0
      %3080 = vmatpush2.msra.mxu0 0.0
      %3081 = vmatprep.subr.mxu0 0.0
      %3082 = vmatpush2.msra.mxu0 0.0
      %3083 = vmatprep.subr.mxu0 0.0
      %3084 = vmatpush2.msra.mxu0 0.0
      %3085 = vmatprep.subr.mxu0 0.0
      %3086 = vmatpush2.msra.mxu0 0.0
      %3087 = vmatprep.subr.mxu0 0.0
      %3088 = vmatpush2.msra.mxu0 0.0
      %3089 = vmatprep.mubr.f32.mxu0 0.0
      %3090 = vmatmul.mubr.f32.gmra.mxu0 %v3001
      %v3091 = vpop.f32.mrf.mxu0
      %v3092 = vadd.f32 %v3023, %v3091
      %v3093 = vpop.f32.mrf.mxu0
      %3094 = vdwg.mxu0
      %3095 = vst [vmem:[%s8] sm:$0xff] %v3092
    $region53: #{stock_gru_forward.1} parent=1 // pred_fallthru
      _
    // Predicated region
    $region54: #{stock_gru_forward.1} parent=1 // pred_check
      _
    $region55: #{stock_gru_forward.1} parent=1 // pred_check_branch
      %3097 = sbr.rel (0) target = $region57
    $region56: #{stock_gru_forward.1} parent=1 // pred_region
      _
    $region57: #{stock_gru_forward.1} parent=1 // pred_fallthru
      _
    // Predicated region
    $region58: #{stock_gru_forward.1} parent=1 // pred_check
      _
    $region59: #{stock_gru_forward.1} parent=1 // pred_check_branch
      %3099 = sbr.rel (0) target = $region61
    $region60: #{stock_gru_forward.1} parent=1 // pred_region
      _
    $region61: #{stock_gru_forward.1} parent=1 // pred_fallthru
      _
    %3100 = vsyncpa [#allocation6], 1
    %3101 = vsyncpa [#allocation8], 1

</llo_original>
